<compile_context>
chip_gen: v7x
topology: tpu7x:2x2x1
jax: 0.10.0
libtpu: 0.0.40
codegen_flags: <defaults>
</compile_context>

<pallas_src>
import functools

import jax
import jax.numpy as jnp
from jax.experimental import pallas as pl
from jax.experimental.pallas import tpu as pltpu

D_IN = 784    # fc1 in / fc4 out
D_H = 400     # hidden
D_Z = 20      # latent
D_ML = 128    # lane-dense width of the fused [mu | logvar] output (>= 2*D_Z)


def _round_up(a, m):
    return ((a + m - 1) // m) * m


def vae_kernel(x_ref, eps_ref,
               w1_ref, b1_ref,
               w2_ref, b2_ref,      # fused+padded [fc21 | fc22 | 0]: (400, 128)
               w3_ref, b3_ref,
               w4_ref, b4_ref,
               recon_ref, mulogvar_ref):
    # encode: h1 = relu(x @ W1 + b1)     (bf16 operands, f32 accumulation)
    h1 = jnp.dot(x_ref[...], w1_ref[...],
                 preferred_element_type=jnp.float32) + b1_ref[...]
    h1 = jnp.maximum(h1, 0.0)

    # fused mu/logvar projection -> one lane-dense (Bt, 128) slab
    ml = jnp.dot(h1.astype(jnp.bfloat16), w2_ref[...],
                 preferred_element_type=jnp.float32) + b2_ref[...]
    mu = ml[:, :D_Z]
    logvar = ml[:, D_Z:2 * D_Z]

    # reparametrize (f32): z = eps * exp(0.5 * logvar) + mu
    z = eps_ref[...] * jnp.exp(0.5 * logvar) + mu

    # decode: sigmoid(relu(z @ W3 + b3) @ W4 + b4)
    h3 = jnp.dot(z.astype(jnp.bfloat16), w3_ref[...],
                 preferred_element_type=jnp.float32) + b3_ref[...]
    h3 = jnp.maximum(h3, 0.0)
    logits = jnp.dot(h3.astype(jnp.bfloat16), w4_ref[...],
                     preferred_element_type=jnp.float32) + b4_ref[...]

    # sigmoid in f32 (safe on v5e's f32-only EUP), stored as bf16 to halve the
    # dominant HBM output stream.
    recon_ref[...] = jax.nn.sigmoid(logits).astype(jnp.bfloat16)
    mulogvar_ref[...] = ml


def prepare_params(params):
    """One-time preprocessing (hoisted out of the per-call forward path):
    fuse fc21/fc22 into a single 128-lane-padded projection and cast all
    weights to bf16. params = ((w1,b1),(w21,b21),(w22,b22),(w3,b3),(w4,b4)),
    weights stored (in, out), biases (1, out), all f32."""
    (w1, b1), (w21, b21), (w22, b22), (w3, b3), (w4, b4) = params
    w2 = jnp.concatenate([w21, w22], axis=1)              # (400, 40)
    b2 = jnp.concatenate([b21, b22], axis=1)               # (1, 40)
    pad = D_ML - 2 * D_Z
    w2 = jnp.pad(w2, ((0, 0), (0, pad)))                   # (400, 128) lane-dense
    b2 = jnp.pad(b2, ((0, 0), (0, pad)))                   # (1, 128)
    bf = lambda a: a.astype(jnp.bfloat16)
    return (bf(w1), b1, bf(w2), b2, bf(w3), b3, bf(w4), b4)


@functools.partial(jax.jit, static_argnames=("b_tile",))
def vae_forward(x, eps, prepared, *, b_tile=512):
    """x: (B, 784) f32, eps: (B, 20) f32, prepared = prepare_params(params)."""
    w1b, b1, w2b, b2, w3b, b3, w4b, b4 = prepared
    B = x.shape[0]

    # Batch tiling: multiple-of-16 tiles (clean bf16 (16,128) packing); keep
    # at least 2 grid steps when the batch allows so v7x's second TensorCore
    # is not idle (no-op on v5e/v6e, which have a single TC).
    bt_cap = _round_up(B, 16)
    bt = min(b_tile, bt_cap)
    if bt >= bt_cap and B >= 32:
        bt = max(16, _round_up((B + 1) // 2, 16))
    Bp = _round_up(B, bt)

    xb = x.astype(jnp.bfloat16)
    eps_p = eps
    if Bp != B:
        xb = jnp.pad(xb, ((0, Bp - B), (0, 0)))
        eps_p = jnp.pad(eps, ((0, Bp - B), (0, 0)))
    grid = (Bp // bt,)

    def row_spec(n):
        return pl.BlockSpec((bt, n), lambda i: (i, 0))

    def resident_spec(a):
        # constant index_map: whole array DMA'd once, stays VMEM-resident
        return pl.BlockSpec(a.shape, lambda i: (0, 0))

    cost = pl.CostEstimate(
        flops=2 * Bp * (D_IN * D_H + D_H * D_ML + D_Z * D_H + D_H * D_IN),
        transcendentals=Bp * (D_Z + D_IN),
        bytes_accessed=(
            2 * (w1b.size + w2b.size + w3b.size + w4b.size)        # bf16 weights
            + 4 * (b1.size + b2.size + b3.size + b4.size)          # f32 biases
            + 2 * xb.size + 4 * eps_p.size                         # inputs
            + 2 * Bp * D_IN + 4 * Bp * D_ML                        # outputs
        ),
    )

    recon, mulogvar = pl.pallas_call(
        vae_kernel,
        grid=grid,
        in_specs=[
            row_spec(D_IN),          # x tile
            row_spec(D_Z),           # eps tile
            resident_spec(w1b), resident_spec(b1),
            resident_spec(w2b), resident_spec(b2),
            resident_spec(w3b), resident_spec(b3),
            resident_spec(w4b), resident_spec(b4),
        ],
        out_specs=(row_spec(D_IN), row_spec(D_ML)),
        out_shape=(
            jax.ShapeDtypeStruct((Bp, D_IN), jnp.bfloat16),     # reconstruction
            jax.ShapeDtypeStruct((Bp, D_ML), jnp.float32),      # [mu | logvar | 0]
        ),
        compiler_params=pltpu.CompilerParams(
            dimension_semantics=("parallel",)),
        cost_estimate=cost,
    )(xb, eps_p, w1b, b1, w2b, b2, w3b, b3, w4b, b4)

    recon = recon[:B]
    mu = mulogvar[:B, :D_Z]
    logvar = mulogvar[:B, D_Z:2 * D_Z]
    return recon, mu, logvar


def init_linear(key, fan_in, fan_out):
    """PyTorch nn.Linear init: U(-1/sqrt(fan_in), 1/sqrt(fan_in)).
    Weight returned transposed as (fan_in, fan_out); bias as (1, fan_out)."""
    kw, kb = jax.random.split(key)
    bound = 1.0 / (fan_in ** 0.5)
    w = jax.random.uniform(kw, (fan_in, fan_out), jnp.float32, -bound, bound)
    b = jax.random.uniform(kb, (1, fan_out), jnp.float32, -bound, bound)
    return w, b


if __name__ == "__main__":
    key = jax.random.PRNGKey(0)
    k_x, k_eps, k1, k21, k22, k3, k4 = jax.random.split(key, 7)

    B = 64                        # small test batch (module dims are fixed: 784)
    x = jax.random.uniform(k_x, (B, D_IN), jnp.float32)     # flattened "images"
    eps = jax.random.normal(k_eps, (B, D_Z), jnp.float32)   # reparam noise
    # TODO(synk): eps could be generated in-kernel with pltpu.prng_random_bits
    # (Box-Muller); kept as an explicit input to mirror torch's external RNG.

    params = (
        init_linear(k1, D_IN, D_H),
        init_linear(k21, D_H, D_Z),
        init_linear(k22, D_H, D_Z),
        init_linear(k3, D_Z, D_H),
        init_linear(k4, D_H, D_IN),
    )
    prepared = prepare_params(params)        # hoisted: casts/fusion done once

    recon, mu, logvar = vae_forward(x, eps, prepared)
    jax.block_until_ready((recon, mu, logvar))

    # correctness check vs plain-JAX reference at matching precision
    # (bf16 operands, f32 accumulation; recon stored in bf16)
    (w1, b1), (w21, b21), (w22, b22), (w3, b3), (w4, b4) = params
    bf = lambda a: a.astype(jnp.bfloat16)
    h1 = jnp.maximum(
        jnp.dot(bf(x), bf(w1), preferred_element_type=jnp.float32) + b1, 0.0)
    mu_r = jnp.dot(bf(h1), bf(w21), preferred_element_type=jnp.float32) + b21
    lv_r = jnp.dot(bf(h1), bf(w22), preferred_element_type=jnp.float32) + b22
    z_r = eps * jnp.exp(0.5 * lv_r) + mu_r
    h3 = jnp.maximum(
        jnp.dot(bf(z_r), bf(w3), preferred_element_type=jnp.float32) + b3, 0.0)
    recon_r = jax.nn.sigmoid(
        jnp.dot(bf(h3), bf(w4), preferred_element_type=jnp.float32) + b4)

    assert jnp.allclose(mu, mu_r, atol=1e-2), float(jnp.abs(mu - mu_r).max())
    assert jnp.allclose(logvar, lv_r, atol=1e-2), float(jnp.abs(logvar - lv_r).max())
    assert jnp.allclose(recon.astype(jnp.float32), recon_r, atol=2e-2), \
        float(jnp.abs(recon.astype(jnp.float32) - recon_r).max())

    print("KERNEL_OK")
</pallas_src>

<mosaic_0001>
module attributes {stable_mosaic.version = 11 : i64} {
  func.func @vae_kernel(%arg0: i32, %arg1: memref<32x784xbf16, #tpu.memory_space<vmem>>, %arg2: memref<32x20xf32, #tpu.memory_space<vmem>>, %arg3: memref<784x400xbf16, #tpu.memory_space<vmem>>, %arg4: memref<1x400xf32, #tpu.memory_space<vmem>>, %arg5: memref<400x128xbf16, #tpu.memory_space<vmem>>, %arg6: memref<1x128xf32, #tpu.memory_space<vmem>>, %arg7: memref<20x400xbf16, #tpu.memory_space<vmem>>, %arg8: memref<1x400xf32, #tpu.memory_space<vmem>>, %arg9: memref<400x784xbf16, #tpu.memory_space<vmem>>, %arg10: memref<1x784xf32, #tpu.memory_space<vmem>>, %arg11: memref<32x784xbf16, #tpu.memory_space<vmem>>, %arg12: memref<32x128xf32, #tpu.memory_space<vmem>>) attributes {dimension_semantics = [#tpu.dimension_semantics<parallel>], iteration_bounds = array<i64: 2>, scalar_prefetch = 0 : i64, scratch_operands = 0 : i64, tpu.core_type = #tpu.core_type<tc>, window_params = [{transform_indices = @transform_0, window_bounds = array<i64: 32, 784>}, {transform_indices = @transform_1, window_bounds = array<i64: 32, 20>}, {pipeline_mode = #tpu.pipeline_mode<synchronous>, transform_indices = @transform_2, window_bounds = array<i64: 784, 400>}, {pipeline_mode = #tpu.pipeline_mode<synchronous>, transform_indices = @transform_3, window_bounds = array<i64: 1, 400>}, {pipeline_mode = #tpu.pipeline_mode<synchronous>, transform_indices = @transform_4, window_bounds = array<i64: 400, 128>}, {pipeline_mode = #tpu.pipeline_mode<synchronous>, transform_indices = @transform_5, window_bounds = array<i64: 1, 128>}, {pipeline_mode = #tpu.pipeline_mode<synchronous>, transform_indices = @transform_6, window_bounds = array<i64: 20, 400>}, {pipeline_mode = #tpu.pipeline_mode<synchronous>, transform_indices = @transform_7, window_bounds = array<i64: 1, 400>}, {pipeline_mode = #tpu.pipeline_mode<synchronous>, transform_indices = @transform_8, window_bounds = array<i64: 400, 784>}, {pipeline_mode = #tpu.pipeline_mode<synchronous>, transform_indices = @transform_9, window_bounds = array<i64: 1, 784>}, {transform_indices = @transform_10, window_bounds = array<i64: 32, 784>}, {transform_indices = @transform_11, window_bounds = array<i64: 32, 128>}]} {
    %c0 = arith.constant 0 : index
    %c0_0 = arith.constant 0 : index
    %0 = vector.load %arg1[%c0, %c0_0] : memref<32x784xbf16, #tpu.memory_space<vmem>>, vector<32x784xbf16>
    %c0_1 = arith.constant 0 : index
    %c0_2 = arith.constant 0 : index
    %1 = vector.load %arg3[%c0_1, %c0_2] : memref<784x400xbf16, #tpu.memory_space<vmem>>, vector<784x400xbf16>
    %cst = arith.constant dense<0.000000e+00> : vector<32x400xf32>
    %2 = tpu.matmul %0, %1, %cst {dimension_numbers = #tpu.dot_dimension_numbers<[1], [0], [0], [1], [0, 0, 1, 1], [], []>} : vector<32x784xbf16>, vector<784x400xbf16>, vector<32x400xf32> -> vector<32x400xf32>
    %c0_3 = arith.constant 0 : index
    %c0_4 = arith.constant 0 : index
    %3 = vector.load %arg4[%c0_3, %c0_4] : memref<1x400xf32, #tpu.memory_space<vmem>>, vector<1x400xf32>
    %4 = vector.broadcast %3 : vector<1x400xf32> to vector<32x400xf32>
    %5 = arith.addf %2, %4 : vector<32x400xf32>
    %cst_5 = arith.constant 0.000000e+00 : f32
    %6 = vector.broadcast %cst_5 : f32 to vector<32x400xf32>
    %7 = arith.maximumf %5, %6 : vector<32x400xf32>
    %8 = arith.truncf %7 : vector<32x400xf32> to vector<32x400xbf16>
    %c0_6 = arith.constant 0 : index
    %c0_7 = arith.constant 0 : index
    %9 = vector.load %arg5[%c0_6, %c0_7] : memref<400x128xbf16, #tpu.memory_space<vmem>>, vector<400x128xbf16>
    %cst_8 = arith.constant dense<0.000000e+00> : vector<32x128xf32>
    %10 = tpu.matmul %8, %9, %cst_8 {dimension_numbers = #tpu.dot_dimension_numbers<[1], [0], [0], [1], [0, 0, 1, 1], [], []>} : vector<32x400xbf16>, vector<400x128xbf16>, vector<32x128xf32> -> vector<32x128xf32>
    %c0_9 = arith.constant 0 : index
    %c0_10 = arith.constant 0 : index
    %11 = vector.load %arg6[%c0_9, %c0_10] : memref<1x128xf32, #tpu.memory_space<vmem>>, vector<1x128xf32>
    %12 = vector.broadcast %11 : vector<1x128xf32> to vector<32x128xf32>
    %13 = arith.addf %10, %12 : vector<32x128xf32>
    %14 = vector.extract_strided_slice %13 {offsets = [0, 0], sizes = [32, 20], strides = [1, 1]} : vector<32x128xf32> to vector<32x20xf32>
    %15 = vector.extract_strided_slice %13 {offsets = [0, 20], sizes = [32, 20], strides = [1, 1]} : vector<32x128xf32> to vector<32x20xf32>
    %c0_11 = arith.constant 0 : index
    %c0_12 = arith.constant 0 : index
    %16 = vector.load %arg2[%c0_11, %c0_12] : memref<32x20xf32, #tpu.memory_space<vmem>>, vector<32x20xf32>
    %cst_13 = arith.constant 5.000000e-01 : f32
    %17 = vector.broadcast %cst_13 : f32 to vector<32x20xf32>
    %18 = arith.mulf %17, %15 : vector<32x20xf32>
    %19 = math.exp %18 : vector<32x20xf32>
    %20 = arith.mulf %16, %19 : vector<32x20xf32>
    %21 = arith.addf %20, %14 : vector<32x20xf32>
    %22 = arith.truncf %21 : vector<32x20xf32> to vector<32x20xbf16>
    %c0_14 = arith.constant 0 : index
    %c0_15 = arith.constant 0 : index
    %23 = vector.load %arg7[%c0_14, %c0_15] : memref<20x400xbf16, #tpu.memory_space<vmem>>, vector<20x400xbf16>
    %cst_16 = arith.constant dense<0.000000e+00> : vector<32x400xf32>
    %24 = tpu.matmul %22, %23, %cst_16 {dimension_numbers = #tpu.dot_dimension_numbers<[1], [0], [0], [1], [0, 0, 1, 1], [], []>} : vector<32x20xbf16>, vector<20x400xbf16>, vector<32x400xf32> -> vector<32x400xf32>
    %c0_17 = arith.constant 0 : index
    %c0_18 = arith.constant 0 : index
    %25 = vector.load %arg8[%c0_17, %c0_18] : memref<1x400xf32, #tpu.memory_space<vmem>>, vector<1x400xf32>
    %26 = vector.broadcast %25 : vector<1x400xf32> to vector<32x400xf32>
    %27 = arith.addf %24, %26 : vector<32x400xf32>
    %cst_19 = arith.constant 0.000000e+00 : f32
    %28 = vector.broadcast %cst_19 : f32 to vector<32x400xf32>
    %29 = arith.maximumf %27, %28 : vector<32x400xf32>
    %30 = arith.truncf %29 : vector<32x400xf32> to vector<32x400xbf16>
    %c0_20 = arith.constant 0 : index
    %c0_21 = arith.constant 0 : index
    %31 = vector.load %arg9[%c0_20, %c0_21] : memref<400x784xbf16, #tpu.memory_space<vmem>>, vector<400x784xbf16>
    %cst_22 = arith.constant dense<0.000000e+00> : vector<32x784xf32>
    %32 = tpu.matmul %30, %31, %cst_22 {dimension_numbers = #tpu.dot_dimension_numbers<[1], [0], [0], [1], [0, 0, 1, 1], [], []>} : vector<32x400xbf16>, vector<400x784xbf16>, vector<32x784xf32> -> vector<32x784xf32>
    %c0_23 = arith.constant 0 : index
    %c0_24 = arith.constant 0 : index
    %33 = vector.load %arg10[%c0_23, %c0_24] : memref<1x784xf32, #tpu.memory_space<vmem>>, vector<1x784xf32>
    %34 = vector.broadcast %33 : vector<1x784xf32> to vector<32x784xf32>
    %35 = arith.addf %32, %34 : vector<32x784xf32>
    %36 = arith.negf %35 : vector<32x784xf32>
    %37 = math.exp %36 : vector<32x784xf32>
    %cst_25 = arith.constant 1.000000e+00 : f32
    %38 = vector.broadcast %cst_25 : f32 to vector<32x784xf32>
    %39 = arith.addf %38, %37 : vector<32x784xf32>
    %40 = arith.divf %38, %39 : vector<32x784xf32>
    %41 = arith.truncf %40 : vector<32x784xf32> to vector<32x784xbf16>
    %c0_26 = arith.constant 0 : index
    %c0_27 = arith.constant 0 : index
    %42 = vector.load %arg11[%c0_26, %c0_27] : memref<32x784xbf16, #tpu.memory_space<vmem>>, vector<32x784xbf16>
    tpu.vector_store %arg11[%c0_26, %c0_27], %41 {strides = array<i32>} : memref<32x784xbf16, #tpu.memory_space<vmem>>, vector<32x784xbf16>,
    %c0_28 = arith.constant 0 : index
    %c0_29 = arith.constant 0 : index
    %43 = vector.load %arg12[%c0_28, %c0_29] : memref<32x128xf32, #tpu.memory_space<vmem>>, vector<32x128xf32>
    tpu.vector_store %arg12[%c0_28, %c0_29], %13 {strides = array<i32>} : memref<32x128xf32, #tpu.memory_space<vmem>>, vector<32x128xf32>,
    return
  }
  func.func @transform_0(%arg0: i32) -> (i32, i32) {
    %c0_i32 = arith.constant 0 : i32
    %c0_i32_0 = arith.constant 0 : i32
    return %arg0, %c0_i32 : i32, i32
  }
  func.func @transform_1(%arg0: i32) -> (i32, i32) {
    %c0_i32 = arith.constant 0 : i32
    %c0_i32_0 = arith.constant 0 : i32
    return %arg0, %c0_i32 : i32, i32
  }
  func.func @transform_2(%arg0: i32) -> (i32, i32) {
    %c0_i32 = arith.constant 0 : i32
    %c0_i32_0 = arith.constant 0 : i32
    %c0_i32_1 = arith.constant 0 : i32
    return %c0_i32, %c0_i32_0 : i32, i32
  }
  func.func @transform_3(%arg0: i32) -> (i32, i32) {
    %c0_i32 = arith.constant 0 : i32
    %c0_i32_0 = arith.constant 0 : i32
    %c0_i32_1 = arith.constant 0 : i32
    return %c0_i32, %c0_i32_0 : i32, i32
  }
  func.func @transform_4(%arg0: i32) -> (i32, i32) {
    %c0_i32 = arith.constant 0 : i32
    %c0_i32_0 = arith.constant 0 : i32
    %c0_i32_1 = arith.constant 0 : i32
    return %c0_i32, %c0_i32_0 : i32, i32
  }
  func.func @transform_5(%arg0: i32) -> (i32, i32) {
    %c0_i32 = arith.constant 0 : i32
    %c0_i32_0 = arith.constant 0 : i32
    %c0_i32_1 = arith.constant 0 : i32
    return %c0_i32, %c0_i32_0 : i32, i32
  }
  func.func @transform_6(%arg0: i32) -> (i32, i32) {
    %c0_i32 = arith.constant 0 : i32
    %c0_i32_0 = arith.constant 0 : i32
    %c0_i32_1 = arith.constant 0 : i32
    return %c0_i32, %c0_i32_0 : i32, i32
  }
  func.func @transform_7(%arg0: i32) -> (i32, i32) {
    %c0_i32 = arith.constant 0 : i32
    %c0_i32_0 = arith.constant 0 : i32
    %c0_i32_1 = arith.constant 0 : i32
    return %c0_i32, %c0_i32_0 : i32, i32
  }
  func.func @transform_8(%arg0: i32) -> (i32, i32) {
    %c0_i32 = arith.constant 0 : i32
    %c0_i32_0 = arith.constant 0 : i32
    %c0_i32_1 = arith.constant 0 : i32
    return %c0_i32, %c0_i32_0 : i32, i32
  }
  func.func @transform_9(%arg0: i32) -> (i32, i32) {
    %c0_i32 = arith.constant 0 : i32
    %c0_i32_0 = arith.constant 0 : i32
    %c0_i32_1 = arith.constant 0 : i32
    return %c0_i32, %c0_i32_0 : i32, i32
  }
  func.func @transform_10(%arg0: i32) -> (i32, i32) {
    %c0_i32 = arith.constant 0 : i32
    %c0_i32_0 = arith.constant 0 : i32
    return %arg0, %c0_i32 : i32, i32
  }
  func.func @transform_11(%arg0: i32) -> (i32, i32) {
    %c0_i32 = arith.constant 0 : i32
    %c0_i32_0 = arith.constant 0 : i32
    return %arg0, %c0_i32 : i32, i32
  }
}

</mosaic_0001>

<llo_original>
// kernel: vae_forward.1
$region0: #{vae_forward.1}
  #allocation0 [shape = 'u32[]', space=smem, size = 0x4, offset = 0x4, fixed_abs, tag = 'smem constant byte address 0x4 - core index']
  #allocation1 [shape = 'u32[144,128]{1,0:T(1,128)}', space=vmem, size = 0x12000, scoped, tag = 'internal scratch']
  %s0 = inlined_call_operand.vmem [shape: bf16[64,784], index: 0, kind: input, shape index: {}]
  %s1 = inlined_call_operand.vmem [shape: f32[64,20], index: 1, kind: input, shape index: {}]
  %s2 = inlined_call_operand.vmem [shape: bf16[784,400], index: 2, kind: input, shape index: {}]
  %s3 = inlined_call_operand.vmem [shape: f32[1,400], index: 3, kind: input, shape index: {}]
  %s4 = inlined_call_operand.vmem [shape: bf16[400,128], index: 4, kind: input, shape index: {}]
  %s5 = inlined_call_operand.vmem [shape: f32[1,128], index: 5, kind: input, shape index: {}]
  %s6 = inlined_call_operand.vmem [shape: bf16[20,400], index: 6, kind: input, shape index: {}]
  %s7 = inlined_call_operand.vmem [shape: f32[1,400], index: 7, kind: input, shape index: {}]
  %s8 = inlined_call_operand.vmem [shape: bf16[400,784], index: 8, kind: input, shape index: {}]
  %s9 = inlined_call_operand.vmem [shape: f32[1,784], index: 9, kind: input, shape index: {}]
  %s10 = inlined_call_operand.hbm [shape: bf16[64,784], index: 10, kind: output, shape index: {0}]
  %s11 = inlined_call_operand.vmem [shape: f32[64,128], index: 11, kind: output, shape index: {1}]
  %12 = xla_tuple %s10, %s11
  %s13 = sld [smem:[#allocation0]]
  $region81: #{vae_forward.1} parent=0
    _
  %s15 = ssub.s32 1, %s13
  %s16 = scalar_select 0, %s15, %s13
  $region1: #{vae_forward.1} parent=0
    #allocation2 [shape = 'u8[114688]{0}', space=vmem, size = 0x1c000, scoped, tag = 'output window, operand 0']
    #allocation3 [shape = 's32[2]{0}', space=sflag, size = 0x8, scoped, tag = 'scoped memory for vae_forward.1']
    %17 = vsyncpa [#allocation3], 0
    %s18 = scalar_lea.sflag [#allocation3], 1
    %19 = vsyncpa %s18, 0
    loop: start=0, step=1, limit=4
    $region2: #{vae_forward.1} parent=1 // loop_pre_header
      _
    $region3: #{vae_forward.1} parent=1 // loop_header
      %s21 = sphi 0, %s25
      %p22 = scmp.ge.s32.totalorder %s21, 4
      %s31 = sphi 0, %s33
      %s34 = sphi 0, %s31
      %s35 = sphi 0, %s34
      %s51 = sphi 0, %s35
      %s57 = sphi 0, %s59
      %s60 = sphi 0, %s57
      %s61 = sphi 0, %s60
      %s77 = sphi 0, %s61
      %s81 = sphi 0, %s81
      %s83 = sphi 0, %s81
      %s84 = sphi 0, %s83
      %s98 = sphi 0, %s84
      %s102 = sphi 0, %s102
      %s104 = sphi 0, %s102
      %s105 = sphi 0, %s104
      %s119 = sphi 0, %s105
      %s123 = sphi 0, %s123
      %s125 = sphi 0, %s123
      %s126 = sphi 0, %s125
      %s140 = sphi 0, %s126
      %s144 = sphi 0, %s144
      %s146 = sphi 0, %s144
      %s147 = sphi 0, %s146
      %s161 = sphi 0, %s147
      %s165 = sphi 0, %s165
      %s167 = sphi 0, %s165
      %s168 = sphi 0, %s167
      %s182 = sphi 0, %s168
      %s186 = sphi 0, %s186
      %s188 = sphi 0, %s186
      %s189 = sphi 0, %s188
      %s203 = sphi 0, %s189
      %s207 = sphi 0, %s207
      %s209 = sphi 0, %s207
      %s210 = sphi 0, %s209
      %s224 = sphi 0, %s210
      %s228 = sphi 0, %s228
      %s230 = sphi 0, %s228
      %s231 = sphi 0, %s230
      %s245 = sphi 0, %s231
      %s251 = sphi 0, %s253
      %s254 = sphi 0, %s251
      %s255 = sphi 0, %s254
      %s271 = sphi 0, %s255
      %s277 = sphi 0, %s279
      %s280 = sphi 0, %s277
      %s281 = sphi 0, %s280
      %s297 = sphi 0, %s281
    $region4: #{vae_forward.1} parent=1 // loop_header_branch
      %24 = sbr.rel (%p22) target = $region8
    $region5: #{vae_forward.1} parent=1 // loop_body
      %s26 = ssub.s32 %s21, 1
      %s27 = ssub.s32 %s21, 2
      %s28 = sadd.s32 %s21, 1
      %s29 = ssub.s32 %s21, %s28
      %p30 = scmp.eq.s32.totalorder %s29, 0
      %s32 = sadd.s32 %s31, 1
      %s33 = scalar_select %p30, %s31, %s32
      %p36 = pneg %p30
      %p37 = scmp.eq.s32.totalorder %s21, 1
      %p38 = por %p36, %p37
      %p39 = scmp.ne.s32.totalorder %s31, %s34
      %p40 = scmp.eq.s32.totalorder %s21, 0
      %p41 = por %p39, %p40
      %p42 = scmp.ne.s32.totalorder %s31, %s34
      %p43 = scmp.eq.s32.totalorder %s26, 1
      %p44 = por %p42, %p43
      %p45 = scmp.ne.s32.totalorder %s34, %s35
      %p46 = scmp.eq.s32.totalorder %s26, 0
      %p47 = por %p45, %p46
      %p48 = scmp.ne.s32.totalorder %s34, %s35
      %p49 = scmp.eq.s32.totalorder %s27, 1
      %p50 = por %p48, %p49
      %p52 = scmp.ne.s32.totalorder %s35, %s51
      %p53 = scmp.eq.s32.totalorder %s27, 0
      %p54 = por %p52, %p53
      %s55 = ssub.s32 %s21, %s28
      %p56 = scmp.eq.s32.totalorder %s55, 0
      %s58 = sadd.s32 %s57, 1
      %s59 = scalar_select %p56, %s57, %s58
      %p62 = pneg %p56
      %p63 = scmp.eq.s32.totalorder %s21, 1
      %p64 = por %p62, %p63
      %p65 = scmp.ne.s32.totalorder %s57, %s60
      %p66 = scmp.eq.s32.totalorder %s21, 0
      %p67 = por %p65, %p66
      %p68 = scmp.ne.s32.totalorder %s57, %s60
      %p69 = scmp.eq.s32.totalorder %s26, 1
      %p70 = por %p68, %p69
      %p71 = scmp.ne.s32.totalorder %s60, %s61
      %p72 = scmp.eq.s32.totalorder %s26, 0
      %p73 = por %p71, %p72
      %p74 = scmp.ne.s32.totalorder %s60, %s61
      %p75 = scmp.eq.s32.totalorder %s27, 1
      %p76 = por %p74, %p75
      %p78 = scmp.ne.s32.totalorder %s61, %s77
      %p79 = scmp.eq.s32.totalorder %s27, 0
      %p80 = por %p78, %p79
      %s82 = sadd.s32 %s81, 1
      %p85 = scmp.eq.s32.totalorder %s21, 1
      %p86 = scmp.ne.s32.totalorder %s81, %s83
      %p87 = scmp.eq.s32.totalorder %s21, 0
      %p88 = por %p86, %p87
      %p89 = scmp.ne.s32.totalorder %s81, %s83
      %p90 = scmp.eq.s32.totalorder %s26, 1
      %p91 = por %p89, %p90
      %p92 = scmp.ne.s32.totalorder %s83, %s84
      %p93 = scmp.eq.s32.totalorder %s26, 0
      %p94 = por %p92, %p93
      %p95 = scmp.ne.s32.totalorder %s83, %s84
      %p96 = scmp.eq.s32.totalorder %s27, 1
      %p97 = por %p95, %p96
      %p99 = scmp.ne.s32.totalorder %s84, %s98
      %p100 = scmp.eq.s32.totalorder %s27, 0
      %p101 = por %p99, %p100
      %s103 = sadd.s32 %s102, 1
      %p106 = scmp.eq.s32.totalorder %s21, 1
      %p107 = scmp.ne.s32.totalorder %s102, %s104
      %p108 = scmp.eq.s32.totalorder %s21, 0
      %p109 = por %p107, %p108
      %p110 = scmp.ne.s32.totalorder %s102, %s104
      %p111 = scmp.eq.s32.totalorder %s26, 1
      %p112 = por %p110, %p111
      %p113 = scmp.ne.s32.totalorder %s104, %s105
      %p114 = scmp.eq.s32.totalorder %s26, 0
      %p115 = por %p113, %p114
      %p116 = scmp.ne.s32.totalorder %s104, %s105
      %p117 = scmp.eq.s32.totalorder %s27, 1
      %p118 = por %p116, %p117
      %p120 = scmp.ne.s32.totalorder %s105, %s119
      %p121 = scmp.eq.s32.totalorder %s27, 0
      %p122 = por %p120, %p121
      %s124 = sadd.s32 %s123, 1
      %p127 = scmp.eq.s32.totalorder %s21, 1
      %p128 = scmp.ne.s32.totalorder %s123, %s125
      %p129 = scmp.eq.s32.totalorder %s21, 0
      %p130 = por %p128, %p129
      %p131 = scmp.ne.s32.totalorder %s123, %s125
      %p132 = scmp.eq.s32.totalorder %s26, 1
      %p133 = por %p131, %p132
      %p134 = scmp.ne.s32.totalorder %s125, %s126
      %p135 = scmp.eq.s32.totalorder %s26, 0
      %p136 = por %p134, %p135
      %p137 = scmp.ne.s32.totalorder %s125, %s126
      %p138 = scmp.eq.s32.totalorder %s27, 1
      %p139 = por %p137, %p138
      %p141 = scmp.ne.s32.totalorder %s126, %s140
      %p142 = scmp.eq.s32.totalorder %s27, 0
      %p143 = por %p141, %p142
      %s145 = sadd.s32 %s144, 1
      %p148 = scmp.eq.s32.totalorder %s21, 1
      %p149 = scmp.ne.s32.totalorder %s144, %s146
      %p150 = scmp.eq.s32.totalorder %s21, 0
      %p151 = por %p149, %p150
      %p152 = scmp.ne.s32.totalorder %s144, %s146
      %p153 = scmp.eq.s32.totalorder %s26, 1
      %p154 = por %p152, %p153
      %p155 = scmp.ne.s32.totalorder %s146, %s147
      %p156 = scmp.eq.s32.totalorder %s26, 0
      %p157 = por %p155, %p156
      %p158 = scmp.ne.s32.totalorder %s146, %s147
      %p159 = scmp.eq.s32.totalorder %s27, 1
      %p160 = por %p158, %p159
      %p162 = scmp.ne.s32.totalorder %s147, %s161
      %p163 = scmp.eq.s32.totalorder %s27, 0
      %p164 = por %p162, %p163
      %s166 = sadd.s32 %s165, 1
      %p169 = scmp.eq.s32.totalorder %s21, 1
      %p170 = scmp.ne.s32.totalorder %s165, %s167
      %p171 = scmp.eq.s32.totalorder %s21, 0
      %p172 = por %p170, %p171
      %p173 = scmp.ne.s32.totalorder %s165, %s167
      %p174 = scmp.eq.s32.totalorder %s26, 1
      %p175 = por %p173, %p174
      %p176 = scmp.ne.s32.totalorder %s167, %s168
      %p177 = scmp.eq.s32.totalorder %s26, 0
      %p178 = por %p176, %p177
      %p179 = scmp.ne.s32.totalorder %s167, %s168
      %p180 = scmp.eq.s32.totalorder %s27, 1
      %p181 = por %p179, %p180
      %p183 = scmp.ne.s32.totalorder %s168, %s182
      %p184 = scmp.eq.s32.totalorder %s27, 0
      %p185 = por %p183, %p184
      %s187 = sadd.s32 %s186, 1
      %p190 = scmp.eq.s32.totalorder %s21, 1
      %p191 = scmp.ne.s32.totalorder %s186, %s188
      %p192 = scmp.eq.s32.totalorder %s21, 0
      %p193 = por %p191, %p192
      %p194 = scmp.ne.s32.totalorder %s186, %s188
      %p195 = scmp.eq.s32.totalorder %s26, 1
      %p196 = por %p194, %p195
      %p197 = scmp.ne.s32.totalorder %s188, %s189
      %p198 = scmp.eq.s32.totalorder %s26, 0
      %p199 = por %p197, %p198
      %p200 = scmp.ne.s32.totalorder %s188, %s189
      %p201 = scmp.eq.s32.totalorder %s27, 1
      %p202 = por %p200, %p201
      %p204 = scmp.ne.s32.totalorder %s189, %s203
      %p205 = scmp.eq.s32.totalorder %s27, 0
      %p206 = por %p204, %p205
      %s208 = sadd.s32 %s207, 1
      %p211 = scmp.eq.s32.totalorder %s21, 1
      %p212 = scmp.ne.s32.totalorder %s207, %s209
      %p213 = scmp.eq.s32.totalorder %s21, 0
      %p214 = por %p212, %p213
      %p215 = scmp.ne.s32.totalorder %s207, %s209
      %p216 = scmp.eq.s32.totalorder %s26, 1
      %p217 = por %p215, %p216
      %p218 = scmp.ne.s32.totalorder %s209, %s210
      %p219 = scmp.eq.s32.totalorder %s26, 0
      %p220 = por %p218, %p219
      %p221 = scmp.ne.s32.totalorder %s209, %s210
      %p222 = scmp.eq.s32.totalorder %s27, 1
      %p223 = por %p221, %p222
      %p225 = scmp.ne.s32.totalorder %s210, %s224
      %p226 = scmp.eq.s32.totalorder %s27, 0
      %p227 = por %p225, %p226
      %s229 = sadd.s32 %s228, 1
      %p232 = scmp.eq.s32.totalorder %s21, 1
      %p233 = scmp.ne.s32.totalorder %s228, %s230
      %p234 = scmp.eq.s32.totalorder %s21, 0
      %p235 = por %p233, %p234
      %p236 = scmp.ne.s32.totalorder %s228, %s230
      %p237 = scmp.eq.s32.totalorder %s26, 1
      %p238 = por %p236, %p237
      %p239 = scmp.ne.s32.totalorder %s230, %s231
      %p240 = scmp.eq.s32.totalorder %s26, 0
      %p241 = por %p239, %p240
      %p242 = scmp.ne.s32.totalorder %s230, %s231
      %p243 = scmp.eq.s32.totalorder %s27, 1
      %p244 = por %p242, %p243
      %p246 = scmp.ne.s32.totalorder %s231, %s245
      %p247 = scmp.eq.s32.totalorder %s27, 0
      %p248 = por %p246, %p247
      %s249 = ssub.s32 %s21, %s28
      %p250 = scmp.eq.s32.totalorder %s249, 0
      %s252 = sadd.s32 %s251, 1
      %s253 = scalar_select %p250, %s251, %s252
      %p256 = pneg %p250
      %p257 = scmp.eq.s32.totalorder %s21, 1
      %p258 = por %p256, %p257
      %p259 = scmp.ne.s32.totalorder %s251, %s254
      %p260 = scmp.eq.s32.totalorder %s21, 0
      %p261 = por %p259, %p260
      %p262 = scmp.ne.s32.totalorder %s251, %s254
      %p263 = scmp.eq.s32.totalorder %s26, 1
      %p264 = por %p262, %p263
      %p265 = scmp.ne.s32.totalorder %s254, %s255
      %p266 = scmp.eq.s32.totalorder %s26, 0
      %p267 = por %p265, %p266
      %p268 = scmp.ne.s32.totalorder %s254, %s255
      %p269 = scmp.eq.s32.totalorder %s27, 1
      %p270 = por %p268, %p269
      %p272 = scmp.ne.s32.totalorder %s255, %s271
      %p273 = scmp.eq.s32.totalorder %s27, 0
      %p274 = por %p272, %p273
      %s275 = ssub.s32 %s21, %s28
      %p276 = scmp.eq.s32.totalorder %s275, 0
      %s278 = sadd.s32 %s277, 1
      %s279 = scalar_select %p276, %s277, %s278
      %p282 = pneg %p276
      %p283 = scmp.eq.s32.totalorder %s21, 1
      %p284 = por %p282, %p283
      %p285 = scmp.ne.s32.totalorder %s277, %s280
      %p286 = scmp.eq.s32.totalorder %s21, 0
      %p287 = por %p285, %p286
      %p288 = scmp.ne.s32.totalorder %s277, %s280
      %p289 = scmp.eq.s32.totalorder %s26, 1
      %p290 = por %p288, %p289
      %p291 = scmp.ne.s32.totalorder %s280, %s281
      %p292 = scmp.eq.s32.totalorder %s26, 0
      %p293 = por %p291, %p292
      %p294 = scmp.ne.s32.totalorder %s280, %s281
      %p295 = scmp.eq.s32.totalorder %s27, 1
      %p296 = por %p294, %p295
      %p298 = scmp.ne.s32.totalorder %s281, %s297
      %p299 = scmp.eq.s32.totalorder %s27, 0
      %p300 = por %p298, %p299
      %p301 = scmp.le.s32.totalorder 1, %s21
      %p302 = scmp.lt.s32.totalorder %s21, 3
      %p303 = pnand %p301, %p302
      %p304 = pneg %p303
      // Predicated region
      $region9: #{vae_forward.1} parent=5 // pred_check
        _
      $region10: #{vae_forward.1} parent=5 // pred_check_branch
        %306 = sbr.rel (%p303) target = $region12
      $region11: #{vae_forward.1} parent=5 // pred_region
        %s307 = ssub.s32 %s21, 1
        // Predicated region
        $region13: #{vae_forward.1} parent=11 // pred_check
          %p308 = pneg %p94
        $region14: #{vae_forward.1} parent=11 // pred_check_branch
          %310 = sbr.rel (%p308) target = $region16
        $region15: #{vae_forward.1} parent=11 // pred_region
          _
        $region16: #{vae_forward.1} parent=11 // pred_fallthru
          _
        // Predicated region
        $region17: #{vae_forward.1} parent=11 // pred_check
          %p311 = pneg %p115
        $region18: #{vae_forward.1} parent=11 // pred_check_branch
          %313 = sbr.rel (%p311) target = $region20
        $region19: #{vae_forward.1} parent=11 // pred_region
          _
        $region20: #{vae_forward.1} parent=11 // pred_fallthru
          _
        // Predicated region
        $region21: #{vae_forward.1} parent=11 // pred_check
          %p314 = pneg %p136
        $region22: #{vae_forward.1} parent=11 // pred_check_branch
          %316 = sbr.rel (%p314) target = $region24
        $region23: #{vae_forward.1} parent=11 // pred_region
          _
        $region24: #{vae_forward.1} parent=11 // pred_fallthru
          _
        // Predicated region
        $region25: #{vae_forward.1} parent=11 // pred_check
          %p317 = pneg %p157
        $region26: #{vae_forward.1} parent=11 // pred_check_branch
          %319 = sbr.rel (%p317) target = $region28
        $region27: #{vae_forward.1} parent=11 // pred_region
          _
        $region28: #{vae_forward.1} parent=11 // pred_fallthru
          _
        // Predicated region
        $region29: #{vae_forward.1} parent=11 // pred_check
          %p320 = pneg %p178
        $region30: #{vae_forward.1} parent=11 // pred_check_branch
          %322 = sbr.rel (%p320) target = $region32
        $region31: #{vae_forward.1} parent=11 // pred_region
          _
        $region32: #{vae_forward.1} parent=11 // pred_fallthru
          _
        // Predicated region
        $region33: #{vae_forward.1} parent=11 // pred_check
          %p323 = pneg %p199
        $region34: #{vae_forward.1} parent=11 // pred_check_branch
          %325 = sbr.rel (%p323) target = $region36
        $region35: #{vae_forward.1} parent=11 // pred_region
          _
        $region36: #{vae_forward.1} parent=11 // pred_fallthru
          _
        // Predicated region
        $region37: #{vae_forward.1} parent=11 // pred_check
          %p326 = pneg %p220
        $region38: #{vae_forward.1} parent=11 // pred_check_branch
          %328 = sbr.rel (%p326) target = $region40
        $region39: #{vae_forward.1} parent=11 // pred_region
          _
        $region40: #{vae_forward.1} parent=11 // pred_fallthru
          _
        // Predicated region
        $region41: #{vae_forward.1} parent=11 // pred_check
          %p329 = pneg %p241
        $region42: #{vae_forward.1} parent=11 // pred_check_branch
          %331 = sbr.rel (%p329) target = $region44
        $region43: #{vae_forward.1} parent=11 // pred_region
          _
        $region44: #{vae_forward.1} parent=11 // pred_fallthru
          _
      $region12: #{vae_forward.1} parent=5 // pred_fallthru
        _
      %p332 = scmp.lt.s32.totalorder %s21, 2
      // Predicated region
      $region45: #{vae_forward.1} parent=5 // pred_check
        %p333 = pneg %p332
      $region46: #{vae_forward.1} parent=5 // pred_check_branch
        %335 = sbr.rel (%p333) target = $region48
      $region47: #{vae_forward.1} parent=5 // pred_region
        // Predicated region
        $region49: #{vae_forward.1} parent=47 // pred_check
          %p336 = pneg %p41
        $region50: #{vae_forward.1} parent=47 // pred_check_branch
          %338 = sbr.rel (%p336) target = $region52
        $region51: #{vae_forward.1} parent=47 // pred_region
          %s339 = smul.u32 4, %s21
          %p340 = scmp.lt.s32.totalorder %s339, 7
          %s341 = scalar_select %p340, %s339, 7
          %s342 = smul.addr %s341, 7
          %s343 = smul.addr %s342, 4
          %s344 = scalar_lea.vmem %s0, %s343
          %s345 = smul.u32 4, %s21
        $region52: #{vae_forward.1} parent=47 // pred_fallthru
          _
        // Predicated region
        $region53: #{vae_forward.1} parent=47 // pred_check
          %p346 = pneg %p67
        $region54: #{vae_forward.1} parent=47 // pred_check_branch
          %348 = sbr.rel (%p346) target = $region56
        $region55: #{vae_forward.1} parent=47 // pred_region
          %s349 = smul.u32 4, %s21
          %p350 = scmp.lt.s32.totalorder %s349, 7
          %s351 = scalar_select %p350, %s349, 7
          %s352 = smul.addr %s351, 8
          %s353 = scalar_lea.vmem %s1, %s352
          %s354 = smul.u32 4, %s21
        $region56: #{vae_forward.1} parent=47 // pred_fallthru
          _
      $region48: #{vae_forward.1} parent=5 // pred_fallthru
        _
      %p355 = scmp.le.s32.totalorder 1, %s21
      %p356 = scmp.lt.s32.totalorder %s21, 3
      %p357 = pnand %p355, %p356
      %p358 = pneg %p357
      // Predicated region
      $region57: #{vae_forward.1} parent=5 // pred_check
        _
      $region58: #{vae_forward.1} parent=5 // pred_check_branch
        %360 = sbr.rel (%p357) target = $region60
      $region59: #{vae_forward.1} parent=5 // pred_region
        %s361 = ssub.s32 %s21, 1
        %s362 = smul.u32 4, %s26
        %p363 = scmp.lt.s32.totalorder %s362, 7
        %s364 = scalar_select %p363, %s362, 7
        %s365 = smul.addr %s364, 7
        %s366 = smul.addr %s365, 4
        %s367 = scalar_lea.vmem %s0, %s366
        %p368 = pneg %p47
        %p369 = pneg %p44
        %s370 = smul.u32 4, %s26
        %p371 = scmp.lt.s32.totalorder %s370, 7
        %s372 = scalar_select %p371, %s370, 7
        %s373 = smul.addr %s372, 8
        %s374 = scalar_lea.vmem %s1, %s373
        %p375 = pneg %p73
        %p376 = pneg %p70
        %p377 = pneg %p94
        %p378 = pneg %p91
        %p379 = pneg %p115
        %p380 = pneg %p112
        %p381 = pneg %p136
        %p382 = pneg %p133
        %p383 = pneg %p157
        %p384 = pneg %p154
        %p385 = pneg %p178
        %p386 = pneg %p175
        %p387 = pneg %p199
        %p388 = pneg %p196
        %p389 = pneg %p220
        %p390 = pneg %p217
        %p391 = pneg %p241
        %p392 = pneg %p238
        %p393 = pneg %p267
        %p394 = pneg %p264
        %s395 = sand.u32 %s254, 1
        %s396 = scalar_lea.sflag [#allocation3], %s395
        %s397 = sand.u32 %s254, 1
        %s398 = smul.addr %s397, 112
        %s399 = scalar_lea.vmem [#allocation2], %s398
        %p400 = pneg %p293
        %p401 = pneg %p290
        %s402 = smul.u32 4, %s26
        %p403 = scmp.lt.s32.totalorder %s402, 7
        %s404 = scalar_select %p403, %s402, 7
        %s405 = smul.addr %s404, 8
        %s406 = scalar_lea.vmem %s11, %s405
        %s407 = smul.u32 4, %s26
        %p408 = scmp.lt.s32.totalorder %s407, 7
        %s409 = scalar_select %p408, %s407, 7
        %s410 = smul.addr %s409, 7
        %s411 = smul.addr %s410, 4
        %s412 = scalar_lea.vmem %s0, %s411
        %s413 = smul.u32 4, %s26
        %s414 = smul.u32 4, %s26
        %p415 = scmp.lt.s32.totalorder %s414, 7
        %s416 = scalar_select %p415, %s414, 7
        %s417 = smul.addr %s416, 8
        %s418 = scalar_lea.vmem %s1, %s417
        %s419 = smul.u32 4, %s26
        %s420 = smul.u32 4, %s26
        %s421 = smul.u32 4, %s26
        %p422 = scmp.lt.s32.totalorder %s421, 7
        %s423 = scalar_select %p422, %s421, 7
        %s424 = smul.addr %s423, 8
        %s425 = scalar_lea.vmem %s11, %s424
        %s426 = smul.u32 4, %s26
        %v428 = vld [vmem:[%s412] sm:$0xff]
        %v429 = vld [vmem:[%s412 + $0x8] sm:$0xff]
        %v430 = vld [vmem:[%s412 + $0x10] sm:$0xff]
        %v431 = vld [vmem:[%s412 + $0x18] sm:$0xf]
        %v432 = vld [vmem:[%s412 + $0x1c] sm:$0xff]
        %v433 = vld [vmem:[%s412 + $0x24] sm:$0xff]
        %v434 = vld [vmem:[%s412 + $0x2c] sm:$0xff]
        %v435 = vld [vmem:[%s412 + $0x34] sm:$0xf]
        %v436 = vld [vmem:[%s412 + $0x38] sm:$0xff]
        %v437 = vld [vmem:[%s412 + $0x40] sm:$0xff]
        %v438 = vld [vmem:[%s412 + $0x48] sm:$0xff]
        %v439 = vld [vmem:[%s412 + $0x50] sm:$0xf]
        %v440 = vld [vmem:[%s412 + $0x54] sm:$0xff]
        %v441 = vld [vmem:[%s412 + $0x5c] sm:$0xff]
        %v442 = vld [vmem:[%s412 + $0x64] sm:$0xff]
        %v443 = vld [vmem:[%s412 + $0x6c] sm:$0xf]
        %v444 = vld [vmem:[%s2] sm:$0xff]
        %v445 = vld [vmem:[%s2 + $0x8] sm:$0xff]
        %v446 = vld [vmem:[%s2 + $0x10] sm:$0xff]
        %v447 = vld [vmem:[%s2 + $0x18] sm:$0xff]
        %v448 = vld [vmem:[%s2 + $0x20] sm:$0xff]
        %v449 = vld [vmem:[%s2 + $0x28] sm:$0xff]
        %v450 = vld [vmem:[%s2 + $0x30] sm:$0xff]
        %v451 = vld [vmem:[%s2 + $0x38] sm:$0xff]
        %v452 = vld [vmem:[%s2 + $0x40] sm:$0xff]
        %v453 = vld [vmem:[%s2 + $0x48] sm:$0xff]
        %v454 = vld [vmem:[%s2 + $0x50] sm:$0xff]
        %v455 = vld [vmem:[%s2 + $0x58] sm:$0xff]
        %v456 = vld [vmem:[%s2 + $0x60] sm:$0xff]
        %v457 = vld [vmem:[%s2 + $0x68] sm:$0xff]
        %v458 = vld [vmem:[%s2 + $0x70] sm:$0xff]
        %v459 = vld [vmem:[%s2 + $0x78] sm:$0xff]
        %v460 = vld [vmem:[%s2 + $0x80] sm:$0xff]
        %v461 = vld [vmem:[%s2 + $0x88] sm:$0xff]
        %v462 = vld [vmem:[%s2 + $0x90] sm:$0xff]
        %v463 = vld [vmem:[%s2 + $0x98] sm:$0xff]
        %v464 = vld [vmem:[%s2 + $0xa0] sm:$0xff]
        %v465 = vld [vmem:[%s2 + $0xa8] sm:$0xff]
        %v466 = vld [vmem:[%s2 + $0xb0] sm:$0xff]
        %v467 = vld [vmem:[%s2 + $0xb8] sm:$0xff]
        %v468 = vld [vmem:[%s2 + $0xc0] sm:$0xff]
        %v469 = vld [vmem:[%s2 + $0xc8] sm:$0xff]
        %v470 = vld [vmem:[%s2 + $0xd0] sm:$0xff]
        %v471 = vld [vmem:[%s2 + $0xd8] sm:$0xff]
        %v472 = vld [vmem:[%s2 + $0xe0] sm:$0xff]
        %v473 = vld [vmem:[%s2 + $0xe8] sm:$0xff]
        %v474 = vld [vmem:[%s2 + $0xf0] sm:$0xff]
        %v475 = vld [vmem:[%s2 + $0xf8] sm:$0xff]
        %v476 = vld [vmem:[%s2 + $0x100] sm:$0xff]
        %v477 = vld [vmem:[%s2 + $0x108] sm:$0xff]
        %v478 = vld [vmem:[%s2 + $0x110] sm:$0xff]
        %v479 = vld [vmem:[%s2 + $0x118] sm:$0xff]
        %v480 = vld [vmem:[%s2 + $0x120] sm:$0xff]
        %v481 = vld [vmem:[%s2 + $0x128] sm:$0xff]
        %v482 = vld [vmem:[%s2 + $0x130] sm:$0xff]
        %v483 = vld [vmem:[%s2 + $0x138] sm:$0xff]
        %v484 = vld [vmem:[%s2 + $0x140] sm:$0xff]
        %v485 = vld [vmem:[%s2 + $0x148] sm:$0xff]
        %v486 = vld [vmem:[%s2 + $0x150] sm:$0xff]
        %v487 = vld [vmem:[%s2 + $0x158] sm:$0xff]
        %v488 = vld [vmem:[%s2 + $0x160] sm:$0xff]
        %v489 = vld [vmem:[%s2 + $0x168] sm:$0xff]
        %v490 = vld [vmem:[%s2 + $0x170] sm:$0xff]
        %v491 = vld [vmem:[%s2 + $0x178] sm:$0xff]
        %v492 = vld [vmem:[%s2 + $0x180] sm:$0xff]
        %v493 = vld [vmem:[%s2 + $0x188] sm:$0xff]
        %v494 = vld [vmem:[%s2 + $0x190] sm:$0xff]
        %v495 = vld [vmem:[%s2 + $0x198] sm:$0xff]
        %v496 = vld [vmem:[%s2 + $0x1a0] sm:$0xff]
        %v497 = vld [vmem:[%s2 + $0x1a8] sm:$0xff]
        %v498 = vld [vmem:[%s2 + $0x1b0] sm:$0xff]
        %v499 = vld [vmem:[%s2 + $0x1b8] sm:$0xff]
        %v500 = vld [vmem:[%s2 + $0x1c0] sm:$0xff]
        %v501 = vld [vmem:[%s2 + $0x1c8] sm:$0xff]
        %v502 = vld [vmem:[%s2 + $0x1d0] sm:$0xff]
        %v503 = vld [vmem:[%s2 + $0x1d8] sm:$0xff]
        %v504 = vld [vmem:[%s2 + $0x1e0] sm:$0xff]
        %v505 = vld [vmem:[%s2 + $0x1e8] sm:$0xff]
        %v506 = vld [vmem:[%s2 + $0x1f0] sm:$0xff]
        %v507 = vld [vmem:[%s2 + $0x1f8] sm:$0xff]
        %v508 = vld [vmem:[%s2 + $0x200] sm:$0xff]
        %v509 = vld [vmem:[%s2 + $0x208] sm:$0xff]
        %v510 = vld [vmem:[%s2 + $0x210] sm:$0xff]
        %v511 = vld [vmem:[%s2 + $0x218] sm:$0xff]
        %v512 = vld [vmem:[%s2 + $0x220] sm:$0xff]
        %v513 = vld [vmem:[%s2 + $0x228] sm:$0xff]
        %v514 = vld [vmem:[%s2 + $0x230] sm:$0xff]
        %v515 = vld [vmem:[%s2 + $0x238] sm:$0xff]
        %v516 = vld [vmem:[%s2 + $0x240] sm:$0xff]
        %v517 = vld [vmem:[%s2 + $0x248] sm:$0xff]
        %v518 = vld [vmem:[%s2 + $0x250] sm:$0xff]
        %v519 = vld [vmem:[%s2 + $0x258] sm:$0xff]
        %v520 = vld [vmem:[%s2 + $0x260] sm:$0xff]
        %v521 = vld [vmem:[%s2 + $0x268] sm:$0xff]
        %v522 = vld [vmem:[%s2 + $0x270] sm:$0xff]
        %v523 = vld [vmem:[%s2 + $0x278] sm:$0xff]
        %v524 = vld [vmem:[%s2 + $0x280] sm:$0xff]
        %v525 = vld [vmem:[%s2 + $0x288] sm:$0xff]
        %v526 = vld [vmem:[%s2 + $0x290] sm:$0xff]
        %v527 = vld [vmem:[%s2 + $0x298] sm:$0xff]
        %v528 = vld [vmem:[%s2 + $0x2a0] sm:$0xff]
        %v529 = vld [vmem:[%s2 + $0x2a8] sm:$0xff]
        %v530 = vld [vmem:[%s2 + $0x2b0] sm:$0xff]
        %v531 = vld [vmem:[%s2 + $0x2b8] sm:$0xff]
        %v532 = vld [vmem:[%s2 + $0x2c0] sm:$0xff]
        %v533 = vld [vmem:[%s2 + $0x2c8] sm:$0xff]
        %v534 = vld [vmem:[%s2 + $0x2d0] sm:$0xff]
        %v535 = vld [vmem:[%s2 + $0x2d8] sm:$0xff]
        %v536 = vld [vmem:[%s2 + $0x2e0] sm:$0xff]
        %v537 = vld [vmem:[%s2 + $0x2e8] sm:$0xff]
        %v538 = vld [vmem:[%s2 + $0x2f0] sm:$0xff]
        %v539 = vld [vmem:[%s2 + $0x2f8] sm:$0xff]
        %v540 = vld [vmem:[%s2 + $0x300] sm:$0xff]
        %v541 = vld [vmem:[%s2 + $0x308] sm:$0xff]
        %v542 = vld [vmem:[%s2 + $0x310] sm:$0xff]
        %v543 = vld [vmem:[%s2 + $0x318] sm:$0xff]
        %v544 = vld [vmem:[%s2 + $0x320] sm:$0xff]
        %v545 = vld [vmem:[%s2 + $0x328] sm:$0xff]
        %v546 = vld [vmem:[%s2 + $0x330] sm:$0xff]
        %v547 = vld [vmem:[%s2 + $0x338] sm:$0xff]
        %v548 = vld [vmem:[%s2 + $0x340] sm:$0xff]
        %v549 = vld [vmem:[%s2 + $0x348] sm:$0xff]
        %v550 = vld [vmem:[%s2 + $0x350] sm:$0xff]
        %v551 = vld [vmem:[%s2 + $0x358] sm:$0xff]
        %v552 = vld [vmem:[%s2 + $0x360] sm:$0xff]
        %v553 = vld [vmem:[%s2 + $0x368] sm:$0xff]
        %v554 = vld [vmem:[%s2 + $0x370] sm:$0xff]
        %v555 = vld [vmem:[%s2 + $0x378] sm:$0xff]
        %v556 = vld [vmem:[%s2 + $0x380] sm:$0xff]
        %v557 = vld [vmem:[%s2 + $0x388] sm:$0xff]
        %v558 = vld [vmem:[%s2 + $0x390] sm:$0xff]
        %v559 = vld [vmem:[%s2 + $0x398] sm:$0xff]
        %v560 = vld [vmem:[%s2 + $0x3a0] sm:$0xff]
        %v561 = vld [vmem:[%s2 + $0x3a8] sm:$0xff]
        %v562 = vld [vmem:[%s2 + $0x3b0] sm:$0xff]
        %v563 = vld [vmem:[%s2 + $0x3b8] sm:$0xff]
        %v564 = vld [vmem:[%s2 + $0x3c0] sm:$0xff]
        %v565 = vld [vmem:[%s2 + $0x3c8] sm:$0xff]
        %v566 = vld [vmem:[%s2 + $0x3d0] sm:$0xff]
        %v567 = vld [vmem:[%s2 + $0x3d8] sm:$0xff]
        %v568 = vld [vmem:[%s2 + $0x3e0] sm:$0xff]
        %v569 = vld [vmem:[%s2 + $0x3e8] sm:$0xff]
        %v570 = vld [vmem:[%s2 + $0x3f0] sm:$0xff]
        %v571 = vld [vmem:[%s2 + $0x3f8] sm:$0xff]
        %v572 = vld [vmem:[%s2 + $0x400] sm:$0xff]
        %v573 = vld [vmem:[%s2 + $0x408] sm:$0xff]
        %v574 = vld [vmem:[%s2 + $0x410] sm:$0xff]
        %v575 = vld [vmem:[%s2 + $0x418] sm:$0xff]
        %v576 = vld [vmem:[%s2 + $0x420] sm:$0xff]
        %v577 = vld [vmem:[%s2 + $0x428] sm:$0xff]
        %v578 = vld [vmem:[%s2 + $0x430] sm:$0xff]
        %v579 = vld [vmem:[%s2 + $0x438] sm:$0xff]
        %v580 = vld [vmem:[%s2 + $0x440] sm:$0xff]
        %v581 = vld [vmem:[%s2 + $0x448] sm:$0xff]
        %v582 = vld [vmem:[%s2 + $0x450] sm:$0xff]
        %v583 = vld [vmem:[%s2 + $0x458] sm:$0xff]
        %v584 = vld [vmem:[%s2 + $0x460] sm:$0xff]
        %v585 = vld [vmem:[%s2 + $0x468] sm:$0xff]
        %v586 = vld [vmem:[%s2 + $0x470] sm:$0xff]
        %v587 = vld [vmem:[%s2 + $0x478] sm:$0xff]
        %v588 = vld [vmem:[%s2 + $0x480] sm:$0xff]
        %v589 = vld [vmem:[%s2 + $0x488] sm:$0xff]
        %v590 = vld [vmem:[%s2 + $0x490] sm:$0xff]
        %v591 = vld [vmem:[%s2 + $0x498] sm:$0xff]
        %v592 = vld [vmem:[%s2 + $0x4a0] sm:$0xff]
        %v593 = vld [vmem:[%s2 + $0x4a8] sm:$0xff]
        %v594 = vld [vmem:[%s2 + $0x4b0] sm:$0xff]
        %v595 = vld [vmem:[%s2 + $0x4b8] sm:$0xff]
        %v596 = vld [vmem:[%s2 + $0x4c0] sm:$0xff]
        %v597 = vld [vmem:[%s2 + $0x4c8] sm:$0xff]
        %v598 = vld [vmem:[%s2 + $0x4d0] sm:$0xff]
        %v599 = vld [vmem:[%s2 + $0x4d8] sm:$0xff]
        %v600 = vld [vmem:[%s2 + $0x4e0] sm:$0xff]
        %v601 = vld [vmem:[%s2 + $0x4e8] sm:$0xff]
        %v602 = vld [vmem:[%s2 + $0x4f0] sm:$0xff]
        %v603 = vld [vmem:[%s2 + $0x4f8] sm:$0xff]
        %v604 = vld [vmem:[%s2 + $0x500] sm:$0xff]
        %v605 = vld [vmem:[%s2 + $0x508] sm:$0xff]
        %v606 = vld [vmem:[%s2 + $0x510] sm:$0xff]
        %v607 = vld [vmem:[%s2 + $0x518] sm:$0xff]
        %v608 = vld [vmem:[%s2 + $0x520] sm:$0xff]
        %v609 = vld [vmem:[%s2 + $0x528] sm:$0xff]
        %v610 = vld [vmem:[%s2 + $0x530] sm:$0xff]
        %v611 = vld [vmem:[%s2 + $0x538] sm:$0xff]
        %v612 = vld [vmem:[%s2 + $0x540] sm:$0xff]
        %v613 = vld [vmem:[%s2 + $0x548] sm:$0xff]
        %v614 = vld [vmem:[%s2 + $0x550] sm:$0xff]
        %v615 = vld [vmem:[%s2 + $0x558] sm:$0xff]
        %v616 = vld [vmem:[%s2 + $0x560] sm:$0xff]
        %v617 = vld [vmem:[%s2 + $0x568] sm:$0xff]
        %v618 = vld [vmem:[%s2 + $0x570] sm:$0xff]
        %v619 = vld [vmem:[%s2 + $0x578] sm:$0xff]
        %v620 = vld [vmem:[%s2 + $0x580] sm:$0xff]
        %v621 = vld [vmem:[%s2 + $0x588] sm:$0xff]
        %v622 = vld [vmem:[%s2 + $0x590] sm:$0xff]
        %v623 = vld [vmem:[%s2 + $0x598] sm:$0xff]
        %v624 = vld [vmem:[%s2 + $0x5a0] sm:$0xff]
        %v625 = vld [vmem:[%s2 + $0x5a8] sm:$0xff]
        %v626 = vld [vmem:[%s2 + $0x5b0] sm:$0xff]
        %v627 = vld [vmem:[%s2 + $0x5b8] sm:$0xff]
        %v628 = vld [vmem:[%s2 + $0x5c0] sm:$0xff]
        %v629 = vld [vmem:[%s2 + $0x5c8] sm:$0xff]
        %v630 = vld [vmem:[%s2 + $0x5d0] sm:$0xff]
        %v631 = vld [vmem:[%s2 + $0x5d8] sm:$0xff]
        %v632 = vld [vmem:[%s2 + $0x5e0] sm:$0xff]
        %v633 = vld [vmem:[%s2 + $0x5e8] sm:$0xff]
        %v634 = vld [vmem:[%s2 + $0x5f0] sm:$0xff]
        %v635 = vld [vmem:[%s2 + $0x5f8] sm:$0xff]
        %v636 = vld [vmem:[%s2 + $0x600] sm:$0xff]
        %v637 = vld [vmem:[%s2 + $0x608] sm:$0xff]
        %v638 = vld [vmem:[%s2 + $0x610] sm:$0xff]
        %v639 = vld [vmem:[%s2 + $0x618] sm:$0xff]
        %v640 = vld [vmem:[%s3] sm:$0xf]
        %v642 = vlaneseq
        %v643 = vshrl.u32 %v642, 7
        %v644 = vsub.s32 0, %v643
        %v645 = vrot.slane %v640, %v644
        %v646 = vlaneseq
        %v647 = vshrl.u32 %v646, 7
        %v648 = vsub.s32 1, %v647
        %v649 = vrot.slane %v640, %v648
        %v650 = vlaneseq
        %v651 = vshrl.u32 %v650, 7
        %v652 = vsub.s32 2, %v651
        %v653 = vrot.slane %v640, %v652
        %v654 = vlaneseq
        %v655 = vshrl.u32 %v654, 7
        %v656 = vsub.s32 3, %v655
        %v657 = vrot.slane %v640, %v656
        %v678 = vunpack.c.l.b16 %v428
        %v679 = vunpack.c.h.b16 %v428
        %v680 = vunpack.c.l.b16 %v429
        %v681 = vunpack.c.h.b16 %v429
        %v682 = vunpack.c.l.b16 %v430
        %v683 = vunpack.c.h.b16 %v430
        %v684 = vunpack.c.l.b16 %v431
        %v685 = vunpack.c.l.b16 %v432
        %v686 = vunpack.c.h.b16 %v432
        %v687 = vunpack.c.l.b16 %v433
        %v688 = vunpack.c.h.b16 %v433
        %v689 = vunpack.c.l.b16 %v434
        %v690 = vunpack.c.h.b16 %v434
        %v691 = vunpack.c.l.b16 %v435
        %v692 = vunpack.c.l.b16 %v436
        %v693 = vunpack.c.h.b16 %v436
        %v694 = vunpack.c.l.b16 %v437
        %v695 = vunpack.c.h.b16 %v437
        %v696 = vunpack.c.l.b16 %v438
        %v697 = vunpack.c.h.b16 %v438
        %v698 = vunpack.c.l.b16 %v439
        %v699 = vunpack.c.l.b16 %v440
        %v700 = vunpack.c.h.b16 %v440
        %v701 = vunpack.c.l.b16 %v441
        %v702 = vunpack.c.h.b16 %v441
        %v703 = vunpack.c.l.b16 %v442
        %v704 = vunpack.c.h.b16 %v442
        %v705 = vunpack.c.l.b16 %v443
        %v706 = vpack.c.b16 %v685, %v678
        %v707 = vpack.c.b16 %v686, %v679
        %v708 = vpack.c.b16 %v687, %v680
        %v709 = vpack.c.b16 %v688, %v681
        %v710 = vpack.c.b16 %v689, %v682
        %v711 = vpack.c.b16 %v690, %v683
        %v712 = vpack.c.b16 %v691, %v684
        %v713 = vpack.c.b16 %v699, %v692
        %v714 = vpack.c.b16 %v700, %v693
        %v715 = vpack.c.b16 %v701, %v694
        %v716 = vpack.c.b16 %v702, %v695
        %v717 = vpack.c.b16 %v703, %v696
        %v718 = vpack.c.b16 %v704, %v697
        %v719 = vpack.c.b16 %v705, %v698
        %v928 = vunpack.c.l.b16 %v444
        %v929 = vunpack.c.h.b16 %v444
        %v930 = vunpack.c.l.b16 %v445
        %v931 = vunpack.c.h.b16 %v445
        %v932 = vunpack.c.l.b16 %v446
        %v933 = vunpack.c.h.b16 %v446
        %v934 = vunpack.c.l.b16 %v447
        %v935 = vunpack.c.h.b16 %v447
        %v936 = vunpack.c.l.b16 %v448
        %v937 = vunpack.c.h.b16 %v448
        %v938 = vunpack.c.l.b16 %v449
        %v939 = vunpack.c.h.b16 %v449
        %v940 = vunpack.c.l.b16 %v450
        %v941 = vunpack.c.h.b16 %v450
        %v942 = vunpack.c.l.b16 %v451
        %v943 = vunpack.c.h.b16 %v451
        %v944 = vunpack.c.l.b16 %v452
        %v945 = vunpack.c.h.b16 %v452
        %v946 = vunpack.c.l.b16 %v453
        %v947 = vunpack.c.h.b16 %v453
        %v948 = vunpack.c.l.b16 %v454
        %v949 = vunpack.c.h.b16 %v454
        %v950 = vunpack.c.l.b16 %v455
        %v951 = vunpack.c.h.b16 %v455
        %v952 = vunpack.c.l.b16 %v456
        %v953 = vunpack.c.h.b16 %v456
        %v954 = vunpack.c.l.b16 %v457
        %v955 = vunpack.c.h.b16 %v457
        %v956 = vunpack.c.l.b16 %v458
        %v957 = vunpack.c.h.b16 %v458
        %v958 = vunpack.c.l.b16 %v459
        %v959 = vunpack.c.h.b16 %v459
        %v960 = vunpack.c.l.b16 %v460
        %v961 = vunpack.c.h.b16 %v460
        %v962 = vunpack.c.l.b16 %v461
        %v963 = vunpack.c.h.b16 %v461
        %v964 = vunpack.c.l.b16 %v462
        %v965 = vunpack.c.h.b16 %v462
        %v966 = vunpack.c.l.b16 %v463
        %v967 = vunpack.c.h.b16 %v463
        %v968 = vunpack.c.l.b16 %v464
        %v969 = vunpack.c.h.b16 %v464
        %v970 = vunpack.c.l.b16 %v465
        %v971 = vunpack.c.h.b16 %v465
        %v972 = vunpack.c.l.b16 %v466
        %v973 = vunpack.c.h.b16 %v466
        %v974 = vunpack.c.l.b16 %v467
        %v975 = vunpack.c.h.b16 %v467
        %v976 = vunpack.c.l.b16 %v468
        %v977 = vunpack.c.h.b16 %v468
        %v978 = vunpack.c.l.b16 %v469
        %v979 = vunpack.c.h.b16 %v469
        %v980 = vunpack.c.l.b16 %v470
        %v981 = vunpack.c.h.b16 %v470
        %v982 = vunpack.c.l.b16 %v471
        %v983 = vunpack.c.h.b16 %v471
        %v984 = vunpack.c.l.b16 %v472
        %v985 = vunpack.c.h.b16 %v472
        %v986 = vunpack.c.l.b16 %v473
        %v987 = vunpack.c.h.b16 %v473
        %v988 = vunpack.c.l.b16 %v474
        %v989 = vunpack.c.h.b16 %v474
        %v990 = vunpack.c.l.b16 %v475
        %v991 = vunpack.c.h.b16 %v475
        %v992 = vunpack.c.l.b16 %v476
        %v993 = vunpack.c.h.b16 %v476
        %v994 = vunpack.c.l.b16 %v477
        %v995 = vunpack.c.h.b16 %v477
        %v996 = vunpack.c.l.b16 %v478
        %v997 = vunpack.c.h.b16 %v478
        %v998 = vunpack.c.l.b16 %v479
        %v999 = vunpack.c.h.b16 %v479
        %v1000 = vunpack.c.l.b16 %v480
        %v1001 = vunpack.c.h.b16 %v480
        %v1002 = vunpack.c.l.b16 %v481
        %v1003 = vunpack.c.h.b16 %v481
        %v1004 = vunpack.c.l.b16 %v482
        %v1005 = vunpack.c.h.b16 %v482
        %v1006 = vunpack.c.l.b16 %v483
        %v1007 = vunpack.c.h.b16 %v483
        %v1008 = vunpack.c.l.b16 %v484
        %v1009 = vunpack.c.h.b16 %v484
        %v1010 = vunpack.c.l.b16 %v485
        %v1011 = vunpack.c.h.b16 %v485
        %v1012 = vunpack.c.l.b16 %v486
        %v1013 = vunpack.c.h.b16 %v486
        %v1014 = vunpack.c.l.b16 %v487
        %v1015 = vunpack.c.h.b16 %v487
        %v1016 = vunpack.c.l.b16 %v488
        %v1017 = vunpack.c.h.b16 %v488
        %v1018 = vunpack.c.l.b16 %v489
        %v1019 = vunpack.c.h.b16 %v489
        %v1020 = vunpack.c.l.b16 %v490
        %v1021 = vunpack.c.h.b16 %v490
        %v1022 = vunpack.c.l.b16 %v491
        %v1023 = vunpack.c.h.b16 %v491
        %v1024 = vunpack.c.l.b16 %v492
        %v1025 = vunpack.c.h.b16 %v492
        %v1026 = vunpack.c.l.b16 %v493
        %v1027 = vunpack.c.h.b16 %v493
        %v1028 = vunpack.c.l.b16 %v494
        %v1029 = vunpack.c.h.b16 %v494
        %v1030 = vunpack.c.l.b16 %v495
        %v1031 = vunpack.c.h.b16 %v495
        %v1032 = vunpack.c.l.b16 %v496
        %v1033 = vunpack.c.h.b16 %v496
        %v1034 = vunpack.c.l.b16 %v497
        %v1035 = vunpack.c.h.b16 %v497
        %v1036 = vunpack.c.l.b16 %v498
        %v1037 = vunpack.c.h.b16 %v498
        %v1038 = vunpack.c.l.b16 %v499
        %v1039 = vunpack.c.h.b16 %v499
        %v1040 = vunpack.c.l.b16 %v500
        %v1041 = vunpack.c.h.b16 %v500
        %v1042 = vunpack.c.l.b16 %v501
        %v1043 = vunpack.c.h.b16 %v501
        %v1044 = vunpack.c.l.b16 %v502
        %v1045 = vunpack.c.h.b16 %v502
        %v1046 = vunpack.c.l.b16 %v503
        %v1047 = vunpack.c.h.b16 %v503
        %v1048 = vunpack.c.l.b16 %v504
        %v1049 = vunpack.c.h.b16 %v504
        %v1050 = vunpack.c.l.b16 %v505
        %v1051 = vunpack.c.h.b16 %v505
        %v1052 = vunpack.c.l.b16 %v506
        %v1053 = vunpack.c.h.b16 %v506
        %v1054 = vunpack.c.l.b16 %v507
        %v1055 = vunpack.c.h.b16 %v507
        %v1056 = vunpack.c.l.b16 %v508
        %v1057 = vunpack.c.h.b16 %v508
        %v1058 = vunpack.c.l.b16 %v509
        %v1059 = vunpack.c.h.b16 %v509
        %v1060 = vunpack.c.l.b16 %v510
        %v1061 = vunpack.c.h.b16 %v510
        %v1062 = vunpack.c.l.b16 %v511
        %v1063 = vunpack.c.h.b16 %v511
        %v1064 = vunpack.c.l.b16 %v512
        %v1065 = vunpack.c.h.b16 %v512
        %v1066 = vunpack.c.l.b16 %v513
        %v1067 = vunpack.c.h.b16 %v513
        %v1068 = vunpack.c.l.b16 %v514
        %v1069 = vunpack.c.h.b16 %v514
        %v1070 = vunpack.c.l.b16 %v515
        %v1071 = vunpack.c.h.b16 %v515
        %v1072 = vunpack.c.l.b16 %v516
        %v1073 = vunpack.c.h.b16 %v516
        %v1074 = vunpack.c.l.b16 %v517
        %v1075 = vunpack.c.h.b16 %v517
        %v1076 = vunpack.c.l.b16 %v518
        %v1077 = vunpack.c.h.b16 %v518
        %v1078 = vunpack.c.l.b16 %v519
        %v1079 = vunpack.c.h.b16 %v519
        %v1080 = vunpack.c.l.b16 %v520
        %v1081 = vunpack.c.h.b16 %v520
        %v1082 = vunpack.c.l.b16 %v521
        %v1083 = vunpack.c.h.b16 %v521
        %v1084 = vunpack.c.l.b16 %v522
        %v1085 = vunpack.c.h.b16 %v522
        %v1086 = vunpack.c.l.b16 %v523
        %v1087 = vunpack.c.h.b16 %v523
        %v1088 = vunpack.c.l.b16 %v524
        %v1089 = vunpack.c.h.b16 %v524
        %v1090 = vunpack.c.l.b16 %v525
        %v1091 = vunpack.c.h.b16 %v525
        %v1092 = vunpack.c.l.b16 %v526
        %v1093 = vunpack.c.h.b16 %v526
        %v1094 = vunpack.c.l.b16 %v527
        %v1095 = vunpack.c.h.b16 %v527
        %v1096 = vunpack.c.l.b16 %v528
        %v1097 = vunpack.c.h.b16 %v528
        %v1098 = vunpack.c.l.b16 %v529
        %v1099 = vunpack.c.h.b16 %v529
        %v1100 = vunpack.c.l.b16 %v530
        %v1101 = vunpack.c.h.b16 %v530
        %v1102 = vunpack.c.l.b16 %v531
        %v1103 = vunpack.c.h.b16 %v531
        %v1104 = vunpack.c.l.b16 %v532
        %v1105 = vunpack.c.h.b16 %v532
        %v1106 = vunpack.c.l.b16 %v533
        %v1107 = vunpack.c.h.b16 %v533
        %v1108 = vunpack.c.l.b16 %v534
        %v1109 = vunpack.c.h.b16 %v534
        %v1110 = vunpack.c.l.b16 %v535
        %v1111 = vunpack.c.h.b16 %v535
        %v1112 = vunpack.c.l.b16 %v536
        %v1113 = vunpack.c.h.b16 %v536
        %v1114 = vunpack.c.l.b16 %v537
        %v1115 = vunpack.c.h.b16 %v537
        %v1116 = vunpack.c.l.b16 %v538
        %v1117 = vunpack.c.h.b16 %v538
        %v1118 = vunpack.c.l.b16 %v539
        %v1119 = vunpack.c.h.b16 %v539
        %v1120 = vunpack.c.l.b16 %v540
        %v1121 = vunpack.c.h.b16 %v540
        %v1122 = vunpack.c.l.b16 %v541
        %v1123 = vunpack.c.h.b16 %v541
        %v1124 = vunpack.c.l.b16 %v542
        %v1125 = vunpack.c.h.b16 %v542
        %v1126 = vunpack.c.l.b16 %v543
        %v1127 = vunpack.c.h.b16 %v543
        %v1128 = vunpack.c.l.b16 %v544
        %v1129 = vunpack.c.h.b16 %v544
        %v1130 = vunpack.c.l.b16 %v545
        %v1131 = vunpack.c.h.b16 %v545
        %v1132 = vunpack.c.l.b16 %v546
        %v1133 = vunpack.c.h.b16 %v546
        %v1134 = vunpack.c.l.b16 %v547
        %v1135 = vunpack.c.h.b16 %v547
        %v1136 = vunpack.c.l.b16 %v548
        %v1137 = vunpack.c.h.b16 %v548
        %v1138 = vunpack.c.l.b16 %v549
        %v1139 = vunpack.c.h.b16 %v549
        %v1140 = vunpack.c.l.b16 %v550
        %v1141 = vunpack.c.h.b16 %v550
        %v1142 = vunpack.c.l.b16 %v551
        %v1143 = vunpack.c.h.b16 %v551
        %v1144 = vunpack.c.l.b16 %v552
        %v1145 = vunpack.c.h.b16 %v552
        %v1146 = vunpack.c.l.b16 %v553
        %v1147 = vunpack.c.h.b16 %v553
        %v1148 = vunpack.c.l.b16 %v554
        %v1149 = vunpack.c.h.b16 %v554
        %v1150 = vunpack.c.l.b16 %v555
        %v1151 = vunpack.c.h.b16 %v555
        %v1152 = vunpack.c.l.b16 %v556
        %v1153 = vunpack.c.h.b16 %v556
        %v1154 = vunpack.c.l.b16 %v557
        %v1155 = vunpack.c.h.b16 %v557
        %v1156 = vunpack.c.l.b16 %v558
        %v1157 = vunpack.c.h.b16 %v558
        %v1158 = vunpack.c.l.b16 %v559
        %v1159 = vunpack.c.h.b16 %v559
        %v1160 = vunpack.c.l.b16 %v560
        %v1161 = vunpack.c.h.b16 %v560
        %v1162 = vunpack.c.l.b16 %v561
        %v1163 = vunpack.c.h.b16 %v561
        %v1164 = vunpack.c.l.b16 %v562
        %v1165 = vunpack.c.h.b16 %v562
        %v1166 = vunpack.c.l.b16 %v563
        %v1167 = vunpack.c.h.b16 %v563
        %v1168 = vunpack.c.l.b16 %v564
        %v1169 = vunpack.c.h.b16 %v564
        %v1170 = vunpack.c.l.b16 %v565
        %v1171 = vunpack.c.h.b16 %v565
        %v1172 = vunpack.c.l.b16 %v566
        %v1173 = vunpack.c.h.b16 %v566
        %v1174 = vunpack.c.l.b16 %v567
        %v1175 = vunpack.c.h.b16 %v567
        %v1176 = vunpack.c.l.b16 %v568
        %v1177 = vunpack.c.h.b16 %v568
        %v1178 = vunpack.c.l.b16 %v569
        %v1179 = vunpack.c.h.b16 %v569
        %v1180 = vunpack.c.l.b16 %v570
        %v1181 = vunpack.c.h.b16 %v570
        %v1182 = vunpack.c.l.b16 %v571
        %v1183 = vunpack.c.h.b16 %v571
        %v1184 = vunpack.c.l.b16 %v572
        %v1185 = vunpack.c.h.b16 %v572
        %v1186 = vunpack.c.l.b16 %v573
        %v1187 = vunpack.c.h.b16 %v573
        %v1188 = vunpack.c.l.b16 %v574
        %v1189 = vunpack.c.h.b16 %v574
        %v1190 = vunpack.c.l.b16 %v575
        %v1191 = vunpack.c.h.b16 %v575
        %v1192 = vunpack.c.l.b16 %v576
        %v1193 = vunpack.c.h.b16 %v576
        %v1194 = vunpack.c.l.b16 %v577
        %v1195 = vunpack.c.h.b16 %v577
        %v1196 = vunpack.c.l.b16 %v578
        %v1197 = vunpack.c.h.b16 %v578
        %v1198 = vunpack.c.l.b16 %v579
        %v1199 = vunpack.c.h.b16 %v579
        %v1200 = vunpack.c.l.b16 %v580
        %v1201 = vunpack.c.h.b16 %v580
        %v1202 = vunpack.c.l.b16 %v581
        %v1203 = vunpack.c.h.b16 %v581
        %v1204 = vunpack.c.l.b16 %v582
        %v1205 = vunpack.c.h.b16 %v582
        %v1206 = vunpack.c.l.b16 %v583
        %v1207 = vunpack.c.h.b16 %v583
        %v1208 = vunpack.c.l.b16 %v584
        %v1209 = vunpack.c.h.b16 %v584
        %v1210 = vunpack.c.l.b16 %v585
        %v1211 = vunpack.c.h.b16 %v585
        %v1212 = vunpack.c.l.b16 %v586
        %v1213 = vunpack.c.h.b16 %v586
        %v1214 = vunpack.c.l.b16 %v587
        %v1215 = vunpack.c.h.b16 %v587
        %v1216 = vunpack.c.l.b16 %v588
        %v1217 = vunpack.c.h.b16 %v588
        %v1218 = vunpack.c.l.b16 %v589
        %v1219 = vunpack.c.h.b16 %v589
        %v1220 = vunpack.c.l.b16 %v590
        %v1221 = vunpack.c.h.b16 %v590
        %v1222 = vunpack.c.l.b16 %v591
        %v1223 = vunpack.c.h.b16 %v591
        %v1224 = vunpack.c.l.b16 %v592
        %v1225 = vunpack.c.h.b16 %v592
        %v1226 = vunpack.c.l.b16 %v593
        %v1227 = vunpack.c.h.b16 %v593
        %v1228 = vunpack.c.l.b16 %v594
        %v1229 = vunpack.c.h.b16 %v594
        %v1230 = vunpack.c.l.b16 %v595
        %v1231 = vunpack.c.h.b16 %v595
        %v1232 = vunpack.c.l.b16 %v596
        %v1233 = vunpack.c.h.b16 %v596
        %v1234 = vunpack.c.l.b16 %v597
        %v1235 = vunpack.c.h.b16 %v597
        %v1236 = vunpack.c.l.b16 %v598
        %v1237 = vunpack.c.h.b16 %v598
        %v1238 = vunpack.c.l.b16 %v599
        %v1239 = vunpack.c.h.b16 %v599
        %v1240 = vunpack.c.l.b16 %v600
        %v1241 = vunpack.c.h.b16 %v600
        %v1242 = vunpack.c.l.b16 %v601
        %v1243 = vunpack.c.h.b16 %v601
        %v1244 = vunpack.c.l.b16 %v602
        %v1245 = vunpack.c.h.b16 %v602
        %v1246 = vunpack.c.l.b16 %v603
        %v1247 = vunpack.c.h.b16 %v603
        %v1248 = vunpack.c.l.b16 %v604
        %v1249 = vunpack.c.h.b16 %v604
        %v1250 = vunpack.c.l.b16 %v605
        %v1251 = vunpack.c.h.b16 %v605
        %v1252 = vunpack.c.l.b16 %v606
        %v1253 = vunpack.c.h.b16 %v606
        %v1254 = vunpack.c.l.b16 %v607
        %v1255 = vunpack.c.h.b16 %v607
        %v1256 = vunpack.c.l.b16 %v608
        %v1257 = vunpack.c.h.b16 %v608
        %v1258 = vunpack.c.l.b16 %v609
        %v1259 = vunpack.c.h.b16 %v609
        %v1260 = vunpack.c.l.b16 %v610
        %v1261 = vunpack.c.h.b16 %v610
        %v1262 = vunpack.c.l.b16 %v611
        %v1263 = vunpack.c.h.b16 %v611
        %v1264 = vunpack.c.l.b16 %v612
        %v1265 = vunpack.c.h.b16 %v612
        %v1266 = vunpack.c.l.b16 %v613
        %v1267 = vunpack.c.h.b16 %v613
        %v1268 = vunpack.c.l.b16 %v614
        %v1269 = vunpack.c.h.b16 %v614
        %v1270 = vunpack.c.l.b16 %v615
        %v1271 = vunpack.c.h.b16 %v615
        %v1272 = vunpack.c.l.b16 %v616
        %v1273 = vunpack.c.h.b16 %v616
        %v1274 = vunpack.c.l.b16 %v617
        %v1275 = vunpack.c.h.b16 %v617
        %v1276 = vunpack.c.l.b16 %v618
        %v1277 = vunpack.c.h.b16 %v618
        %v1278 = vunpack.c.l.b16 %v619
        %v1279 = vunpack.c.h.b16 %v619
        %v1280 = vunpack.c.l.b16 %v620
        %v1281 = vunpack.c.h.b16 %v620
        %v1282 = vunpack.c.l.b16 %v621
        %v1283 = vunpack.c.h.b16 %v621
        %v1284 = vunpack.c.l.b16 %v622
        %v1285 = vunpack.c.h.b16 %v622
        %v1286 = vunpack.c.l.b16 %v623
        %v1287 = vunpack.c.h.b16 %v623
        %v1288 = vunpack.c.l.b16 %v624
        %v1289 = vunpack.c.h.b16 %v624
        %v1290 = vunpack.c.l.b16 %v625
        %v1291 = vunpack.c.h.b16 %v625
        %v1292 = vunpack.c.l.b16 %v626
        %v1293 = vunpack.c.h.b16 %v626
        %v1294 = vunpack.c.l.b16 %v627
        %v1295 = vunpack.c.h.b16 %v627
        %v1296 = vunpack.c.l.b16 %v628
        %v1297 = vunpack.c.h.b16 %v628
        %v1298 = vunpack.c.l.b16 %v629
        %v1299 = vunpack.c.h.b16 %v629
        %v1300 = vunpack.c.l.b16 %v630
        %v1301 = vunpack.c.h.b16 %v630
        %v1302 = vunpack.c.l.b16 %v631
        %v1303 = vunpack.c.h.b16 %v631
        %v1304 = vunpack.c.l.b16 %v632
        %v1305 = vunpack.c.h.b16 %v632
        %v1306 = vunpack.c.l.b16 %v633
        %v1307 = vunpack.c.h.b16 %v633
        %v1308 = vunpack.c.l.b16 %v634
        %v1309 = vunpack.c.h.b16 %v634
        %v1310 = vunpack.c.l.b16 %v635
        %v1311 = vunpack.c.h.b16 %v635
        %v1312 = vunpack.c.l.b16 %v636
        %v1313 = vunpack.c.h.b16 %v636
        %v1314 = vunpack.c.l.b16 %v637
        %v1315 = vunpack.c.h.b16 %v637
        %v1316 = vunpack.c.l.b16 %v638
        %v1317 = vunpack.c.h.b16 %v638
        %v1318 = vunpack.c.l.b16 %v639
        %v1319 = vunpack.c.h.b16 %v639
        %v1320 = vpack.c.b16 %v932, %v928
        %v1321 = vpack.c.b16 %v933, %v929
        %v1322 = vpack.c.b16 %v934, %v930
        %v1323 = vpack.c.b16 %v935, %v931
        %v1324 = vpack.c.b16 %v940, %v936
        %v1325 = vpack.c.b16 %v941, %v937
        %v1326 = vpack.c.b16 %v942, %v938
        %v1327 = vpack.c.b16 %v943, %v939
        %v1328 = vpack.c.b16 %v948, %v944
        %v1329 = vpack.c.b16 %v949, %v945
        %v1330 = vpack.c.b16 %v950, %v946
        %v1331 = vpack.c.b16 %v951, %v947
        %v1332 = vpack.c.b16 %v956, %v952
        %v1333 = vpack.c.b16 %v957, %v953
        %v1334 = vpack.c.b16 %v958, %v954
        %v1335 = vpack.c.b16 %v959, %v955
        %v1336 = vpack.c.b16 %v964, %v960
        %v1337 = vpack.c.b16 %v965, %v961
        %v1338 = vpack.c.b16 %v966, %v962
        %v1339 = vpack.c.b16 %v967, %v963
        %v1340 = vpack.c.b16 %v972, %v968
        %v1341 = vpack.c.b16 %v973, %v969
        %v1342 = vpack.c.b16 %v974, %v970
        %v1343 = vpack.c.b16 %v975, %v971
        %v1344 = vpack.c.b16 %v980, %v976
        %v1345 = vpack.c.b16 %v981, %v977
        %v1346 = vpack.c.b16 %v982, %v978
        %v1347 = vpack.c.b16 %v983, %v979
        %v1348 = vpack.c.b16 %v988, %v984
        %v1349 = vpack.c.b16 %v989, %v985
        %v1350 = vpack.c.b16 %v990, %v986
        %v1351 = vpack.c.b16 %v991, %v987
        %v1352 = vpack.c.b16 %v996, %v992
        %v1353 = vpack.c.b16 %v997, %v993
        %v1354 = vpack.c.b16 %v998, %v994
        %v1355 = vpack.c.b16 %v999, %v995
        %v1356 = vpack.c.b16 %v1004, %v1000
        %v1357 = vpack.c.b16 %v1005, %v1001
        %v1358 = vpack.c.b16 %v1006, %v1002
        %v1359 = vpack.c.b16 %v1007, %v1003
        %v1360 = vpack.c.b16 %v1012, %v1008
        %v1361 = vpack.c.b16 %v1013, %v1009
        %v1362 = vpack.c.b16 %v1014, %v1010
        %v1363 = vpack.c.b16 %v1015, %v1011
        %v1364 = vpack.c.b16 %v1020, %v1016
        %v1365 = vpack.c.b16 %v1021, %v1017
        %v1366 = vpack.c.b16 %v1022, %v1018
        %v1367 = vpack.c.b16 %v1023, %v1019
        %v1368 = vpack.c.b16 %v1028, %v1024
        %v1369 = vpack.c.b16 %v1029, %v1025
        %v1370 = vpack.c.b16 %v1030, %v1026
        %v1371 = vpack.c.b16 %v1031, %v1027
        %v1372 = vpack.c.b16 %v1036, %v1032
        %v1373 = vpack.c.b16 %v1037, %v1033
        %v1374 = vpack.c.b16 %v1038, %v1034
        %v1375 = vpack.c.b16 %v1039, %v1035
        %v1376 = vpack.c.b16 %v1044, %v1040
        %v1377 = vpack.c.b16 %v1045, %v1041
        %v1378 = vpack.c.b16 %v1046, %v1042
        %v1379 = vpack.c.b16 %v1047, %v1043
        %v1380 = vpack.c.b16 %v1052, %v1048
        %v1381 = vpack.c.b16 %v1053, %v1049
        %v1382 = vpack.c.b16 %v1054, %v1050
        %v1383 = vpack.c.b16 %v1055, %v1051
        %v1384 = vpack.c.b16 %v1060, %v1056
        %v1385 = vpack.c.b16 %v1061, %v1057
        %v1386 = vpack.c.b16 %v1062, %v1058
        %v1387 = vpack.c.b16 %v1063, %v1059
        %v1388 = vpack.c.b16 %v1068, %v1064
        %v1389 = vpack.c.b16 %v1069, %v1065
        %v1390 = vpack.c.b16 %v1070, %v1066
        %v1391 = vpack.c.b16 %v1071, %v1067
        %v1392 = vpack.c.b16 %v1076, %v1072
        %v1393 = vpack.c.b16 %v1077, %v1073
        %v1394 = vpack.c.b16 %v1078, %v1074
        %v1395 = vpack.c.b16 %v1079, %v1075
        %v1396 = vpack.c.b16 %v1084, %v1080
        %v1397 = vpack.c.b16 %v1085, %v1081
        %v1398 = vpack.c.b16 %v1086, %v1082
        %v1399 = vpack.c.b16 %v1087, %v1083
        %v1400 = vpack.c.b16 %v1092, %v1088
        %v1401 = vpack.c.b16 %v1093, %v1089
        %v1402 = vpack.c.b16 %v1094, %v1090
        %v1403 = vpack.c.b16 %v1095, %v1091
        %v1404 = vpack.c.b16 %v1100, %v1096
        %v1405 = vpack.c.b16 %v1101, %v1097
        %v1406 = vpack.c.b16 %v1102, %v1098
        %v1407 = vpack.c.b16 %v1103, %v1099
        %v1408 = vpack.c.b16 %v1108, %v1104
        %v1409 = vpack.c.b16 %v1109, %v1105
        %v1410 = vpack.c.b16 %v1110, %v1106
        %v1411 = vpack.c.b16 %v1111, %v1107
        %v1412 = vpack.c.b16 %v1116, %v1112
        %v1413 = vpack.c.b16 %v1117, %v1113
        %v1414 = vpack.c.b16 %v1118, %v1114
        %v1415 = vpack.c.b16 %v1119, %v1115
        %v1416 = vpack.c.b16 %v1124, %v1120
        %v1417 = vpack.c.b16 %v1125, %v1121
        %v1418 = vpack.c.b16 %v1126, %v1122
        %v1419 = vpack.c.b16 %v1127, %v1123
        %v1420 = vpack.c.b16 %v1132, %v1128
        %v1421 = vpack.c.b16 %v1133, %v1129
        %v1422 = vpack.c.b16 %v1134, %v1130
        %v1423 = vpack.c.b16 %v1135, %v1131
        %v1424 = vpack.c.b16 %v1140, %v1136
        %v1425 = vpack.c.b16 %v1141, %v1137
        %v1426 = vpack.c.b16 %v1142, %v1138
        %v1427 = vpack.c.b16 %v1143, %v1139
        %v1428 = vpack.c.b16 %v1148, %v1144
        %v1429 = vpack.c.b16 %v1149, %v1145
        %v1430 = vpack.c.b16 %v1150, %v1146
        %v1431 = vpack.c.b16 %v1151, %v1147
        %v1432 = vpack.c.b16 %v1156, %v1152
        %v1433 = vpack.c.b16 %v1157, %v1153
        %v1434 = vpack.c.b16 %v1158, %v1154
        %v1435 = vpack.c.b16 %v1159, %v1155
        %v1436 = vpack.c.b16 %v1164, %v1160
        %v1437 = vpack.c.b16 %v1165, %v1161
        %v1438 = vpack.c.b16 %v1166, %v1162
        %v1439 = vpack.c.b16 %v1167, %v1163
        %v1440 = vpack.c.b16 %v1172, %v1168
        %v1441 = vpack.c.b16 %v1173, %v1169
        %v1442 = vpack.c.b16 %v1174, %v1170
        %v1443 = vpack.c.b16 %v1175, %v1171
        %v1444 = vpack.c.b16 %v1180, %v1176
        %v1445 = vpack.c.b16 %v1181, %v1177
        %v1446 = vpack.c.b16 %v1182, %v1178
        %v1447 = vpack.c.b16 %v1183, %v1179
        %v1448 = vpack.c.b16 %v1188, %v1184
        %v1449 = vpack.c.b16 %v1189, %v1185
        %v1450 = vpack.c.b16 %v1190, %v1186
        %v1451 = vpack.c.b16 %v1191, %v1187
        %v1452 = vpack.c.b16 %v1196, %v1192
        %v1453 = vpack.c.b16 %v1197, %v1193
        %v1454 = vpack.c.b16 %v1198, %v1194
        %v1455 = vpack.c.b16 %v1199, %v1195
        %v1456 = vpack.c.b16 %v1204, %v1200
        %v1457 = vpack.c.b16 %v1205, %v1201
        %v1458 = vpack.c.b16 %v1206, %v1202
        %v1459 = vpack.c.b16 %v1207, %v1203
        %v1460 = vpack.c.b16 %v1212, %v1208
        %v1461 = vpack.c.b16 %v1213, %v1209
        %v1462 = vpack.c.b16 %v1214, %v1210
        %v1463 = vpack.c.b16 %v1215, %v1211
        %v1464 = vpack.c.b16 %v1220, %v1216
        %v1465 = vpack.c.b16 %v1221, %v1217
        %v1466 = vpack.c.b16 %v1222, %v1218
        %v1467 = vpack.c.b16 %v1223, %v1219
        %v1468 = vpack.c.b16 %v1228, %v1224
        %v1469 = vpack.c.b16 %v1229, %v1225
        %v1470 = vpack.c.b16 %v1230, %v1226
        %v1471 = vpack.c.b16 %v1231, %v1227
        %v1472 = vpack.c.b16 %v1236, %v1232
        %v1473 = vpack.c.b16 %v1237, %v1233
        %v1474 = vpack.c.b16 %v1238, %v1234
        %v1475 = vpack.c.b16 %v1239, %v1235
        %v1476 = vpack.c.b16 %v1244, %v1240
        %v1477 = vpack.c.b16 %v1245, %v1241
        %v1478 = vpack.c.b16 %v1246, %v1242
        %v1479 = vpack.c.b16 %v1247, %v1243
        %v1480 = vpack.c.b16 %v1252, %v1248
        %v1481 = vpack.c.b16 %v1253, %v1249
        %v1482 = vpack.c.b16 %v1254, %v1250
        %v1483 = vpack.c.b16 %v1255, %v1251
        %v1484 = vpack.c.b16 %v1260, %v1256
        %v1485 = vpack.c.b16 %v1261, %v1257
        %v1486 = vpack.c.b16 %v1262, %v1258
        %v1487 = vpack.c.b16 %v1263, %v1259
        %v1488 = vpack.c.b16 %v1268, %v1264
        %v1489 = vpack.c.b16 %v1269, %v1265
        %v1490 = vpack.c.b16 %v1270, %v1266
        %v1491 = vpack.c.b16 %v1271, %v1267
        %v1492 = vpack.c.b16 %v1276, %v1272
        %v1493 = vpack.c.b16 %v1277, %v1273
        %v1494 = vpack.c.b16 %v1278, %v1274
        %v1495 = vpack.c.b16 %v1279, %v1275
        %v1496 = vpack.c.b16 %v1284, %v1280
        %v1497 = vpack.c.b16 %v1285, %v1281
        %v1498 = vpack.c.b16 %v1286, %v1282
        %v1499 = vpack.c.b16 %v1287, %v1283
        %v1500 = vpack.c.b16 %v1292, %v1288
        %v1501 = vpack.c.b16 %v1293, %v1289
        %v1502 = vpack.c.b16 %v1294, %v1290
        %v1503 = vpack.c.b16 %v1295, %v1291
        %v1504 = vpack.c.b16 %v1300, %v1296
        %v1505 = vpack.c.b16 %v1301, %v1297
        %v1506 = vpack.c.b16 %v1302, %v1298
        %v1507 = vpack.c.b16 %v1303, %v1299
        %v1508 = vpack.c.b16 %v1308, %v1304
        %v1509 = vpack.c.b16 %v1309, %v1305
        %v1510 = vpack.c.b16 %v1310, %v1306
        %v1511 = vpack.c.b16 %v1311, %v1307
        %v1512 = vpack.c.b16 %v1316, %v1312
        %v1513 = vpack.c.b16 %v1317, %v1313
        %v1514 = vpack.c.b16 %v1318, %v1314
        %v1515 = vpack.c.b16 %v1319, %v1315
        %vm1712 = vcmask 130048
        %v1714 = vsel %vm1712, %v712, 0
        %v1717 = vsel %vm1712, %v719, 0
        %1719 = vmatprep.subr.bf16.mxu0 %v1321
        %1720 = vmatpush1.bf16.msra.mxu0 %v1320
        %1721 = vmatprep.subr.bf16.mxu0 %v1325
        %1722 = vmatpush1.bf16.msra.mxu0 %v1324
        %1723 = vmatprep.subr.bf16.mxu0 %v1329
        %1724 = vmatpush1.bf16.msra.mxu0 %v1328
        %1725 = vmatprep.subr.bf16.mxu0 %v1333
        %1726 = vmatpush1.bf16.msra.mxu0 %v1332
        %1727 = vmatprep.subr.bf16.mxu0 %v1337
        %1728 = vmatpush1.bf16.msra.mxu0 %v1336
        %1729 = vmatprep.subr.bf16.mxu0 %v1341
        %1730 = vmatpush1.bf16.msra.mxu0 %v1340
        %1731 = vmatprep.subr.bf16.mxu0 %v1345
        %1732 = vmatpush1.bf16.msra.mxu0 %v1344
        %1733 = vmatprep.subr.bf16.mxu0 %v1349
        %1734 = vmatpush1.bf16.msra.mxu0 %v1348
        %1735 = vmatprep.subr.bf16.mxu0 %v1353
        %1736 = vmatpush1.bf16.msra.mxu0 %v1352
        %1737 = vmatprep.subr.bf16.mxu0 %v1357
        %1738 = vmatpush1.bf16.msra.mxu0 %v1356
        %1739 = vmatprep.subr.bf16.mxu0 %v1361
        %1740 = vmatpush1.bf16.msra.mxu0 %v1360
        %1741 = vmatprep.subr.bf16.mxu0 %v1365
        %1742 = vmatpush1.bf16.msra.mxu0 %v1364
        %1743 = vmatprep.subr.bf16.mxu0 %v1369
        %1744 = vmatpush1.bf16.msra.mxu0 %v1368
        %1745 = vmatprep.subr.bf16.mxu0 %v1373
        %1746 = vmatpush1.bf16.msra.mxu0 %v1372
        %1747 = vmatprep.subr.bf16.mxu0 %v1377
        %1748 = vmatpush1.bf16.msra.mxu0 %v1376
        %1749 = vmatprep.subr.bf16.mxu0 %v1381
        %1750 = vmatpush1.bf16.msra.mxu0 %v1380
        %1751 = vmatprep.mubr.bf16.mxu0 %v707
        %1752 = vmatmul.mubr.bf16.gmra.mrb[0].mxu0 %v706
        %v1753 = vpop.f32.mrb[0].mxu0
        %v1754 = vadd.f32 %v645, %v1753
        %v1755 = vpop.f32.mrb[0].mxu0
        %v1756 = vadd.f32 %v649, %v1755
        %v1757 = vpop.f32.mrb[0].mxu0
        %v1758 = vadd.f32 %v645, %v1757
        %v1759 = vpop.f32.mrb[0].mxu0
        %v1760 = vadd.f32 %v649, %v1759
        %1761 = vmatprep.mubr.bf16.mxu0 %v714
        %1762 = vmatmul.mubr.bf16.gmra.mrb[0].mxu0 %v713
        %v1763 = vpop.f32.mrb[0].mxu0
        %v1764 = vadd.f32 %v645, %v1763
        %v1765 = vpop.f32.mrb[0].mxu0
        %v1766 = vadd.f32 %v649, %v1765
        %v1767 = vpop.f32.mrb[0].mxu0
        %v1768 = vadd.f32 %v645, %v1767
        %v1769 = vpop.f32.mrb[0].mxu0
        %v1770 = vadd.f32 %v649, %v1769
        %1771 = vdwg.mxu0
        %1772 = vmatprep.subr.bf16.mxu0 %v1385
        %1773 = vmatpush1.bf16.msra.mxu0 %v1384
        %1774 = vmatprep.subr.bf16.mxu0 %v1389
        %1775 = vmatpush1.bf16.msra.mxu0 %v1388
        %1776 = vmatprep.subr.bf16.mxu0 %v1393
        %1777 = vmatpush1.bf16.msra.mxu0 %v1392
        %1778 = vmatprep.subr.bf16.mxu0 %v1397
        %1779 = vmatpush1.bf16.msra.mxu0 %v1396
        %1780 = vmatprep.subr.bf16.mxu0 %v1401
        %1781 = vmatpush1.bf16.msra.mxu0 %v1400
        %1782 = vmatprep.subr.bf16.mxu0 %v1405
        %1783 = vmatpush1.bf16.msra.mxu0 %v1404
        %1784 = vmatprep.subr.bf16.mxu0 %v1409
        %1785 = vmatpush1.bf16.msra.mxu0 %v1408
        %1786 = vmatprep.subr.bf16.mxu0 %v1413
        %1787 = vmatpush1.bf16.msra.mxu0 %v1412
        %1788 = vmatprep.subr.bf16.mxu0 %v1417
        %1789 = vmatpush1.bf16.msra.mxu0 %v1416
        %1790 = vmatprep.subr.bf16.mxu0 %v1421
        %1791 = vmatpush1.bf16.msra.mxu0 %v1420
        %1792 = vmatprep.subr.bf16.mxu0 %v1425
        %1793 = vmatpush1.bf16.msra.mxu0 %v1424
        %1794 = vmatprep.subr.bf16.mxu0 %v1429
        %1795 = vmatpush1.bf16.msra.mxu0 %v1428
        %1796 = vmatprep.subr.bf16.mxu0 %v1433
        %1797 = vmatpush1.bf16.msra.mxu0 %v1432
        %1798 = vmatprep.subr.bf16.mxu0 %v1437
        %1799 = vmatpush1.bf16.msra.mxu0 %v1436
        %1800 = vmatprep.subr.bf16.mxu0 %v1441
        %1801 = vmatpush1.bf16.msra.mxu0 %v1440
        %1802 = vmatprep.subr.bf16.mxu0 %v1445
        %1803 = vmatpush1.bf16.msra.mxu0 %v1444
        %1804 = vmatprep.mubr.bf16.mxu0 %v709
        %1805 = vmatmul.mubr.bf16.gmra.mrb[0].mxu0 %v708
        %v1806 = vpop.f32.mrb[0].mxu0
        %v1807 = vadd.f32 %v1754, %v1806
        %v1808 = vpop.f32.mrb[0].mxu0
        %v1809 = vadd.f32 %v1756, %v1808
        %v1810 = vpop.f32.mrb[0].mxu0
        %v1811 = vadd.f32 %v1758, %v1810
        %v1812 = vpop.f32.mrb[0].mxu0
        %v1813 = vadd.f32 %v1760, %v1812
        %1814 = vmatprep.mubr.bf16.mxu0 %v716
        %1815 = vmatmul.mubr.bf16.gmra.mrb[0].mxu0 %v715
        %v1816 = vpop.f32.mrb[0].mxu0
        %v1817 = vadd.f32 %v1764, %v1816
        %v1818 = vpop.f32.mrb[0].mxu0
        %v1819 = vadd.f32 %v1766, %v1818
        %v1820 = vpop.f32.mrb[0].mxu0
        %v1821 = vadd.f32 %v1768, %v1820
        %v1822 = vpop.f32.mrb[0].mxu0
        %v1823 = vadd.f32 %v1770, %v1822
        %1824 = vdwg.mxu0
        %1825 = vmatprep.subr.bf16.mxu0 %v1449
        %1826 = vmatpush1.bf16.msra.mxu0 %v1448
        %1827 = vmatprep.subr.bf16.mxu0 %v1453
        %1828 = vmatpush1.bf16.msra.mxu0 %v1452
        %1829 = vmatprep.subr.bf16.mxu0 %v1457
        %1830 = vmatpush1.bf16.msra.mxu0 %v1456
        %1831 = vmatprep.subr.bf16.mxu0 %v1461
        %1832 = vmatpush1.bf16.msra.mxu0 %v1460
        %1833 = vmatprep.subr.bf16.mxu0 %v1465
        %1834 = vmatpush1.bf16.msra.mxu0 %v1464
        %1835 = vmatprep.subr.bf16.mxu0 %v1469
        %1836 = vmatpush1.bf16.msra.mxu0 %v1468
        %1837 = vmatprep.subr.bf16.mxu0 %v1473
        %1838 = vmatpush1.bf16.msra.mxu0 %v1472
        %1839 = vmatprep.subr.bf16.mxu0 %v1477
        %1840 = vmatpush1.bf16.msra.mxu0 %v1476
        %1841 = vmatprep.subr.bf16.mxu0 %v1481
        %1842 = vmatpush1.bf16.msra.mxu0 %v1480
        %1843 = vmatprep.subr.bf16.mxu0 %v1485
        %1844 = vmatpush1.bf16.msra.mxu0 %v1484
        %1845 = vmatprep.subr.bf16.mxu0 %v1489
        %1846 = vmatpush1.bf16.msra.mxu0 %v1488
        %1847 = vmatprep.subr.bf16.mxu0 %v1493
        %1848 = vmatpush1.bf16.msra.mxu0 %v1492
        %1849 = vmatprep.subr.bf16.mxu0 %v1497
        %1850 = vmatpush1.bf16.msra.mxu0 %v1496
        %1851 = vmatprep.subr.bf16.mxu0 %v1501
        %1852 = vmatpush1.bf16.msra.mxu0 %v1500
        %1853 = vmatprep.subr.bf16.mxu0 %v1505
        %1854 = vmatpush1.bf16.msra.mxu0 %v1504
        %1855 = vmatprep.subr.bf16.mxu0 %v1509
        %1856 = vmatpush1.bf16.msra.mxu0 %v1508
        %1857 = vmatprep.mubr.bf16.mxu0 %v711
        %1858 = vmatmul.mubr.bf16.gmra.mrb[0].mxu0 %v710
        %v1859 = vpop.f32.mrb[0].mxu0
        %v1860 = vadd.f32 %v1807, %v1859
        %v1861 = vpop.f32.mrb[0].mxu0
        %v1862 = vadd.f32 %v1809, %v1861
        %v1863 = vpop.f32.mrb[0].mxu0
        %v1864 = vadd.f32 %v1811, %v1863
        %v1865 = vpop.f32.mrb[0].mxu0
        %v1866 = vadd.f32 %v1813, %v1865
        %1867 = vmatprep.mubr.bf16.mxu0 %v718
        %1868 = vmatmul.mubr.bf16.gmra.mrb[0].mxu0 %v717
        %v1869 = vpop.f32.mrb[0].mxu0
        %v1870 = vadd.f32 %v1817, %v1869
        %v1871 = vpop.f32.mrb[0].mxu0
        %v1872 = vadd.f32 %v1819, %v1871
        %v1873 = vpop.f32.mrb[0].mxu0
        %v1874 = vadd.f32 %v1821, %v1873
        %v1875 = vpop.f32.mrb[0].mxu0
        %v1876 = vadd.f32 %v1823, %v1875
        %1877 = vdwg.mxu0
        %1878 = vmatprep.subr.bf16.mxu0 %v1513
        %1879 = vmatpush1.bf16.msra.mxu0 %v1512
        %1880 = vmatprep.subr.bf16.mxu0 0
        %1881 = vmatpush1.bf16.msra.mxu0 0
        %1882 = vmatprep.subr.bf16.mxu0 0
        %1883 = vmatpush1.bf16.msra.mxu0 0
        %1884 = vmatprep.subr.bf16.mxu0 0
        %1885 = vmatpush1.bf16.msra.mxu0 0
        %1886 = vmatprep.subr.bf16.mxu0 0
        %1887 = vmatpush1.bf16.msra.mxu0 0
        %1888 = vmatprep.subr.bf16.mxu0 0
        %1889 = vmatpush1.bf16.msra.mxu0 0
        %1890 = vmatprep.subr.bf16.mxu0 0
        %1891 = vmatpush1.bf16.msra.mxu0 0
        %1892 = vmatprep.subr.bf16.mxu0 0
        %1893 = vmatpush1.bf16.msra.mxu0 0
        %1894 = vmatprep.subr.bf16.mxu0 0
        %1895 = vmatpush1.bf16.msra.mxu0 0
        %1896 = vmatprep.subr.bf16.mxu0 0
        %1897 = vmatpush1.bf16.msra.mxu0 0
        %1898 = vmatprep.subr.bf16.mxu0 0
        %1899 = vmatpush1.bf16.msra.mxu0 0
        %1900 = vmatprep.subr.bf16.mxu0 0
        %1901 = vmatpush1.bf16.msra.mxu0 0
        %1902 = vmatprep.subr.bf16.mxu0 0
        %1903 = vmatpush1.bf16.msra.mxu0 0
        %1904 = vmatprep.subr.bf16.mxu0 0
        %1905 = vmatpush1.bf16.msra.mxu0 0
        %1906 = vmatprep.subr.bf16.mxu0 0
        %1907 = vmatpush1.bf16.msra.mxu0 0
        %1908 = vmatprep.subr.bf16.mxu0 0
        %1909 = vmatpush1.bf16.msra.mxu0 0
        %1910 = vmatprep.mubr.bf16.mxu0 0
        %1911 = vmatmul.mubr.bf16.gmra.mrb[0].mxu0 %v1714
        %v1912 = vpop.f32.mrb[0].mxu0
        %v1913 = vadd.f32 %v1860, %v1912
        %v1914 = vpop.f32.mrb[0].mxu0
        %v1915 = vadd.f32 %v1862, %v1914
        %v1916 = vpop.f32.mrb[0].mxu0
        %v1917 = vadd.f32 %v1864, %v1916
        %v1918 = vpop.f32.mrb[0].mxu0
        %v1919 = vadd.f32 %v1866, %v1918
        %1920 = vmatprep.mubr.bf16.mxu0 0
        %1921 = vmatmul.mubr.bf16.gmra.mrb[0].mxu0 %v1717
        %v1922 = vpop.f32.mrb[0].mxu0
        %v1923 = vadd.f32 %v1870, %v1922
        %v1924 = vpop.f32.mrb[0].mxu0
        %v1925 = vadd.f32 %v1872, %v1924
        %v1926 = vpop.f32.mrb[0].mxu0
        %v1927 = vadd.f32 %v1874, %v1926
        %v1928 = vpop.f32.mrb[0].mxu0
        %v1929 = vadd.f32 %v1876, %v1928
        %1930 = vdwg.mxu0
        %1931 = vmatprep.subr.bf16.mxu0 %v1323
        %1932 = vmatpush1.bf16.msra.mxu0 %v1322
        %1933 = vmatprep.subr.bf16.mxu0 %v1327
        %1934 = vmatpush1.bf16.msra.mxu0 %v1326
        %1935 = vmatprep.subr.bf16.mxu0 %v1331
        %1936 = vmatpush1.bf16.msra.mxu0 %v1330
        %1937 = vmatprep.subr.bf16.mxu0 %v1335
        %1938 = vmatpush1.bf16.msra.mxu0 %v1334
        %1939 = vmatprep.subr.bf16.mxu0 %v1339
        %1940 = vmatpush1.bf16.msra.mxu0 %v1338
        %1941 = vmatprep.subr.bf16.mxu0 %v1343
        %1942 = vmatpush1.bf16.msra.mxu0 %v1342
        %1943 = vmatprep.subr.bf16.mxu0 %v1347
        %1944 = vmatpush1.bf16.msra.mxu0 %v1346
        %1945 = vmatprep.subr.bf16.mxu0 %v1351
        %1946 = vmatpush1.bf16.msra.mxu0 %v1350
        %1947 = vmatprep.subr.bf16.mxu0 %v1355
        %1948 = vmatpush1.bf16.msra.mxu0 %v1354
        %1949 = vmatprep.subr.bf16.mxu0 %v1359
        %1950 = vmatpush1.bf16.msra.mxu0 %v1358
        %1951 = vmatprep.subr.bf16.mxu0 %v1363
        %1952 = vmatpush1.bf16.msra.mxu0 %v1362
        %1953 = vmatprep.subr.bf16.mxu0 %v1367
        %1954 = vmatpush1.bf16.msra.mxu0 %v1366
        %1955 = vmatprep.subr.bf16.mxu0 %v1371
        %1956 = vmatpush1.bf16.msra.mxu0 %v1370
        %1957 = vmatprep.subr.bf16.mxu0 %v1375
        %1958 = vmatpush1.bf16.msra.mxu0 %v1374
        %1959 = vmatprep.subr.bf16.mxu0 %v1379
        %1960 = vmatpush1.bf16.msra.mxu0 %v1378
        %1961 = vmatprep.subr.bf16.mxu0 %v1383
        %1962 = vmatpush1.bf16.msra.mxu0 %v1382
        %1963 = vmatprep.mubr.bf16.mxu0 %v707
        %1964 = vmatmul.mubr.bf16.gmra.mrb[0].mxu0 %v706
        %v1965 = vpop.f32.mrb[0].mxu0
        %v1966 = vadd.f32 %v653, %v1965
        %v1967 = vpop.f32.mrb[0].mxu0
        %v1968 = vadd.f32 %v657, %v1967
        %v1969 = vpop.f32.mrb[0].mxu0
        %v1970 = vadd.f32 %v653, %v1969
        %v1971 = vpop.f32.mrb[0].mxu0
        %v1972 = vadd.f32 %v657, %v1971
        %1973 = vmatprep.mubr.bf16.mxu0 %v714
        %1974 = vmatmul.mubr.bf16.gmra.mrb[0].mxu0 %v713
        %v1975 = vpop.f32.mrb[0].mxu0
        %v1976 = vadd.f32 %v653, %v1975
        %v1977 = vpop.f32.mrb[0].mxu0
        %v1978 = vadd.f32 %v657, %v1977
        %v1979 = vpop.f32.mrb[0].mxu0
        %v1980 = vadd.f32 %v653, %v1979
        %v1981 = vpop.f32.mrb[0].mxu0
        %v1982 = vadd.f32 %v657, %v1981
        %1983 = vdwg.mxu0
        %1984 = vmatprep.subr.bf16.mxu0 %v1387
        %1985 = vmatpush1.bf16.msra.mxu0 %v1386
        %1986 = vmatprep.subr.bf16.mxu0 %v1391
        %1987 = vmatpush1.bf16.msra.mxu0 %v1390
        %1988 = vmatprep.subr.bf16.mxu0 %v1395
        %1989 = vmatpush1.bf16.msra.mxu0 %v1394
        %1990 = vmatprep.subr.bf16.mxu0 %v1399
        %1991 = vmatpush1.bf16.msra.mxu0 %v1398
        %1992 = vmatprep.subr.bf16.mxu0 %v1403
        %1993 = vmatpush1.bf16.msra.mxu0 %v1402
        %1994 = vmatprep.subr.bf16.mxu0 %v1407
        %1995 = vmatpush1.bf16.msra.mxu0 %v1406
        %1996 = vmatprep.subr.bf16.mxu0 %v1411
        %1997 = vmatpush1.bf16.msra.mxu0 %v1410
        %1998 = vmatprep.subr.bf16.mxu0 %v1415
        %1999 = vmatpush1.bf16.msra.mxu0 %v1414
        %2000 = vmatprep.subr.bf16.mxu0 %v1419
        %2001 = vmatpush1.bf16.msra.mxu0 %v1418
        %2002 = vmatprep.subr.bf16.mxu0 %v1423
        %2003 = vmatpush1.bf16.msra.mxu0 %v1422
        %2004 = vmatprep.subr.bf16.mxu0 %v1427
        %2005 = vmatpush1.bf16.msra.mxu0 %v1426
        %2006 = vmatprep.subr.bf16.mxu0 %v1431
        %2007 = vmatpush1.bf16.msra.mxu0 %v1430
        %2008 = vmatprep.subr.bf16.mxu0 %v1435
        %2009 = vmatpush1.bf16.msra.mxu0 %v1434
        %2010 = vmatprep.subr.bf16.mxu0 %v1439
        %2011 = vmatpush1.bf16.msra.mxu0 %v1438
        %2012 = vmatprep.subr.bf16.mxu0 %v1443
        %2013 = vmatpush1.bf16.msra.mxu0 %v1442
        %2014 = vmatprep.subr.bf16.mxu0 %v1447
        %2015 = vmatpush1.bf16.msra.mxu0 %v1446
        %2016 = vmatprep.mubr.bf16.mxu0 %v709
        %2017 = vmatmul.mubr.bf16.gmra.mrb[0].mxu0 %v708
        %v2018 = vpop.f32.mrb[0].mxu0
        %v2019 = vadd.f32 %v1966, %v2018
        %v2020 = vpop.f32.mrb[0].mxu0
        %v2021 = vadd.f32 %v1968, %v2020
        %v2022 = vpop.f32.mrb[0].mxu0
        %v2023 = vadd.f32 %v1970, %v2022
        %v2024 = vpop.f32.mrb[0].mxu0
        %v2025 = vadd.f32 %v1972, %v2024
        %2026 = vmatprep.mubr.bf16.mxu0 %v716
        %2027 = vmatmul.mubr.bf16.gmra.mrb[0].mxu0 %v715
        %v2028 = vpop.f32.mrb[0].mxu0
        %v2029 = vadd.f32 %v1976, %v2028
        %v2030 = vpop.f32.mrb[0].mxu0
        %v2031 = vadd.f32 %v1978, %v2030
        %v2032 = vpop.f32.mrb[0].mxu0
        %v2033 = vadd.f32 %v1980, %v2032
        %v2034 = vpop.f32.mrb[0].mxu0
        %v2035 = vadd.f32 %v1982, %v2034
        %2036 = vdwg.mxu0
        %2037 = vmatprep.subr.bf16.mxu0 %v1451
        %2038 = vmatpush1.bf16.msra.mxu0 %v1450
        %2039 = vmatprep.subr.bf16.mxu0 %v1455
        %2040 = vmatpush1.bf16.msra.mxu0 %v1454
        %2041 = vmatprep.subr.bf16.mxu0 %v1459
        %2042 = vmatpush1.bf16.msra.mxu0 %v1458
        %2043 = vmatprep.subr.bf16.mxu0 %v1463
        %2044 = vmatpush1.bf16.msra.mxu0 %v1462
        %2045 = vmatprep.subr.bf16.mxu0 %v1467
        %2046 = vmatpush1.bf16.msra.mxu0 %v1466
        %2047 = vmatprep.subr.bf16.mxu0 %v1471
        %2048 = vmatpush1.bf16.msra.mxu0 %v1470
        %2049 = vmatprep.subr.bf16.mxu0 %v1475
        %2050 = vmatpush1.bf16.msra.mxu0 %v1474
        %2051 = vmatprep.subr.bf16.mxu0 %v1479
        %2052 = vmatpush1.bf16.msra.mxu0 %v1478
        %2053 = vmatprep.subr.bf16.mxu0 %v1483
        %2054 = vmatpush1.bf16.msra.mxu0 %v1482
        %2055 = vmatprep.subr.bf16.mxu0 %v1487
        %2056 = vmatpush1.bf16.msra.mxu0 %v1486
        %2057 = vmatprep.subr.bf16.mxu0 %v1491
        %2058 = vmatpush1.bf16.msra.mxu0 %v1490
        %2059 = vmatprep.subr.bf16.mxu0 %v1495
        %2060 = vmatpush1.bf16.msra.mxu0 %v1494
        %2061 = vmatprep.subr.bf16.mxu0 %v1499
        %2062 = vmatpush1.bf16.msra.mxu0 %v1498
        %2063 = vmatprep.subr.bf16.mxu0 %v1503
        %2064 = vmatpush1.bf16.msra.mxu0 %v1502
        %2065 = vmatprep.subr.bf16.mxu0 %v1507
        %2066 = vmatpush1.bf16.msra.mxu0 %v1506
        %2067 = vmatprep.subr.bf16.mxu0 %v1511
        %2068 = vmatpush1.bf16.msra.mxu0 %v1510
        %2069 = vmatprep.mubr.bf16.mxu0 %v711
        %2070 = vmatmul.mubr.bf16.gmra.mrb[0].mxu0 %v710
        %v2071 = vpop.f32.mrb[0].mxu0
        %v2072 = vadd.f32 %v2019, %v2071
        %v2073 = vpop.f32.mrb[0].mxu0
        %v2074 = vadd.f32 %v2021, %v2073
        %v2075 = vpop.f32.mrb[0].mxu0
        %v2076 = vadd.f32 %v2023, %v2075
        %v2077 = vpop.f32.mrb[0].mxu0
        %v2078 = vadd.f32 %v2025, %v2077
        %2079 = vmatprep.mubr.bf16.mxu0 %v718
        %2080 = vmatmul.mubr.bf16.gmra.mrb[0].mxu0 %v717
        %v2081 = vpop.f32.mrb[0].mxu0
        %v2082 = vadd.f32 %v2029, %v2081
        %v2083 = vpop.f32.mrb[0].mxu0
        %v2084 = vadd.f32 %v2031, %v2083
        %v2085 = vpop.f32.mrb[0].mxu0
        %v2086 = vadd.f32 %v2033, %v2085
        %v2087 = vpop.f32.mrb[0].mxu0
        %v2088 = vadd.f32 %v2035, %v2087
        %2089 = vdwg.mxu0
        %2090 = vmatprep.subr.bf16.mxu0 %v1515
        %2091 = vmatpush1.bf16.msra.mxu0 %v1514
        %2092 = vmatprep.subr.bf16.mxu0 0
        %2093 = vmatpush1.bf16.msra.mxu0 0
        %2094 = vmatprep.subr.bf16.mxu0 0
        %2095 = vmatpush1.bf16.msra.mxu0 0
        %2096 = vmatprep.subr.bf16.mxu0 0
        %2097 = vmatpush1.bf16.msra.mxu0 0
        %2098 = vmatprep.subr.bf16.mxu0 0
        %2099 = vmatpush1.bf16.msra.mxu0 0
        %2100 = vmatprep.subr.bf16.mxu0 0
        %2101 = vmatpush1.bf16.msra.mxu0 0
        %2102 = vmatprep.subr.bf16.mxu0 0
        %2103 = vmatpush1.bf16.msra.mxu0 0
        %2104 = vmatprep.subr.bf16.mxu0 0
        %2105 = vmatpush1.bf16.msra.mxu0 0
        %2106 = vmatprep.subr.bf16.mxu0 0
        %2107 = vmatpush1.bf16.msra.mxu0 0
        %2108 = vmatprep.subr.bf16.mxu0 0
        %2109 = vmatpush1.bf16.msra.mxu0 0
        %2110 = vmatprep.subr.bf16.mxu0 0
        %2111 = vmatpush1.bf16.msra.mxu0 0
        %2112 = vmatprep.subr.bf16.mxu0 0
        %2113 = vmatpush1.bf16.msra.mxu0 0
        %2114 = vmatprep.subr.bf16.mxu0 0
        %2115 = vmatpush1.bf16.msra.mxu0 0
        %2116 = vmatprep.subr.bf16.mxu0 0
        %2117 = vmatpush1.bf16.msra.mxu0 0
        %2118 = vmatprep.subr.bf16.mxu0 0
        %2119 = vmatpush1.bf16.msra.mxu0 0
        %2120 = vmatprep.subr.bf16.mxu0 0
        %2121 = vmatpush1.bf16.msra.mxu0 0
        %2122 = vmatprep.mubr.bf16.mxu0 0
        %2123 = vmatmul.mubr.bf16.gmra.mrb[0].mxu0 %v1714
        %v2124 = vpop.f32.mrb[0].mxu0
        %v2125 = vadd.f32 %v2072, %v2124
        %v2126 = vpop.f32.mrb[0].mxu0
        %v2127 = vadd.f32 %v2074, %v2126
        %v2128 = vpop.f32.mrb[0].mxu0
        %v2129 = vadd.f32 %v2076, %v2128
        %v2130 = vpop.f32.mrb[0].mxu0
        %v2131 = vadd.f32 %v2078, %v2130
        %2132 = vmatprep.mubr.bf16.mxu0 0
        %2133 = vmatmul.mubr.bf16.gmra.mrb[0].mxu0 %v1717
        %v2134 = vpop.f32.mrb[0].mxu0
        %v2135 = vadd.f32 %v2082, %v2134
        %v2136 = vpop.f32.mrb[0].mxu0
        %v2137 = vadd.f32 %v2084, %v2136
        %v2138 = vpop.f32.mrb[0].mxu0
        %v2139 = vadd.f32 %v2086, %v2138
        %v2140 = vpop.f32.mrb[0].mxu0
        %v2141 = vadd.f32 %v2088, %v2140
        %2142 = vdwg.mxu0
        %v2143 = vmax.f32 %v1913, 0.0
        %v2144 = vmax.f32 %v1915, 0.0
        %v2145 = vmax.f32 %v2125, 0.0
        %v2146 = vmax.f32 %v2127, 0.0
        %v2147 = vmax.f32 %v1917, 0.0
        %v2148 = vmax.f32 %v1919, 0.0
        %v2149 = vmax.f32 %v2129, 0.0
        %v2150 = vmax.f32 %v2131, 0.0
        %v2151 = vmax.f32 %v1923, 0.0
        %v2152 = vmax.f32 %v1925, 0.0
        %v2153 = vmax.f32 %v2135, 0.0
        %v2154 = vmax.f32 %v2137, 0.0
        %v2155 = vmax.f32 %v1927, 0.0
        %v2156 = vmax.f32 %v1929, 0.0
        %v2157 = vmax.f32 %v2139, 0.0
        %v2158 = vmax.f32 %v2141, 0.0
        %v2159 = vpack.c.bf16 %v2147, %v2143
        %v2160 = vpack.c.bf16 %v2148, %v2144
        %v2161 = vpack.c.bf16 %v2149, %v2145
        %v2162 = vpack.c.bf16 %v2150, %v2146
        %v2163 = vpack.c.bf16 %v2155, %v2151
        %v2164 = vpack.c.bf16 %v2156, %v2152
        %v2165 = vpack.c.bf16 %v2157, %v2153
        %v2166 = vpack.c.bf16 %v2158, %v2154
        %v2167 = vld [vmem:[%s4] sm:$0xf]
        %v2168 = vld [vmem:[%s4 + $0x4] sm:$0xf]
        %v2169 = vld [vmem:[%s4 + $0x8] sm:$0xf]
        %v2170 = vld [vmem:[%s4 + $0xc] sm:$0xf]
        %v2171 = vld [vmem:[%s4 + $0x10] sm:$0xf]
        %v2172 = vld [vmem:[%s4 + $0x14] sm:$0xf]
        %v2173 = vld [vmem:[%s4 + $0x18] sm:$0xf]
        %v2174 = vld [vmem:[%s4 + $0x1c] sm:$0xf]
        %v2175 = vld [vmem:[%s4 + $0x20] sm:$0xf]
        %v2176 = vld [vmem:[%s4 + $0x24] sm:$0xf]
        %v2177 = vld [vmem:[%s4 + $0x28] sm:$0xf]
        %v2178 = vld [vmem:[%s4 + $0x2c] sm:$0xf]
        %v2179 = vld [vmem:[%s4 + $0x30] sm:$0xf]
        %v2180 = vld [vmem:[%s4 + $0x34] sm:$0xf]
        %v2181 = vld [vmem:[%s4 + $0x38] sm:$0xf]
        %v2182 = vld [vmem:[%s4 + $0x3c] sm:$0xf]
        %v2183 = vld [vmem:[%s4 + $0x40] sm:$0xf]
        %v2184 = vld [vmem:[%s4 + $0x44] sm:$0xf]
        %v2185 = vld [vmem:[%s4 + $0x48] sm:$0xf]
        %v2186 = vld [vmem:[%s4 + $0x4c] sm:$0xf]
        %v2187 = vld [vmem:[%s4 + $0x50] sm:$0xf]
        %v2188 = vld [vmem:[%s4 + $0x54] sm:$0xf]
        %v2189 = vld [vmem:[%s4 + $0x58] sm:$0xf]
        %v2190 = vld [vmem:[%s4 + $0x5c] sm:$0xf]
        %v2191 = vld [vmem:[%s4 + $0x60] sm:$0xf]
        %v2192 = vld [vmem:[%s4 + $0x64] sm:$0xf]
        %v2193 = vld [vmem:[%s4 + $0x68] sm:$0xf]
        %v2194 = vld [vmem:[%s4 + $0x6c] sm:$0xf]
        %v2195 = vld [vmem:[%s4 + $0x70] sm:$0xf]
        %v2196 = vld [vmem:[%s4 + $0x74] sm:$0xf]
        %v2197 = vld [vmem:[%s4 + $0x78] sm:$0xf]
        %v2198 = vld [vmem:[%s4 + $0x7c] sm:$0xf]
        %v2199 = vld [vmem:[%s4 + $0x80] sm:$0xf]
        %v2200 = vld [vmem:[%s4 + $0x84] sm:$0xf]
        %v2201 = vld [vmem:[%s4 + $0x88] sm:$0xf]
        %v2202 = vld [vmem:[%s4 + $0x8c] sm:$0xf]
        %v2203 = vld [vmem:[%s4 + $0x90] sm:$0xf]
        %v2204 = vld [vmem:[%s4 + $0x94] sm:$0xf]
        %v2205 = vld [vmem:[%s4 + $0x98] sm:$0xf]
        %v2206 = vld [vmem:[%s4 + $0x9c] sm:$0xf]
        %v2207 = vld [vmem:[%s4 + $0xa0] sm:$0xf]
        %v2208 = vld [vmem:[%s4 + $0xa4] sm:$0xf]
        %v2209 = vld [vmem:[%s4 + $0xa8] sm:$0xf]
        %v2210 = vld [vmem:[%s4 + $0xac] sm:$0xf]
        %v2211 = vld [vmem:[%s4 + $0xb0] sm:$0xf]
        %v2212 = vld [vmem:[%s4 + $0xb4] sm:$0xf]
        %v2213 = vld [vmem:[%s4 + $0xb8] sm:$0xf]
        %v2214 = vld [vmem:[%s4 + $0xbc] sm:$0xf]
        %v2215 = vld [vmem:[%s4 + $0xc0] sm:$0xf]
        %v2216 = vld [vmem:[%s4 + $0xc4] sm:$0xf]
        %v2217 = vld [vmem:[%s5] sm:$0x1]
        %v2219 = vlaneseq
        %v2220 = vshrl.u32 %v2219, 7
        %v2221 = vsub.s32 0, %v2220
        %v2222 = vrot.slane %v2217, %v2221
        %v2274 = vunpack.c.l.b16 %v2167
        %v2275 = vunpack.c.l.b16 %v2168
        %v2276 = vunpack.c.l.b16 %v2169
        %v2277 = vunpack.c.l.b16 %v2170
        %v2278 = vunpack.c.l.b16 %v2171
        %v2279 = vunpack.c.l.b16 %v2172
        %v2280 = vunpack.c.l.b16 %v2173
        %v2281 = vunpack.c.l.b16 %v2174
        %v2282 = vunpack.c.l.b16 %v2175
        %v2283 = vunpack.c.l.b16 %v2176
        %v2284 = vunpack.c.l.b16 %v2177
        %v2285 = vunpack.c.l.b16 %v2178
        %v2286 = vunpack.c.l.b16 %v2179
        %v2287 = vunpack.c.l.b16 %v2180
        %v2288 = vunpack.c.l.b16 %v2181
        %v2289 = vunpack.c.l.b16 %v2182
        %v2290 = vunpack.c.l.b16 %v2183
        %v2291 = vunpack.c.l.b16 %v2184
        %v2292 = vunpack.c.l.b16 %v2185
        %v2293 = vunpack.c.l.b16 %v2186
        %v2294 = vunpack.c.l.b16 %v2187
        %v2295 = vunpack.c.l.b16 %v2188
        %v2296 = vunpack.c.l.b16 %v2189
        %v2297 = vunpack.c.l.b16 %v2190
        %v2298 = vunpack.c.l.b16 %v2191
        %v2299 = vunpack.c.l.b16 %v2192
        %v2300 = vunpack.c.l.b16 %v2193
        %v2301 = vunpack.c.l.b16 %v2194
        %v2302 = vunpack.c.l.b16 %v2195
        %v2303 = vunpack.c.l.b16 %v2196
        %v2304 = vunpack.c.l.b16 %v2197
        %v2305 = vunpack.c.l.b16 %v2198
        %v2306 = vunpack.c.l.b16 %v2199
        %v2307 = vunpack.c.l.b16 %v2200
        %v2308 = vunpack.c.l.b16 %v2201
        %v2309 = vunpack.c.l.b16 %v2202
        %v2310 = vunpack.c.l.b16 %v2203
        %v2311 = vunpack.c.l.b16 %v2204
        %v2312 = vunpack.c.l.b16 %v2205
        %v2313 = vunpack.c.l.b16 %v2206
        %v2314 = vunpack.c.l.b16 %v2207
        %v2315 = vunpack.c.l.b16 %v2208
        %v2316 = vunpack.c.l.b16 %v2209
        %v2317 = vunpack.c.l.b16 %v2210
        %v2318 = vunpack.c.l.b16 %v2211
        %v2319 = vunpack.c.l.b16 %v2212
        %v2320 = vunpack.c.l.b16 %v2213
        %v2321 = vunpack.c.l.b16 %v2214
        %v2322 = vunpack.c.l.b16 %v2215
        %v2323 = vunpack.c.l.b16 %v2216
        %v2324 = vpack.c.b16 %v2275, %v2274
        %v2325 = vpack.c.b16 %v2277, %v2276
        %v2326 = vpack.c.b16 %v2279, %v2278
        %v2327 = vpack.c.b16 %v2281, %v2280
        %v2328 = vpack.c.b16 %v2283, %v2282
        %v2329 = vpack.c.b16 %v2285, %v2284
        %v2330 = vpack.c.b16 %v2287, %v2286
        %v2331 = vpack.c.b16 %v2289, %v2288
        %v2332 = vpack.c.b16 %v2291, %v2290
        %v2333 = vpack.c.b16 %v2293, %v2292
        %v2334 = vpack.c.b16 %v2295, %v2294
        %v2335 = vpack.c.b16 %v2297, %v2296
        %v2336 = vpack.c.b16 %v2299, %v2298
        %v2337 = vpack.c.b16 %v2301, %v2300
        %v2338 = vpack.c.b16 %v2303, %v2302
        %v2339 = vpack.c.b16 %v2305, %v2304
        %v2340 = vpack.c.b16 %v2307, %v2306
        %v2341 = vpack.c.b16 %v2309, %v2308
        %v2342 = vpack.c.b16 %v2311, %v2310
        %v2343 = vpack.c.b16 %v2313, %v2312
        %v2344 = vpack.c.b16 %v2315, %v2314
        %v2345 = vpack.c.b16 %v2317, %v2316
        %v2346 = vpack.c.b16 %v2319, %v2318
        %v2347 = vpack.c.b16 %v2321, %v2320
        %v2348 = vpack.c.b16 %v2323, %v2322
        %v2375 = vsel %vm1712, %v2162, 0
        %v2378 = vsel %vm1712, %v2166, 0
        %2380 = vmatprep.subr.bf16.mxu0 0
        %2381 = vmatpush1.bf16.msra.mxu0 %v2324
        %2382 = vmatprep.subr.bf16.mxu0 0
        %2383 = vmatpush1.bf16.msra.mxu0 %v2325
        %2384 = vmatprep.subr.bf16.mxu0 0
        %2385 = vmatpush1.bf16.msra.mxu0 %v2326
        %2386 = vmatprep.subr.bf16.mxu0 0
        %2387 = vmatpush1.bf16.msra.mxu0 %v2327
        %2388 = vmatprep.subr.bf16.mxu0 0
        %2389 = vmatpush1.bf16.msra.mxu0 %v2328
        %2390 = vmatprep.subr.bf16.mxu0 0
        %2391 = vmatpush1.bf16.msra.mxu0 %v2329
        %2392 = vmatprep.subr.bf16.mxu0 0
        %2393 = vmatpush1.bf16.msra.mxu0 %v2330
        %2394 = vmatprep.subr.bf16.mxu0 0
        %2395 = vmatpush1.bf16.msra.mxu0 %v2331
        %2396 = vmatprep.subr.bf16.mxu0 0
        %2397 = vmatpush1.bf16.msra.mxu0 %v2332
        %2398 = vmatprep.subr.bf16.mxu0 0
        %2399 = vmatpush1.bf16.msra.mxu0 %v2333
        %2400 = vmatprep.subr.bf16.mxu0 0
        %2401 = vmatpush1.bf16.msra.mxu0 %v2334
        %2402 = vmatprep.subr.bf16.mxu0 0
        %2403 = vmatpush1.bf16.msra.mxu0 %v2335
        %2404 = vmatprep.subr.bf16.mxu0 0
        %2405 = vmatpush1.bf16.msra.mxu0 %v2336
        %2406 = vmatprep.subr.bf16.mxu0 0
        %2407 = vmatpush1.bf16.msra.mxu0 %v2337
        %2408 = vmatprep.subr.bf16.mxu0 0
        %2409 = vmatpush1.bf16.msra.mxu0 %v2338
        %2410 = vmatprep.subr.bf16.mxu0 0
        %2411 = vmatpush1.bf16.msra.mxu0 %v2339
        %2412 = vmatprep.mubr.bf16.mxu0 %v2160
        %2413 = vmatmul.mubr.bf16.gmra.mrb[0].mxu0 %v2159
        %v2414 = vpop.f32.mrb[0].mxu0
        %v2415 = vadd.f32 %v2222, %v2414
        %v2416 = vpop.f32.mrb[0].mxu0
        %v2417 = vpop.f32.mrb[0].mxu0
        %v2418 = vadd.f32 %v2222, %v2417
        %v2419 = vpop.f32.mrb[0].mxu0
        %2420 = vmatprep.mubr.bf16.mxu0 %v2164
        %2421 = vmatmul.mubr.bf16.gmra.mrb[0].mxu0 %v2163
        %v2422 = vpop.f32.mrb[0].mxu0
        %v2423 = vadd.f32 %v2222, %v2422
        %v2424 = vpop.f32.mrb[0].mxu0
        %v2425 = vpop.f32.mrb[0].mxu0
        %v2426 = vadd.f32 %v2222, %v2425
        %v2427 = vpop.f32.mrb[0].mxu0
        %2428 = vdwg.mxu0
        %2429 = vmatprep.subr.bf16.mxu0 0
        %2430 = vmatpush1.bf16.msra.mxu0 %v2340
        %2431 = vmatprep.subr.bf16.mxu0 0
        %2432 = vmatpush1.bf16.msra.mxu0 %v2341
        %2433 = vmatprep.subr.bf16.mxu0 0
        %2434 = vmatpush1.bf16.msra.mxu0 %v2342
        %2435 = vmatprep.subr.bf16.mxu0 0
        %2436 = vmatpush1.bf16.msra.mxu0 %v2343
        %2437 = vmatprep.subr.bf16.mxu0 0
        %2438 = vmatpush1.bf16.msra.mxu0 %v2344
        %2439 = vmatprep.subr.bf16.mxu0 0
        %2440 = vmatpush1.bf16.msra.mxu0 %v2345
        %2441 = vmatprep.subr.bf16.mxu0 0
        %2442 = vmatpush1.bf16.msra.mxu0 %v2346
        %2443 = vmatprep.subr.bf16.mxu0 0
        %2444 = vmatpush1.bf16.msra.mxu0 %v2347
        %2445 = vmatprep.subr.bf16.mxu0 0
        %2446 = vmatpush1.bf16.msra.mxu0 %v2348
        %2447 = vmatprep.subr.bf16.mxu0 0
        %2448 = vmatpush1.bf16.msra.mxu0 0
        %2449 = vmatprep.subr.bf16.mxu0 0
        %2450 = vmatpush1.bf16.msra.mxu0 0
        %2451 = vmatprep.subr.bf16.mxu0 0
        %2452 = vmatpush1.bf16.msra.mxu0 0
        %2453 = vmatprep.subr.bf16.mxu0 0
        %2454 = vmatpush1.bf16.msra.mxu0 0
        %2455 = vmatprep.subr.bf16.mxu0 0
        %2456 = vmatpush1.bf16.msra.mxu0 0
        %2457 = vmatprep.subr.bf16.mxu0 0
        %2458 = vmatpush1.bf16.msra.mxu0 0
        %2459 = vmatprep.subr.bf16.mxu0 0
        %2460 = vmatpush1.bf16.msra.mxu0 0
        %2461 = vmatprep.mubr.bf16.mxu0 %v2375
        %2462 = vmatmul.mubr.bf16.gmra.mrb[0].mxu0 %v2161
        %v2463 = vpop.f32.mrb[0].mxu0
        %v2464 = vadd.f32 %v2415, %v2463
        %v2465 = vpop.f32.mrb[0].mxu0
        %v2466 = vpop.f32.mrb[0].mxu0
        %v2467 = vadd.f32 %v2418, %v2466
        %v2468 = vpop.f32.mrb[0].mxu0
        %2469 = vmatprep.mubr.bf16.mxu0 %v2378
        %2470 = vmatmul.mubr.bf16.gmra.mrb[0].mxu0 %v2165
        %v2471 = vpop.f32.mrb[0].mxu0
        %v2472 = vadd.f32 %v2423, %v2471
        %v2473 = vpop.f32.mrb[0].mxu0
        %v2474 = vpop.f32.mrb[0].mxu0
        %v2475 = vadd.f32 %v2426, %v2474
        %v2476 = vpop.f32.mrb[0].mxu0
        %2477 = vdwg.mxu0
        %v2478 = vld [vmem:[%s418] sm:$0xff]
        %v2479 = vld [vmem:[%s418 + $0x8] sm:$0xff]
        %v2480 = vld [vmem:[%s418 + $0x10] sm:$0xff]
        %v2481 = vld [vmem:[%s418 + $0x18] sm:$0xff]
        %v2482 = vmul.f32 %v2464, 0.5
        %v2483 = vmul.f32 %v2467, 0.5
        %v2484 = vmul.f32 %v2472, 0.5
        %v2485 = vmul.f32 %v2475, 0.5
        %v2486 = vmul.f32 %v2482, 1.442695
        %v2487 = vpow.pop %v2486
        %v2488 = vmul.f32 %v2483, 1.442695
        %v2489 = vpow.pop %v2488
        %v2490 = vmul.f32 %v2484, 1.442695
        %v2491 = vpow.pop %v2490
        %v2492 = vmul.f32 %v2485, 1.442695
        %v2493 = vpow.pop %v2492
        %2498 = vrot.lane.b32.xlu0 %v2487, 108
        %v2499 = vpop.permute.xlu0 %2498
        %2500 = vrot.lane.b32.xlu0 %v2489, 108
        %v2501 = vpop.permute.xlu0 %2500
        %2502 = vrot.lane.b32.xlu0 %v2491, 108
        %v2503 = vpop.permute.xlu0 %2502
        %2504 = vrot.lane.b32.xlu0 %v2493, 108
        %v2505 = vpop.permute.xlu0 %2504
        %v2510 = vmul.f32 %v2478, %v2499
        %v2511 = vmul.f32 %v2479, %v2501
        %v2512 = vmul.f32 %v2480, %v2503
        %v2513 = vmul.f32 %v2481, %v2505
        %v2514 = vadd.f32 %v2510, %v2464
        %v2515 = vadd.f32 %v2511, %v2467
        %v2516 = vadd.f32 %v2512, %v2472
        %v2517 = vadd.f32 %v2513, %v2475
        %v2518 = vpack.c.bf16 %v2515, %v2514
        %v2519 = vpack.c.bf16 %v2517, %v2516
        %v2520 = vld [vmem:[%s6] sm:$0xff]
        %v2521 = vld [vmem:[%s6 + $0x8] sm:$0xff]
        %v2522 = vld [vmem:[%s6 + $0x10] sm:$0xff]
        %v2523 = vld [vmem:[%s6 + $0x18] sm:$0xff]
        %v2524 = vld [vmem:[%s6 + $0x20] sm:$0x33]
        %v2525 = vld [vmem:[%s6 + $0x28] sm:$0x33]
        %v2526 = vld [vmem:[%s7] sm:$0xf]
        %v2528 = vlaneseq
        %v2529 = vshrl.u32 %v2528, 7
        %v2530 = vsub.s32 0, %v2529
        %v2531 = vrot.slane %v2526, %v2530
        %v2532 = vlaneseq
        %v2533 = vshrl.u32 %v2532, 7
        %v2534 = vsub.s32 1, %v2533
        %v2535 = vrot.slane %v2526, %v2534
        %v2536 = vlaneseq
        %v2537 = vshrl.u32 %v2536, 7
        %v2538 = vsub.s32 2, %v2537
        %v2539 = vrot.slane %v2526, %v2538
        %v2540 = vlaneseq
        %v2541 = vshrl.u32 %v2540, 7
        %v2542 = vsub.s32 3, %v2541
        %v2543 = vrot.slane %v2526, %v2542
        %v2554 = vunpack.c.l.b16 %v2520
        %v2555 = vunpack.c.h.b16 %v2520
        %v2556 = vunpack.c.l.b16 %v2521
        %v2557 = vunpack.c.h.b16 %v2521
        %v2558 = vunpack.c.l.b16 %v2522
        %v2559 = vunpack.c.h.b16 %v2522
        %v2560 = vunpack.c.l.b16 %v2523
        %v2561 = vunpack.c.h.b16 %v2523
        %v2562 = vunpack.c.l.b16 %v2524
        %v2563 = vunpack.c.h.b16 %v2524
        %v2564 = vunpack.c.l.b16 %v2525
        %v2565 = vunpack.c.h.b16 %v2525
        %v2566 = vpack.c.b16 %v2558, %v2554
        %v2567 = vpack.c.b16 %v2559, %v2555
        %v2568 = vpack.c.b16 %v2560, %v2556
        %v2569 = vpack.c.b16 %v2561, %v2557
        %v2570 = vpack.c.b16 %v2562, %v2562
        %v2571 = vpack.c.b16 %v2563, %v2563
        %v2572 = vpack.c.b16 %v2564, %v2564
        %v2573 = vpack.c.b16 %v2565, %v2565
        %vm2578 = vcmask 162816
        %v2580 = vsel %vm2578, %v2518, 0
        %v2583 = vsel %vm2578, %v2519, 0
        %vm2585 = vcmask 1041408
        %v2587 = vsel %vm2585, %v2570, 0
        %v2590 = vsel %vm2585, %v2571, 0
        %v2593 = vsel %vm2585, %v2572, 0
        %v2596 = vsel %vm2585, %v2573, 0
        %2598 = vmatprep.subr.bf16.mxu0 %v2567
        %2599 = vmatpush1.bf16.msra.mxu0 %v2566
        %2600 = vmatprep.subr.bf16.mxu0 %v2590
        %2601 = vmatpush1.bf16.msra.mxu0 %v2587
        %2602 = vmatprep.subr.bf16.mxu0 0
        %2603 = vmatpush1.bf16.msra.mxu0 0
        %2604 = vmatprep.subr.bf16.mxu0 0
        %2605 = vmatpush1.bf16.msra.mxu0 0
        %2606 = vmatprep.subr.bf16.mxu0 0
        %2607 = vmatpush1.bf16.msra.mxu0 0
        %2608 = vmatprep.subr.bf16.mxu0 0
        %2609 = vmatpush1.bf16.msra.mxu0 0
        %2610 = vmatprep.subr.bf16.mxu0 0
        %2611 = vmatpush1.bf16.msra.mxu0 0
        %2612 = vmatprep.subr.bf16.mxu0 0
        %2613 = vmatpush1.bf16.msra.mxu0 0
        %2614 = vmatprep.subr.bf16.mxu0 0
        %2615 = vmatpush1.bf16.msra.mxu0 0
        %2616 = vmatprep.subr.bf16.mxu0 0
        %2617 = vmatpush1.bf16.msra.mxu0 0
        %2618 = vmatprep.subr.bf16.mxu0 0
        %2619 = vmatpush1.bf16.msra.mxu0 0
        %2620 = vmatprep.subr.bf16.mxu0 0
        %2621 = vmatpush1.bf16.msra.mxu0 0
        %2622 = vmatprep.subr.bf16.mxu0 0
        %2623 = vmatpush1.bf16.msra.mxu0 0
        %2624 = vmatprep.subr.bf16.mxu0 0
        %2625 = vmatpush1.bf16.msra.mxu0 0
        %2626 = vmatprep.subr.bf16.mxu0 0
        %2627 = vmatpush1.bf16.msra.mxu0 0
        %2628 = vmatprep.subr.bf16.mxu0 0
        %2629 = vmatpush1.bf16.msra.mxu0 0
        %2630 = vmatprep.mubr.bf16.mxu0 0
        %2631 = vmatmul.mubr.bf16.gmra.mrb[0].mxu0 %v2580
        %v2632 = vpop.f32.mrb[0].mxu0
        %v2633 = vadd.f32 %v2531, %v2632
        %v2634 = vpop.f32.mrb[0].mxu0
        %v2635 = vadd.f32 %v2535, %v2634
        %v2636 = vpop.f32.mrb[0].mxu0
        %v2637 = vadd.f32 %v2531, %v2636
        %v2638 = vpop.f32.mrb[0].mxu0
        %v2639 = vadd.f32 %v2535, %v2638
        %2640 = vmatprep.mubr.bf16.mxu0 0
        %2641 = vmatmul.mubr.bf16.gmra.mrb[0].mxu0 %v2583
        %v2642 = vpop.f32.mrb[0].mxu0
        %v2643 = vadd.f32 %v2531, %v2642
        %v2644 = vpop.f32.mrb[0].mxu0
        %v2645 = vadd.f32 %v2535, %v2644
        %v2646 = vpop.f32.mrb[0].mxu0
        %v2647 = vadd.f32 %v2531, %v2646
        %v2648 = vpop.f32.mrb[0].mxu0
        %v2649 = vadd.f32 %v2535, %v2648
        %2650 = vdwg.mxu0
        %2651 = vmatprep.subr.bf16.mxu0 %v2569
        %2652 = vmatpush1.bf16.msra.mxu0 %v2568
        %2653 = vmatprep.subr.bf16.mxu0 %v2596
        %2654 = vmatpush1.bf16.msra.mxu0 %v2593
        %2655 = vmatprep.subr.bf16.mxu0 0
        %2656 = vmatpush1.bf16.msra.mxu0 0
        %2657 = vmatprep.subr.bf16.mxu0 0
        %2658 = vmatpush1.bf16.msra.mxu0 0
        %2659 = vmatprep.subr.bf16.mxu0 0
        %2660 = vmatpush1.bf16.msra.mxu0 0
        %2661 = vmatprep.subr.bf16.mxu0 0
        %2662 = vmatpush1.bf16.msra.mxu0 0
        %2663 = vmatprep.subr.bf16.mxu0 0
        %2664 = vmatpush1.bf16.msra.mxu0 0
        %2665 = vmatprep.subr.bf16.mxu0 0
        %2666 = vmatpush1.bf16.msra.mxu0 0
        %2667 = vmatprep.subr.bf16.mxu0 0
        %2668 = vmatpush1.bf16.msra.mxu0 0
        %2669 = vmatprep.subr.bf16.mxu0 0
        %2670 = vmatpush1.bf16.msra.mxu0 0
        %2671 = vmatprep.subr.bf16.mxu0 0
        %2672 = vmatpush1.bf16.msra.mxu0 0
        %2673 = vmatprep.subr.bf16.mxu0 0
        %2674 = vmatpush1.bf16.msra.mxu0 0
        %2675 = vmatprep.subr.bf16.mxu0 0
        %2676 = vmatpush1.bf16.msra.mxu0 0
        %2677 = vmatprep.subr.bf16.mxu0 0
        %2678 = vmatpush1.bf16.msra.mxu0 0
        %2679 = vmatprep.subr.bf16.mxu0 0
        %2680 = vmatpush1.bf16.msra.mxu0 0
        %2681 = vmatprep.subr.bf16.mxu0 0
        %2682 = vmatpush1.bf16.msra.mxu0 0
        %2683 = vmatprep.mubr.bf16.mxu0 0
        %2684 = vmatmul.mubr.bf16.gmra.mrb[0].mxu0 %v2580
        %v2685 = vpop.f32.mrb[0].mxu0
        %v2686 = vadd.f32 %v2539, %v2685
        %v2687 = vpop.f32.mrb[0].mxu0
        %v2688 = vadd.f32 %v2543, %v2687
        %v2689 = vpop.f32.mrb[0].mxu0
        %v2690 = vadd.f32 %v2539, %v2689
        %v2691 = vpop.f32.mrb[0].mxu0
        %v2692 = vadd.f32 %v2543, %v2691
        %2693 = vmatprep.mubr.bf16.mxu0 0
        %2694 = vmatmul.mubr.bf16.gmra.mrb[0].mxu0 %v2583
        %v2695 = vpop.f32.mrb[0].mxu0
        %v2696 = vadd.f32 %v2539, %v2695
        %v2697 = vpop.f32.mrb[0].mxu0
        %v2698 = vadd.f32 %v2543, %v2697
        %v2699 = vpop.f32.mrb[0].mxu0
        %v2700 = vadd.f32 %v2539, %v2699
        %v2701 = vpop.f32.mrb[0].mxu0
        %v2702 = vadd.f32 %v2543, %v2701
        %2703 = vdwg.mxu0
        %v2704 = vmax.f32 %v2633, 0.0
        %v2705 = vmax.f32 %v2635, 0.0
        %v2706 = vmax.f32 %v2686, 0.0
        %v2707 = vmax.f32 %v2688, 0.0
        %v2708 = vmax.f32 %v2637, 0.0
        %v2709 = vmax.f32 %v2639, 0.0
        %v2710 = vmax.f32 %v2690, 0.0
        %v2711 = vmax.f32 %v2692, 0.0
        %v2712 = vmax.f32 %v2643, 0.0
        %v2713 = vmax.f32 %v2645, 0.0
        %v2714 = vmax.f32 %v2696, 0.0
        %v2715 = vmax.f32 %v2698, 0.0
        %v2716 = vmax.f32 %v2647, 0.0
        %v2717 = vmax.f32 %v2649, 0.0
        %v2718 = vmax.f32 %v2700, 0.0
        %v2719 = vmax.f32 %v2702, 0.0
        %v2720 = vpack.c.bf16 %v2708, %v2704
        %v2721 = vpack.c.bf16 %v2709, %v2705
        %v2722 = vpack.c.bf16 %v2710, %v2706
        %v2723 = vpack.c.bf16 %v2711, %v2707
        %v2724 = vpack.c.bf16 %v2716, %v2712
        %v2725 = vpack.c.bf16 %v2717, %v2713
        %v2726 = vpack.c.bf16 %v2718, %v2714
        %v2727 = vpack.c.bf16 %v2719, %v2715
        %v2728 = vld [vmem:[%s8] sm:$0xff]
        %v2729 = vld [vmem:[%s8 + $0x8] sm:$0xff]
        %v2730 = vld [vmem:[%s8 + $0x10] sm:$0xff]
        %v2731 = vld [vmem:[%s8 + $0x18] sm:$0xf]
        %v2732 = vld [vmem:[%s8 + $0x1c] sm:$0xff]
        %v2733 = vld [vmem:[%s8 + $0x24] sm:$0xff]
        %v2734 = vld [vmem:[%s8 + $0x2c] sm:$0xff]
        %v2735 = vld [vmem:[%s8 + $0x34] sm:$0xf]
        %v2736 = vld [vmem:[%s8 + $0x38] sm:$0xff]
        %v2737 = vld [vmem:[%s8 + $0x40] sm:$0xff]
        %v2738 = vld [vmem:[%s8 + $0x48] sm:$0xff]
        %v2739 = vld [vmem:[%s8 + $0x50] sm:$0xf]
        %v2740 = vld [vmem:[%s8 + $0x54] sm:$0xff]
        %v2741 = vld [vmem:[%s8 + $0x5c] sm:$0xff]
        %v2742 = vld [vmem:[%s8 + $0x64] sm:$0xff]
        %v2743 = vld [vmem:[%s8 + $0x6c] sm:$0xf]
        %v2744 = vld [vmem:[%s8 + $0x70] sm:$0xff]
        %v2745 = vld [vmem:[%s8 + $0x78] sm:$0xff]
        %v2746 = vld [vmem:[%s8 + $0x80] sm:$0xff]
        %v2747 = vld [vmem:[%s8 + $0x88] sm:$0xf]
        %v2748 = vld [vmem:[%s8 + $0x8c] sm:$0xff]
        %v2749 = vld [vmem:[%s8 + $0x94] sm:$0xff]
        %v2750 = vld [vmem:[%s8 + $0x9c] sm:$0xff]
        %v2751 = vld [vmem:[%s8 + $0xa4] sm:$0xf]
        %v2752 = vld [vmem:[%s8 + $0xa8] sm:$0xff]
        %v2753 = vld [vmem:[%s8 + $0xb0] sm:$0xff]
        %v2754 = vld [vmem:[%s8 + $0xb8] sm:$0xff]
        %v2755 = vld [vmem:[%s8 + $0xc0] sm:$0xf]
        %v2756 = vld [vmem:[%s8 + $0xc4] sm:$0xff]
        %v2757 = vld [vmem:[%s8 + $0xcc] sm:$0xff]
        %v2758 = vld [vmem:[%s8 + $0xd4] sm:$0xff]
        %v2759 = vld [vmem:[%s8 + $0xdc] sm:$0xf]
        %v2760 = vld [vmem:[%s8 + $0xe0] sm:$0xff]
        %v2761 = vld [vmem:[%s8 + $0xe8] sm:$0xff]
        %v2762 = vld [vmem:[%s8 + $0xf0] sm:$0xff]
        %v2763 = vld [vmem:[%s8 + $0xf8] sm:$0xf]
        %v2764 = vld [vmem:[%s8 + $0xfc] sm:$0xff]
        %v2765 = vld [vmem:[%s8 + $0x104] sm:$0xff]
        %v2766 = vld [vmem:[%s8 + $0x10c] sm:$0xff]
        %v2767 = vld [vmem:[%s8 + $0x114] sm:$0xf]
        %v2768 = vld [vmem:[%s8 + $0x118] sm:$0xff]
        %v2769 = vld [vmem:[%s8 + $0x120] sm:$0xff]
        %v2770 = vld [vmem:[%s8 + $0x128] sm:$0xff]
        %v2771 = vld [vmem:[%s8 + $0x130] sm:$0xf]
        %v2772 = vld [vmem:[%s8 + $0x134] sm:$0xff]
        %v2773 = vld [vmem:[%s8 + $0x13c] sm:$0xff]
        %v2774 = vld [vmem:[%s8 + $0x144] sm:$0xff]
        %v2775 = vld [vmem:[%s8 + $0x14c] sm:$0xf]
        %v2776 = vld [vmem:[%s8 + $0x150] sm:$0xff]
        %v2777 = vld [vmem:[%s8 + $0x158] sm:$0xff]
        %v2778 = vld [vmem:[%s8 + $0x160] sm:$0xff]
        %v2779 = vld [vmem:[%s8 + $0x168] sm:$0xf]
        %v2780 = vld [vmem:[%s8 + $0x16c] sm:$0xff]
        %v2781 = vld [vmem:[%s8 + $0x174] sm:$0xff]
        %v2782 = vld [vmem:[%s8 + $0x17c] sm:$0xff]
        %v2783 = vld [vmem:[%s8 + $0x184] sm:$0xf]
        %v2784 = vld [vmem:[%s8 + $0x188] sm:$0xff]
        %v2785 = vld [vmem:[%s8 + $0x190] sm:$0xff]
        %v2786 = vld [vmem:[%s8 + $0x198] sm:$0xff]
        %v2787 = vld [vmem:[%s8 + $0x1a0] sm:$0xf]
        %v2788 = vld [vmem:[%s8 + $0x1a4] sm:$0xff]
        %v2789 = vld [vmem:[%s8 + $0x1ac] sm:$0xff]
        %v2790 = vld [vmem:[%s8 + $0x1b4] sm:$0xff]
        %v2791 = vld [vmem:[%s8 + $0x1bc] sm:$0xf]
        %v2792 = vld [vmem:[%s8 + $0x1c0] sm:$0xff]
        %v2793 = vld [vmem:[%s8 + $0x1c8] sm:$0xff]
        %v2794 = vld [vmem:[%s8 + $0x1d0] sm:$0xff]
        %v2795 = vld [vmem:[%s8 + $0x1d8] sm:$0xf]
        %v2796 = vld [vmem:[%s8 + $0x1dc] sm:$0xff]
        %v2797 = vld [vmem:[%s8 + $0x1e4] sm:$0xff]
        %v2798 = vld [vmem:[%s8 + $0x1ec] sm:$0xff]
        %v2799 = vld [vmem:[%s8 + $0x1f4] sm:$0xf]
        %v2800 = vld [vmem:[%s8 + $0x1f8] sm:$0xff]
        %v2801 = vld [vmem:[%s8 + $0x200] sm:$0xff]
        %v2802 = vld [vmem:[%s8 + $0x208] sm:$0xff]
        %v2803 = vld [vmem:[%s8 + $0x210] sm:$0xf]
        %v2804 = vld [vmem:[%s8 + $0x214] sm:$0xff]
        %v2805 = vld [vmem:[%s8 + $0x21c] sm:$0xff]
        %v2806 = vld [vmem:[%s8 + $0x224] sm:$0xff]
        %v2807 = vld [vmem:[%s8 + $0x22c] sm:$0xf]
        %v2808 = vld [vmem:[%s8 + $0x230] sm:$0xff]
        %v2809 = vld [vmem:[%s8 + $0x238] sm:$0xff]
        %v2810 = vld [vmem:[%s8 + $0x240] sm:$0xff]
        %v2811 = vld [vmem:[%s8 + $0x248] sm:$0xf]
        %v2812 = vld [vmem:[%s8 + $0x24c] sm:$0xff]
        %v2813 = vld [vmem:[%s8 + $0x254] sm:$0xff]
        %v2814 = vld [vmem:[%s8 + $0x25c] sm:$0xff]
        %v2815 = vld [vmem:[%s8 + $0x264] sm:$0xf]
        %v2816 = vld [vmem:[%s8 + $0x268] sm:$0xff]
        %v2817 = vld [vmem:[%s8 + $0x270] sm:$0xff]
        %v2818 = vld [vmem:[%s8 + $0x278] sm:$0xff]
        %v2819 = vld [vmem:[%s8 + $0x280] sm:$0xf]
        %v2820 = vld [vmem:[%s8 + $0x284] sm:$0xff]
        %v2821 = vld [vmem:[%s8 + $0x28c] sm:$0xff]
        %v2822 = vld [vmem:[%s8 + $0x294] sm:$0xff]
        %v2823 = vld [vmem:[%s8 + $0x29c] sm:$0xf]
        %v2824 = vld [vmem:[%s8 + $0x2a0] sm:$0xff]
        %v2825 = vld [vmem:[%s8 + $0x2a8] sm:$0xff]
        %v2826 = vld [vmem:[%s8 + $0x2b0] sm:$0xff]
        %v2827 = vld [vmem:[%s8 + $0x2b8] sm:$0xf]
        %v2828 = vld [vmem:[%s8 + $0x2bc] sm:$0xff]
        %v2829 = vld [vmem:[%s8 + $0x2c4] sm:$0xff]
        %v2830 = vld [vmem:[%s8 + $0x2cc] sm:$0xff]
        %v2831 = vld [vmem:[%s8 + $0x2d4] sm:$0xf]
        %v2832 = vld [vmem:[%s8 + $0x2d8] sm:$0xff]
        %v2833 = vld [vmem:[%s8 + $0x2e0] sm:$0xff]
        %v2834 = vld [vmem:[%s8 + $0x2e8] sm:$0xff]
        %v2835 = vld [vmem:[%s8 + $0x2f0] sm:$0xf]
        %v2836 = vld [vmem:[%s8 + $0x2f4] sm:$0xff]
        %v2837 = vld [vmem:[%s8 + $0x2fc] sm:$0xff]
        %v2838 = vld [vmem:[%s8 + $0x304] sm:$0xff]
        %v2839 = vld [vmem:[%s8 + $0x30c] sm:$0xf]
        %v2840 = vld [vmem:[%s8 + $0x310] sm:$0xff]
        %v2841 = vld [vmem:[%s8 + $0x318] sm:$0xff]
        %v2842 = vld [vmem:[%s8 + $0x320] sm:$0xff]
        %v2843 = vld [vmem:[%s8 + $0x328] sm:$0xf]
        %v2844 = vld [vmem:[%s8 + $0x32c] sm:$0xff]
        %v2845 = vld [vmem:[%s8 + $0x334] sm:$0xff]
        %v2846 = vld [vmem:[%s8 + $0x33c] sm:$0xff]
        %v2847 = vld [vmem:[%s8 + $0x344] sm:$0xf]
        %v2848 = vld [vmem:[%s8 + $0x348] sm:$0xff]
        %v2849 = vld [vmem:[%s8 + $0x350] sm:$0xff]
        %v2850 = vld [vmem:[%s8 + $0x358] sm:$0xff]
        %v2851 = vld [vmem:[%s8 + $0x360] sm:$0xf]
        %v2852 = vld [vmem:[%s8 + $0x364] sm:$0xff]
        %v2853 = vld [vmem:[%s8 + $0x36c] sm:$0xff]
        %v2854 = vld [vmem:[%s8 + $0x374] sm:$0xff]
        %v2855 = vld [vmem:[%s8 + $0x37c] sm:$0xf]
        %v2856 = vld [vmem:[%s8 + $0x380] sm:$0xff]
        %v2857 = vld [vmem:[%s8 + $0x388] sm:$0xff]
        %v2858 = vld [vmem:[%s8 + $0x390] sm:$0xff]
        %v2859 = vld [vmem:[%s8 + $0x398] sm:$0xf]
        %v2860 = vld [vmem:[%s8 + $0x39c] sm:$0xff]
        %v2861 = vld [vmem:[%s8 + $0x3a4] sm:$0xff]
        %v2862 = vld [vmem:[%s8 + $0x3ac] sm:$0xff]
        %v2863 = vld [vmem:[%s8 + $0x3b4] sm:$0xf]
        %v2864 = vld [vmem:[%s8 + $0x3b8] sm:$0xff]
        %v2865 = vld [vmem:[%s8 + $0x3c0] sm:$0xff]
        %v2866 = vld [vmem:[%s8 + $0x3c8] sm:$0xff]
        %v2867 = vld [vmem:[%s8 + $0x3d0] sm:$0xf]
        %v2868 = vld [vmem:[%s8 + $0x3d4] sm:$0xff]
        %v2869 = vld [vmem:[%s8 + $0x3dc] sm:$0xff]
        %v2870 = vld [vmem:[%s8 + $0x3e4] sm:$0xff]
        %v2871 = vld [vmem:[%s8 + $0x3ec] sm:$0xf]
        %v2872 = vld [vmem:[%s8 + $0x3f0] sm:$0xff]
        %v2873 = vld [vmem:[%s8 + $0x3f8] sm:$0xff]
        %v2874 = vld [vmem:[%s8 + $0x400] sm:$0xff]
        %v2875 = vld [vmem:[%s8 + $0x408] sm:$0xf]
        %v2876 = vld [vmem:[%s8 + $0x40c] sm:$0xff]
        %v2877 = vld [vmem:[%s8 + $0x414] sm:$0xff]
        %v2878 = vld [vmem:[%s8 + $0x41c] sm:$0xff]
        %v2879 = vld [vmem:[%s8 + $0x424] sm:$0xf]
        %v2880 = vld [vmem:[%s8 + $0x428] sm:$0xff]
        %v2881 = vld [vmem:[%s8 + $0x430] sm:$0xff]
        %v2882 = vld [vmem:[%s8 + $0x438] sm:$0xff]
        %v2883 = vld [vmem:[%s8 + $0x440] sm:$0xf]
        %v2884 = vld [vmem:[%s8 + $0x444] sm:$0xff]
        %v2885 = vld [vmem:[%s8 + $0x44c] sm:$0xff]
        %v2886 = vld [vmem:[%s8 + $0x454] sm:$0xff]
        %v2887 = vld [vmem:[%s8 + $0x45c] sm:$0xf]
        %v2888 = vld [vmem:[%s8 + $0x460] sm:$0xff]
        %v2889 = vld [vmem:[%s8 + $0x468] sm:$0xff]
        %v2890 = vld [vmem:[%s8 + $0x470] sm:$0xff]
        %v2891 = vld [vmem:[%s8 + $0x478] sm:$0xf]
        %v2892 = vld [vmem:[%s8 + $0x47c] sm:$0xff]
        %v2893 = vld [vmem:[%s8 + $0x484] sm:$0xff]
        %v2894 = vld [vmem:[%s8 + $0x48c] sm:$0xff]
        %v2895 = vld [vmem:[%s8 + $0x494] sm:$0xf]
        %v2896 = vld [vmem:[%s8 + $0x498] sm:$0xff]
        %v2897 = vld [vmem:[%s8 + $0x4a0] sm:$0xff]
        %v2898 = vld [vmem:[%s8 + $0x4a8] sm:$0xff]
        %v2899 = vld [vmem:[%s8 + $0x4b0] sm:$0xf]
        %v2900 = vld [vmem:[%s8 + $0x4b4] sm:$0xff]
        %v2901 = vld [vmem:[%s8 + $0x4bc] sm:$0xff]
        %v2902 = vld [vmem:[%s8 + $0x4c4] sm:$0xff]
        %v2903 = vld [vmem:[%s8 + $0x4cc] sm:$0xf]
        %v2904 = vld [vmem:[%s8 + $0x4d0] sm:$0xff]
        %v2905 = vld [vmem:[%s8 + $0x4d8] sm:$0xff]
        %v2906 = vld [vmem:[%s8 + $0x4e0] sm:$0xff]
        %v2907 = vld [vmem:[%s8 + $0x4e8] sm:$0xf]
        %v2908 = vld [vmem:[%s8 + $0x4ec] sm:$0xff]
        %v2909 = vld [vmem:[%s8 + $0x4f4] sm:$0xff]
        %v2910 = vld [vmem:[%s8 + $0x4fc] sm:$0xff]
        %v2911 = vld [vmem:[%s8 + $0x504] sm:$0xf]
        %v2912 = vld [vmem:[%s8 + $0x508] sm:$0xff]
        %v2913 = vld [vmem:[%s8 + $0x510] sm:$0xff]
        %v2914 = vld [vmem:[%s8 + $0x518] sm:$0xff]
        %v2915 = vld [vmem:[%s8 + $0x520] sm:$0xf]
        %v2916 = vld [vmem:[%s8 + $0x524] sm:$0xff]
        %v2917 = vld [vmem:[%s8 + $0x52c] sm:$0xff]
        %v2918 = vld [vmem:[%s8 + $0x534] sm:$0xff]
        %v2919 = vld [vmem:[%s8 + $0x53c] sm:$0xf]
        %v2920 = vld [vmem:[%s8 + $0x540] sm:$0xff]
        %v2921 = vld [vmem:[%s8 + $0x548] sm:$0xff]
        %v2922 = vld [vmem:[%s8 + $0x550] sm:$0xff]
        %v2923 = vld [vmem:[%s8 + $0x558] sm:$0xf]
        %v2924 = vld [vmem:[%s8 + $0x55c] sm:$0xff]
        %v2925 = vld [vmem:[%s8 + $0x564] sm:$0xff]
        %v2926 = vld [vmem:[%s8 + $0x56c] sm:$0xff]
        %v2927 = vld [vmem:[%s8 + $0x574] sm:$0xf]
        %v2928 = vld [vmem:[%s9] sm:$0x7f]
        %v2930 = vlaneseq
        %v2931 = vshrl.u32 %v2930, 7
        %v2932 = vsub.s32 0, %v2931
        %v2933 = vrot.slane %v2928, %v2932
        %v2934 = vlaneseq
        %v2935 = vshrl.u32 %v2934, 7
        %v2936 = vsub.s32 1, %v2935
        %v2937 = vrot.slane %v2928, %v2936
        %v2938 = vlaneseq
        %v2939 = vshrl.u32 %v2938, 7
        %v2940 = vsub.s32 2, %v2939
        %v2941 = vrot.slane %v2928, %v2940
        %v2942 = vlaneseq
        %v2943 = vshrl.u32 %v2942, 7
        %v2944 = vsub.s32 3, %v2943
        %v2945 = vrot.slane %v2928, %v2944
        %v2946 = vlaneseq
        %v2947 = vshrl.u32 %v2946, 7
        %v2948 = vsub.s32 4, %v2947
        %v2949 = vrot.slane %v2928, %v2948
        %v2950 = vlaneseq
        %v2951 = vshrl.u32 %v2950, 7
        %v2952 = vsub.s32 5, %v2951
        %v2953 = vrot.slane %v2928, %v2952
        %v2954 = vlaneseq
        %v2955 = vshrl.u32 %v2954, 7
        %v2956 = vsub.s32 6, %v2955
        %v2957 = vrot.slane %v2928, %v2956
        %v3165 = vunpack.c.l.b16 %v2728
        %v3166 = vunpack.c.h.b16 %v2728
        %v3167 = vunpack.c.l.b16 %v2729
        %v3168 = vunpack.c.h.b16 %v2729
        %v3169 = vunpack.c.l.b16 %v2730
        %v3170 = vunpack.c.h.b16 %v2730
        %v3171 = vunpack.c.l.b16 %v2731
        %v3172 = vunpack.c.l.b16 %v2732
        %v3173 = vunpack.c.h.b16 %v2732
        %v3174 = vunpack.c.l.b16 %v2733
        %v3175 = vunpack.c.h.b16 %v2733
        %v3176 = vunpack.c.l.b16 %v2734
        %v3177 = vunpack.c.h.b16 %v2734
        %v3178 = vunpack.c.l.b16 %v2735
        %v3179 = vunpack.c.l.b16 %v2736
        %v3180 = vunpack.c.h.b16 %v2736
        %v3181 = vunpack.c.l.b16 %v2737
        %v3182 = vunpack.c.h.b16 %v2737
        %v3183 = vunpack.c.l.b16 %v2738
        %v3184 = vunpack.c.h.b16 %v2738
        %v3185 = vunpack.c.l.b16 %v2739
        %v3186 = vunpack.c.l.b16 %v2740
        %v3187 = vunpack.c.h.b16 %v2740
        %v3188 = vunpack.c.l.b16 %v2741
        %v3189 = vunpack.c.h.b16 %v2741
        %v3190 = vunpack.c.l.b16 %v2742
        %v3191 = vunpack.c.h.b16 %v2742
        %v3192 = vunpack.c.l.b16 %v2743
        %v3193 = vunpack.c.l.b16 %v2744
        %v3194 = vunpack.c.h.b16 %v2744
        %v3195 = vunpack.c.l.b16 %v2745
        %v3196 = vunpack.c.h.b16 %v2745
        %v3197 = vunpack.c.l.b16 %v2746
        %v3198 = vunpack.c.h.b16 %v2746
        %v3199 = vunpack.c.l.b16 %v2747
        %v3200 = vunpack.c.l.b16 %v2748
        %v3201 = vunpack.c.h.b16 %v2748
        %v3202 = vunpack.c.l.b16 %v2749
        %v3203 = vunpack.c.h.b16 %v2749
        %v3204 = vunpack.c.l.b16 %v2750
        %v3205 = vunpack.c.h.b16 %v2750
        %v3206 = vunpack.c.l.b16 %v2751
        %v3207 = vunpack.c.l.b16 %v2752
        %v3208 = vunpack.c.h.b16 %v2752
        %v3209 = vunpack.c.l.b16 %v2753
        %v3210 = vunpack.c.h.b16 %v2753
        %v3211 = vunpack.c.l.b16 %v2754
        %v3212 = vunpack.c.h.b16 %v2754
        %v3213 = vunpack.c.l.b16 %v2755
        %v3214 = vunpack.c.l.b16 %v2756
        %v3215 = vunpack.c.h.b16 %v2756
        %v3216 = vunpack.c.l.b16 %v2757
        %v3217 = vunpack.c.h.b16 %v2757
        %v3218 = vunpack.c.l.b16 %v2758
        %v3219 = vunpack.c.h.b16 %v2758
        %v3220 = vunpack.c.l.b16 %v2759
        %v3221 = vunpack.c.l.b16 %v2760
        %v3222 = vunpack.c.h.b16 %v2760
        %v3223 = vunpack.c.l.b16 %v2761
        %v3224 = vunpack.c.h.b16 %v2761
        %v3225 = vunpack.c.l.b16 %v2762
        %v3226 = vunpack.c.h.b16 %v2762
        %v3227 = vunpack.c.l.b16 %v2763
        %v3228 = vunpack.c.l.b16 %v2764
        %v3229 = vunpack.c.h.b16 %v2764
        %v3230 = vunpack.c.l.b16 %v2765
        %v3231 = vunpack.c.h.b16 %v2765
        %v3232 = vunpack.c.l.b16 %v2766
        %v3233 = vunpack.c.h.b16 %v2766
        %v3234 = vunpack.c.l.b16 %v2767
        %v3235 = vunpack.c.l.b16 %v2768
        %v3236 = vunpack.c.h.b16 %v2768
        %v3237 = vunpack.c.l.b16 %v2769
        %v3238 = vunpack.c.h.b16 %v2769
        %v3239 = vunpack.c.l.b16 %v2770
        %v3240 = vunpack.c.h.b16 %v2770
        %v3241 = vunpack.c.l.b16 %v2771
        %v3242 = vunpack.c.l.b16 %v2772
        %v3243 = vunpack.c.h.b16 %v2772
        %v3244 = vunpack.c.l.b16 %v2773
        %v3245 = vunpack.c.h.b16 %v2773
        %v3246 = vunpack.c.l.b16 %v2774
        %v3247 = vunpack.c.h.b16 %v2774
        %v3248 = vunpack.c.l.b16 %v2775
        %v3249 = vunpack.c.l.b16 %v2776
        %v3250 = vunpack.c.h.b16 %v2776
        %v3251 = vunpack.c.l.b16 %v2777
        %v3252 = vunpack.c.h.b16 %v2777
        %v3253 = vunpack.c.l.b16 %v2778
        %v3254 = vunpack.c.h.b16 %v2778
        %v3255 = vunpack.c.l.b16 %v2779
        %v3256 = vunpack.c.l.b16 %v2780
        %v3257 = vunpack.c.h.b16 %v2780
        %v3258 = vunpack.c.l.b16 %v2781
        %v3259 = vunpack.c.h.b16 %v2781
        %v3260 = vunpack.c.l.b16 %v2782
        %v3261 = vunpack.c.h.b16 %v2782
        %v3262 = vunpack.c.l.b16 %v2783
        %v3263 = vunpack.c.l.b16 %v2784
        %v3264 = vunpack.c.h.b16 %v2784
        %v3265 = vunpack.c.l.b16 %v2785
        %v3266 = vunpack.c.h.b16 %v2785
        %v3267 = vunpack.c.l.b16 %v2786
        %v3268 = vunpack.c.h.b16 %v2786
        %v3269 = vunpack.c.l.b16 %v2787
        %v3270 = vunpack.c.l.b16 %v2788
        %v3271 = vunpack.c.h.b16 %v2788
        %v3272 = vunpack.c.l.b16 %v2789
        %v3273 = vunpack.c.h.b16 %v2789
        %v3274 = vunpack.c.l.b16 %v2790
        %v3275 = vunpack.c.h.b16 %v2790
        %v3276 = vunpack.c.l.b16 %v2791
        %v3277 = vunpack.c.l.b16 %v2792
        %v3278 = vunpack.c.h.b16 %v2792
        %v3279 = vunpack.c.l.b16 %v2793
        %v3280 = vunpack.c.h.b16 %v2793
        %v3281 = vunpack.c.l.b16 %v2794
        %v3282 = vunpack.c.h.b16 %v2794
        %v3283 = vunpack.c.l.b16 %v2795
        %v3284 = vunpack.c.l.b16 %v2796
        %v3285 = vunpack.c.h.b16 %v2796
        %v3286 = vunpack.c.l.b16 %v2797
        %v3287 = vunpack.c.h.b16 %v2797
        %v3288 = vunpack.c.l.b16 %v2798
        %v3289 = vunpack.c.h.b16 %v2798
        %v3290 = vunpack.c.l.b16 %v2799
        %v3291 = vunpack.c.l.b16 %v2800
        %v3292 = vunpack.c.h.b16 %v2800
        %v3293 = vunpack.c.l.b16 %v2801
        %v3294 = vunpack.c.h.b16 %v2801
        %v3295 = vunpack.c.l.b16 %v2802
        %v3296 = vunpack.c.h.b16 %v2802
        %v3297 = vunpack.c.l.b16 %v2803
        %v3298 = vunpack.c.l.b16 %v2804
        %v3299 = vunpack.c.h.b16 %v2804
        %v3300 = vunpack.c.l.b16 %v2805
        %v3301 = vunpack.c.h.b16 %v2805
        %v3302 = vunpack.c.l.b16 %v2806
        %v3303 = vunpack.c.h.b16 %v2806
        %v3304 = vunpack.c.l.b16 %v2807
        %v3305 = vunpack.c.l.b16 %v2808
        %v3306 = vunpack.c.h.b16 %v2808
        %v3307 = vunpack.c.l.b16 %v2809
        %v3308 = vunpack.c.h.b16 %v2809
        %v3309 = vunpack.c.l.b16 %v2810
        %v3310 = vunpack.c.h.b16 %v2810
        %v3311 = vunpack.c.l.b16 %v2811
        %v3312 = vunpack.c.l.b16 %v2812
        %v3313 = vunpack.c.h.b16 %v2812
        %v3314 = vunpack.c.l.b16 %v2813
        %v3315 = vunpack.c.h.b16 %v2813
        %v3316 = vunpack.c.l.b16 %v2814
        %v3317 = vunpack.c.h.b16 %v2814
        %v3318 = vunpack.c.l.b16 %v2815
        %v3319 = vunpack.c.l.b16 %v2816
        %v3320 = vunpack.c.h.b16 %v2816
        %v3321 = vunpack.c.l.b16 %v2817
        %v3322 = vunpack.c.h.b16 %v2817
        %v3323 = vunpack.c.l.b16 %v2818
        %v3324 = vunpack.c.h.b16 %v2818
        %v3325 = vunpack.c.l.b16 %v2819
        %v3326 = vunpack.c.l.b16 %v2820
        %v3327 = vunpack.c.h.b16 %v2820
        %v3328 = vunpack.c.l.b16 %v2821
        %v3329 = vunpack.c.h.b16 %v2821
        %v3330 = vunpack.c.l.b16 %v2822
        %v3331 = vunpack.c.h.b16 %v2822
        %v3332 = vunpack.c.l.b16 %v2823
        %v3333 = vunpack.c.l.b16 %v2824
        %v3334 = vunpack.c.h.b16 %v2824
        %v3335 = vunpack.c.l.b16 %v2825
        %v3336 = vunpack.c.h.b16 %v2825
        %v3337 = vunpack.c.l.b16 %v2826
        %v3338 = vunpack.c.h.b16 %v2826
        %v3339 = vunpack.c.l.b16 %v2827
        %v3340 = vunpack.c.l.b16 %v2828
        %v3341 = vunpack.c.h.b16 %v2828
        %v3342 = vunpack.c.l.b16 %v2829
        %v3343 = vunpack.c.h.b16 %v2829
        %v3344 = vunpack.c.l.b16 %v2830
        %v3345 = vunpack.c.h.b16 %v2830
        %v3346 = vunpack.c.l.b16 %v2831
        %v3347 = vunpack.c.l.b16 %v2832
        %v3348 = vunpack.c.h.b16 %v2832
        %v3349 = vunpack.c.l.b16 %v2833
        %v3350 = vunpack.c.h.b16 %v2833
        %v3351 = vunpack.c.l.b16 %v2834
        %v3352 = vunpack.c.h.b16 %v2834
        %v3353 = vunpack.c.l.b16 %v2835
        %v3354 = vunpack.c.l.b16 %v2836
        %v3355 = vunpack.c.h.b16 %v2836
        %v3356 = vunpack.c.l.b16 %v2837
        %v3357 = vunpack.c.h.b16 %v2837
        %v3358 = vunpack.c.l.b16 %v2838
        %v3359 = vunpack.c.h.b16 %v2838
        %v3360 = vunpack.c.l.b16 %v2839
        %v3361 = vunpack.c.l.b16 %v2840
        %v3362 = vunpack.c.h.b16 %v2840
        %v3363 = vunpack.c.l.b16 %v2841
        %v3364 = vunpack.c.h.b16 %v2841
        %v3365 = vunpack.c.l.b16 %v2842
        %v3366 = vunpack.c.h.b16 %v2842
        %v3367 = vunpack.c.l.b16 %v2843
        %v3368 = vunpack.c.l.b16 %v2844
        %v3369 = vunpack.c.h.b16 %v2844
        %v3370 = vunpack.c.l.b16 %v2845
        %v3371 = vunpack.c.h.b16 %v2845
        %v3372 = vunpack.c.l.b16 %v2846
        %v3373 = vunpack.c.h.b16 %v2846
        %v3374 = vunpack.c.l.b16 %v2847
        %v3375 = vunpack.c.l.b16 %v2848
        %v3376 = vunpack.c.h.b16 %v2848
        %v3377 = vunpack.c.l.b16 %v2849
        %v3378 = vunpack.c.h.b16 %v2849
        %v3379 = vunpack.c.l.b16 %v2850
        %v3380 = vunpack.c.h.b16 %v2850
        %v3381 = vunpack.c.l.b16 %v2851
        %v3382 = vunpack.c.l.b16 %v2852
        %v3383 = vunpack.c.h.b16 %v2852
        %v3384 = vunpack.c.l.b16 %v2853
        %v3385 = vunpack.c.h.b16 %v2853
        %v3386 = vunpack.c.l.b16 %v2854
        %v3387 = vunpack.c.h.b16 %v2854
        %v3388 = vunpack.c.l.b16 %v2855
        %v3389 = vunpack.c.l.b16 %v2856
        %v3390 = vunpack.c.h.b16 %v2856
        %v3391 = vunpack.c.l.b16 %v2857
        %v3392 = vunpack.c.h.b16 %v2857
        %v3393 = vunpack.c.l.b16 %v2858
        %v3394 = vunpack.c.h.b16 %v2858
        %v3395 = vunpack.c.l.b16 %v2859
        %v3396 = vunpack.c.l.b16 %v2860
        %v3397 = vunpack.c.h.b16 %v2860
        %v3398 = vunpack.c.l.b16 %v2861
        %v3399 = vunpack.c.h.b16 %v2861
        %v3400 = vunpack.c.l.b16 %v2862
        %v3401 = vunpack.c.h.b16 %v2862
        %v3402 = vunpack.c.l.b16 %v2863
        %v3403 = vunpack.c.l.b16 %v2864
        %v3404 = vunpack.c.h.b16 %v2864
        %v3405 = vunpack.c.l.b16 %v2865
        %v3406 = vunpack.c.h.b16 %v2865
        %v3407 = vunpack.c.l.b16 %v2866
        %v3408 = vunpack.c.h.b16 %v2866
        %v3409 = vunpack.c.l.b16 %v2867
        %v3410 = vunpack.c.l.b16 %v2868
        %v3411 = vunpack.c.h.b16 %v2868
        %v3412 = vunpack.c.l.b16 %v2869
        %v3413 = vunpack.c.h.b16 %v2869
        %v3414 = vunpack.c.l.b16 %v2870
        %v3415 = vunpack.c.h.b16 %v2870
        %v3416 = vunpack.c.l.b16 %v2871
        %v3417 = vunpack.c.l.b16 %v2872
        %v3418 = vunpack.c.h.b16 %v2872
        %v3419 = vunpack.c.l.b16 %v2873
        %v3420 = vunpack.c.h.b16 %v2873
        %v3421 = vunpack.c.l.b16 %v2874
        %v3422 = vunpack.c.h.b16 %v2874
        %v3423 = vunpack.c.l.b16 %v2875
        %v3424 = vunpack.c.l.b16 %v2876
        %v3425 = vunpack.c.h.b16 %v2876
        %v3426 = vunpack.c.l.b16 %v2877
        %v3427 = vunpack.c.h.b16 %v2877
        %v3428 = vunpack.c.l.b16 %v2878
        %v3429 = vunpack.c.h.b16 %v2878
        %v3430 = vunpack.c.l.b16 %v2879
        %v3431 = vunpack.c.l.b16 %v2880
        %v3432 = vunpack.c.h.b16 %v2880
        %v3433 = vunpack.c.l.b16 %v2881
        %v3434 = vunpack.c.h.b16 %v2881
        %v3435 = vunpack.c.l.b16 %v2882
        %v3436 = vunpack.c.h.b16 %v2882
        %v3437 = vunpack.c.l.b16 %v2883
        %v3438 = vunpack.c.l.b16 %v2884
        %v3439 = vunpack.c.h.b16 %v2884
        %v3440 = vunpack.c.l.b16 %v2885
        %v3441 = vunpack.c.h.b16 %v2885
        %v3442 = vunpack.c.l.b16 %v2886
        %v3443 = vunpack.c.h.b16 %v2886
        %v3444 = vunpack.c.l.b16 %v2887
        %v3445 = vunpack.c.l.b16 %v2888
        %v3446 = vunpack.c.h.b16 %v2888
        %v3447 = vunpack.c.l.b16 %v2889
        %v3448 = vunpack.c.h.b16 %v2889
        %v3449 = vunpack.c.l.b16 %v2890
        %v3450 = vunpack.c.h.b16 %v2890
        %v3451 = vunpack.c.l.b16 %v2891
        %v3452 = vunpack.c.l.b16 %v2892
        %v3453 = vunpack.c.h.b16 %v2892
        %v3454 = vunpack.c.l.b16 %v2893
        %v3455 = vunpack.c.h.b16 %v2893
        %v3456 = vunpack.c.l.b16 %v2894
        %v3457 = vunpack.c.h.b16 %v2894
        %v3458 = vunpack.c.l.b16 %v2895
        %v3459 = vunpack.c.l.b16 %v2896
        %v3460 = vunpack.c.h.b16 %v2896
        %v3461 = vunpack.c.l.b16 %v2897
        %v3462 = vunpack.c.h.b16 %v2897
        %v3463 = vunpack.c.l.b16 %v2898
        %v3464 = vunpack.c.h.b16 %v2898
        %v3465 = vunpack.c.l.b16 %v2899
        %v3466 = vunpack.c.l.b16 %v2900
        %v3467 = vunpack.c.h.b16 %v2900
        %v3468 = vunpack.c.l.b16 %v2901
        %v3469 = vunpack.c.h.b16 %v2901
        %v3470 = vunpack.c.l.b16 %v2902
        %v3471 = vunpack.c.h.b16 %v2902
        %v3472 = vunpack.c.l.b16 %v2903
        %v3473 = vunpack.c.l.b16 %v2904
        %v3474 = vunpack.c.h.b16 %v2904
        %v3475 = vunpack.c.l.b16 %v2905
        %v3476 = vunpack.c.h.b16 %v2905
        %v3477 = vunpack.c.l.b16 %v2906
        %v3478 = vunpack.c.h.b16 %v2906
        %v3479 = vunpack.c.l.b16 %v2907
        %v3480 = vunpack.c.l.b16 %v2908
        %v3481 = vunpack.c.h.b16 %v2908
        %v3482 = vunpack.c.l.b16 %v2909
        %v3483 = vunpack.c.h.b16 %v2909
        %v3484 = vunpack.c.l.b16 %v2910
        %v3485 = vunpack.c.h.b16 %v2910
        %v3486 = vunpack.c.l.b16 %v2911
        %v3487 = vunpack.c.l.b16 %v2912
        %v3488 = vunpack.c.h.b16 %v2912
        %v3489 = vunpack.c.l.b16 %v2913
        %v3490 = vunpack.c.h.b16 %v2913
        %v3491 = vunpack.c.l.b16 %v2914
        %v3492 = vunpack.c.h.b16 %v2914
        %v3493 = vunpack.c.l.b16 %v2915
        %v3494 = vunpack.c.l.b16 %v2916
        %v3495 = vunpack.c.h.b16 %v2916
        %v3496 = vunpack.c.l.b16 %v2917
        %v3497 = vunpack.c.h.b16 %v2917
        %v3498 = vunpack.c.l.b16 %v2918
        %v3499 = vunpack.c.h.b16 %v2918
        %v3500 = vunpack.c.l.b16 %v2919
        %v3501 = vunpack.c.l.b16 %v2920
        %v3502 = vunpack.c.h.b16 %v2920
        %v3503 = vunpack.c.l.b16 %v2921
        %v3504 = vunpack.c.h.b16 %v2921
        %v3505 = vunpack.c.l.b16 %v2922
        %v3506 = vunpack.c.h.b16 %v2922
        %v3507 = vunpack.c.l.b16 %v2923
        %v3508 = vunpack.c.l.b16 %v2924
        %v3509 = vunpack.c.h.b16 %v2924
        %v3510 = vunpack.c.l.b16 %v2925
        %v3511 = vunpack.c.h.b16 %v2925
        %v3512 = vunpack.c.l.b16 %v2926
        %v3513 = vunpack.c.h.b16 %v2926
        %v3514 = vunpack.c.l.b16 %v2927
        %v3515 = vpack.c.b16 %v3172, %v3165
        %v3516 = vpack.c.b16 %v3173, %v3166
        %v3517 = vpack.c.b16 %v3174, %v3167
        %v3518 = vpack.c.b16 %v3175, %v3168
        %v3519 = vpack.c.b16 %v3176, %v3169
        %v3520 = vpack.c.b16 %v3177, %v3170
        %v3521 = vpack.c.b16 %v3178, %v3171
        %v3522 = vpack.c.b16 %v3186, %v3179
        %v3523 = vpack.c.b16 %v3187, %v3180
        %v3524 = vpack.c.b16 %v3188, %v3181
        %v3525 = vpack.c.b16 %v3189, %v3182
        %v3526 = vpack.c.b16 %v3190, %v3183
        %v3527 = vpack.c.b16 %v3191, %v3184
        %v3528 = vpack.c.b16 %v3192, %v3185
        %v3529 = vpack.c.b16 %v3200, %v3193
        %v3530 = vpack.c.b16 %v3201, %v3194
        %v3531 = vpack.c.b16 %v3202, %v3195
        %v3532 = vpack.c.b16 %v3203, %v3196
        %v3533 = vpack.c.b16 %v3204, %v3197
        %v3534 = vpack.c.b16 %v3205, %v3198
        %v3535 = vpack.c.b16 %v3206, %v3199
        %v3536 = vpack.c.b16 %v3214, %v3207
        %v3537 = vpack.c.b16 %v3215, %v3208
        %v3538 = vpack.c.b16 %v3216, %v3209
        %v3539 = vpack.c.b16 %v3217, %v3210
        %v3540 = vpack.c.b16 %v3218, %v3211
        %v3541 = vpack.c.b16 %v3219, %v3212
        %v3542 = vpack.c.b16 %v3220, %v3213
        %v3543 = vpack.c.b16 %v3228, %v3221
        %v3544 = vpack.c.b16 %v3229, %v3222
        %v3545 = vpack.c.b16 %v3230, %v3223
        %v3546 = vpack.c.b16 %v3231, %v3224
        %v3547 = vpack.c.b16 %v3232, %v3225
        %v3548 = vpack.c.b16 %v3233, %v3226
        %v3549 = vpack.c.b16 %v3234, %v3227
        %v3550 = vpack.c.b16 %v3242, %v3235
        %v3551 = vpack.c.b16 %v3243, %v3236
        %v3552 = vpack.c.b16 %v3244, %v3237
        %v3553 = vpack.c.b16 %v3245, %v3238
        %v3554 = vpack.c.b16 %v3246, %v3239
        %v3555 = vpack.c.b16 %v3247, %v3240
        %v3556 = vpack.c.b16 %v3248, %v3241
        %v3557 = vpack.c.b16 %v3256, %v3249
        %v3558 = vpack.c.b16 %v3257, %v3250
        %v3559 = vpack.c.b16 %v3258, %v3251
        %v3560 = vpack.c.b16 %v3259, %v3252
        %v3561 = vpack.c.b16 %v3260, %v3253
        %v3562 = vpack.c.b16 %v3261, %v3254
        %v3563 = vpack.c.b16 %v3262, %v3255
        %v3564 = vpack.c.b16 %v3270, %v3263
        %v3565 = vpack.c.b16 %v3271, %v3264
        %v3566 = vpack.c.b16 %v3272, %v3265
        %v3567 = vpack.c.b16 %v3273, %v3266
        %v3568 = vpack.c.b16 %v3274, %v3267
        %v3569 = vpack.c.b16 %v3275, %v3268
        %v3570 = vpack.c.b16 %v3276, %v3269
        %v3571 = vpack.c.b16 %v3284, %v3277
        %v3572 = vpack.c.b16 %v3285, %v3278
        %v3573 = vpack.c.b16 %v3286, %v3279
        %v3574 = vpack.c.b16 %v3287, %v3280
        %v3575 = vpack.c.b16 %v3288, %v3281
        %v3576 = vpack.c.b16 %v3289, %v3282
        %v3577 = vpack.c.b16 %v3290, %v3283
        %v3578 = vpack.c.b16 %v3298, %v3291
        %v3579 = vpack.c.b16 %v3299, %v3292
        %v3580 = vpack.c.b16 %v3300, %v3293
        %v3581 = vpack.c.b16 %v3301, %v3294
        %v3582 = vpack.c.b16 %v3302, %v3295
        %v3583 = vpack.c.b16 %v3303, %v3296
        %v3584 = vpack.c.b16 %v3304, %v3297
        %v3585 = vpack.c.b16 %v3312, %v3305
        %v3586 = vpack.c.b16 %v3313, %v3306
        %v3587 = vpack.c.b16 %v3314, %v3307
        %v3588 = vpack.c.b16 %v3315, %v3308
        %v3589 = vpack.c.b16 %v3316, %v3309
        %v3590 = vpack.c.b16 %v3317, %v3310
        %v3591 = vpack.c.b16 %v3318, %v3311
        %v3592 = vpack.c.b16 %v3326, %v3319
        %v3593 = vpack.c.b16 %v3327, %v3320
        %v3594 = vpack.c.b16 %v3328, %v3321
        %v3595 = vpack.c.b16 %v3329, %v3322
        %v3596 = vpack.c.b16 %v3330, %v3323
        %v3597 = vpack.c.b16 %v3331, %v3324
        %v3598 = vpack.c.b16 %v3332, %v3325
        %v3599 = vpack.c.b16 %v3340, %v3333
        %v3600 = vpack.c.b16 %v3341, %v3334
        %v3601 = vpack.c.b16 %v3342, %v3335
        %v3602 = vpack.c.b16 %v3343, %v3336
        %v3603 = vpack.c.b16 %v3344, %v3337
        %v3604 = vpack.c.b16 %v3345, %v3338
        %v3605 = vpack.c.b16 %v3346, %v3339
        %v3606 = vpack.c.b16 %v3354, %v3347
        %v3607 = vpack.c.b16 %v3355, %v3348
        %v3608 = vpack.c.b16 %v3356, %v3349
        %v3609 = vpack.c.b16 %v3357, %v3350
        %v3610 = vpack.c.b16 %v3358, %v3351
        %v3611 = vpack.c.b16 %v3359, %v3352
        %v3612 = vpack.c.b16 %v3360, %v3353
        %v3613 = vpack.c.b16 %v3368, %v3361
        %v3614 = vpack.c.b16 %v3369, %v3362
        %v3615 = vpack.c.b16 %v3370, %v3363
        %v3616 = vpack.c.b16 %v3371, %v3364
        %v3617 = vpack.c.b16 %v3372, %v3365
        %v3618 = vpack.c.b16 %v3373, %v3366
        %v3619 = vpack.c.b16 %v3374, %v3367
        %v3620 = vpack.c.b16 %v3382, %v3375
        %v3621 = vpack.c.b16 %v3383, %v3376
        %v3622 = vpack.c.b16 %v3384, %v3377
        %v3623 = vpack.c.b16 %v3385, %v3378
        %v3624 = vpack.c.b16 %v3386, %v3379
        %v3625 = vpack.c.b16 %v3387, %v3380
        %v3626 = vpack.c.b16 %v3388, %v3381
        %v3627 = vpack.c.b16 %v3396, %v3389
        %v3628 = vpack.c.b16 %v3397, %v3390
        %v3629 = vpack.c.b16 %v3398, %v3391
        %v3630 = vpack.c.b16 %v3399, %v3392
        %v3631 = vpack.c.b16 %v3400, %v3393
        %v3632 = vpack.c.b16 %v3401, %v3394
        %v3633 = vpack.c.b16 %v3402, %v3395
        %v3634 = vpack.c.b16 %v3410, %v3403
        %v3635 = vpack.c.b16 %v3411, %v3404
        %v3636 = vpack.c.b16 %v3412, %v3405
        %v3637 = vpack.c.b16 %v3413, %v3406
        %v3638 = vpack.c.b16 %v3414, %v3407
        %v3639 = vpack.c.b16 %v3415, %v3408
        %v3640 = vpack.c.b16 %v3416, %v3409
        %v3641 = vpack.c.b16 %v3424, %v3417
        %v3642 = vpack.c.b16 %v3425, %v3418
        %v3643 = vpack.c.b16 %v3426, %v3419
        %v3644 = vpack.c.b16 %v3427, %v3420
        %v3645 = vpack.c.b16 %v3428, %v3421
        %v3646 = vpack.c.b16 %v3429, %v3422
        %v3647 = vpack.c.b16 %v3430, %v3423
        %v3648 = vpack.c.b16 %v3438, %v3431
        %v3649 = vpack.c.b16 %v3439, %v3432
        %v3650 = vpack.c.b16 %v3440, %v3433
        %v3651 = vpack.c.b16 %v3441, %v3434
        %v3652 = vpack.c.b16 %v3442, %v3435
        %v3653 = vpack.c.b16 %v3443, %v3436
        %v3654 = vpack.c.b16 %v3444, %v3437
        %v3655 = vpack.c.b16 %v3452, %v3445
        %v3656 = vpack.c.b16 %v3453, %v3446
        %v3657 = vpack.c.b16 %v3454, %v3447
        %v3658 = vpack.c.b16 %v3455, %v3448
        %v3659 = vpack.c.b16 %v3456, %v3449
        %v3660 = vpack.c.b16 %v3457, %v3450
        %v3661 = vpack.c.b16 %v3458, %v3451
        %v3662 = vpack.c.b16 %v3466, %v3459
        %v3663 = vpack.c.b16 %v3467, %v3460
        %v3664 = vpack.c.b16 %v3468, %v3461
        %v3665 = vpack.c.b16 %v3469, %v3462
        %v3666 = vpack.c.b16 %v3470, %v3463
        %v3667 = vpack.c.b16 %v3471, %v3464
        %v3668 = vpack.c.b16 %v3472, %v3465
        %v3669 = vpack.c.b16 %v3480, %v3473
        %v3670 = vpack.c.b16 %v3481, %v3474
        %v3671 = vpack.c.b16 %v3482, %v3475
        %v3672 = vpack.c.b16 %v3483, %v3476
        %v3673 = vpack.c.b16 %v3484, %v3477
        %v3674 = vpack.c.b16 %v3485, %v3478
        %v3675 = vpack.c.b16 %v3486, %v3479
        %v3676 = vpack.c.b16 %v3494, %v3487
        %v3677 = vpack.c.b16 %v3495, %v3488
        %v3678 = vpack.c.b16 %v3496, %v3489
        %v3679 = vpack.c.b16 %v3497, %v3490
        %v3680 = vpack.c.b16 %v3498, %v3491
        %v3681 = vpack.c.b16 %v3499, %v3492
        %v3682 = vpack.c.b16 %v3500, %v3493
        %v3683 = vpack.c.b16 %v3508, %v3501
        %v3684 = vpack.c.b16 %v3509, %v3502
        %v3685 = vpack.c.b16 %v3510, %v3503
        %v3686 = vpack.c.b16 %v3511, %v3504
        %v3687 = vpack.c.b16 %v3512, %v3505
        %v3688 = vpack.c.b16 %v3513, %v3506
        %v3689 = vpack.c.b16 %v3514, %v3507
        %v3866 = vsel %vm1712, %v2723, 0
        %v3869 = vsel %vm1712, %v2727, 0
        %3871 = vmatprep.subr.bf16.mxu0 %v3516
        %3872 = vmatpush1.bf16.msra.mxu0 %v3515
        %3873 = vmatprep.subr.bf16.mxu0 %v3523
        %3874 = vmatpush1.bf16.msra.mxu0 %v3522
        %3875 = vmatprep.subr.bf16.mxu0 %v3530
        %3876 = vmatpush1.bf16.msra.mxu0 %v3529
        %3877 = vmatprep.subr.bf16.mxu0 %v3537
        %3878 = vmatpush1.bf16.msra.mxu0 %v3536
        %3879 = vmatprep.subr.bf16.mxu0 %v3544
        %3880 = vmatpush1.bf16.msra.mxu0 %v3543
        %3881 = vmatprep.subr.bf16.mxu0 %v3551
        %3882 = vmatpush1.bf16.msra.mxu0 %v3550
        %3883 = vmatprep.subr.bf16.mxu0 %v3558
        %3884 = vmatpush1.bf16.msra.mxu0 %v3557
        %3885 = vmatprep.subr.bf16.mxu0 %v3565
        %3886 = vmatpush1.bf16.msra.mxu0 %v3564
        %3887 = vmatprep.subr.bf16.mxu0 %v3572
        %3888 = vmatpush1.bf16.msra.mxu0 %v3571
        %3889 = vmatprep.subr.bf16.mxu0 %v3579
        %3890 = vmatpush1.bf16.msra.mxu0 %v3578
        %3891 = vmatprep.subr.bf16.mxu0 %v3586
        %3892 = vmatpush1.bf16.msra.mxu0 %v3585
        %3893 = vmatprep.subr.bf16.mxu0 %v3593
        %3894 = vmatpush1.bf16.msra.mxu0 %v3592
        %3895 = vmatprep.subr.bf16.mxu0 %v3600
        %3896 = vmatpush1.bf16.msra.mxu0 %v3599
        %3897 = vmatprep.subr.bf16.mxu0 %v3607
        %3898 = vmatpush1.bf16.msra.mxu0 %v3606
        %3899 = vmatprep.subr.bf16.mxu0 %v3614
        %3900 = vmatpush1.bf16.msra.mxu0 %v3613
        %3901 = vmatprep.subr.bf16.mxu0 %v3621
        %3902 = vmatpush1.bf16.msra.mxu0 %v3620
        %3903 = vmatprep.mubr.bf16.mxu0 %v2721
        %3904 = vmatmul.mubr.bf16.gmra.mrb[0].mxu0 %v2720
        %v3905 = vpop.f32.mrb[0].mxu0
        %v3906 = vadd.f32 %v2933, %v3905
        %v3907 = vpop.f32.mrb[0].mxu0
        %v3908 = vadd.f32 %v2937, %v3907
        %v3909 = vpop.f32.mrb[0].mxu0
        %v3910 = vadd.f32 %v2933, %v3909
        %v3911 = vpop.f32.mrb[0].mxu0
        %v3912 = vadd.f32 %v2937, %v3911
        %3913 = vmatprep.mubr.bf16.mxu0 %v2725
        %3914 = vmatmul.mubr.bf16.gmra.mrb[0].mxu0 %v2724
        %v3915 = vpop.f32.mrb[0].mxu0
        %v3916 = vadd.f32 %v2933, %v3915
        %v3917 = vpop.f32.mrb[0].mxu0
        %v3918 = vadd.f32 %v2937, %v3917
        %v3919 = vpop.f32.mrb[0].mxu0
        %v3920 = vadd.f32 %v2933, %v3919
        %v3921 = vpop.f32.mrb[0].mxu0
        %v3922 = vadd.f32 %v2937, %v3921
        %3923 = vdwg.mxu0
        %3924 = vmatprep.subr.bf16.mxu0 %v3628
        %3925 = vmatpush1.bf16.msra.mxu0 %v3627
        %3926 = vmatprep.subr.bf16.mxu0 %v3635
        %3927 = vmatpush1.bf16.msra.mxu0 %v3634
        %3928 = vmatprep.subr.bf16.mxu0 %v3642
        %3929 = vmatpush1.bf16.msra.mxu0 %v3641
        %3930 = vmatprep.subr.bf16.mxu0 %v3649
        %3931 = vmatpush1.bf16.msra.mxu0 %v3648
        %3932 = vmatprep.subr.bf16.mxu0 %v3656
        %3933 = vmatpush1.bf16.msra.mxu0 %v3655
        %3934 = vmatprep.subr.bf16.mxu0 %v3663
        %3935 = vmatpush1.bf16.msra.mxu0 %v3662
        %3936 = vmatprep.subr.bf16.mxu0 %v3670
        %3937 = vmatpush1.bf16.msra.mxu0 %v3669
        %3938 = vmatprep.subr.bf16.mxu0 %v3677
        %3939 = vmatpush1.bf16.msra.mxu0 %v3676
        %3940 = vmatprep.subr.bf16.mxu0 %v3684
        %3941 = vmatpush1.bf16.msra.mxu0 %v3683
        %3942 = vmatprep.subr.bf16.mxu0 0
        %3943 = vmatpush1.bf16.msra.mxu0 0
        %3944 = vmatprep.subr.bf16.mxu0 0
        %3945 = vmatpush1.bf16.msra.mxu0 0
        %3946 = vmatprep.subr.bf16.mxu0 0
        %3947 = vmatpush1.bf16.msra.mxu0 0
        %3948 = vmatprep.subr.bf16.mxu0 0
        %3949 = vmatpush1.bf16.msra.mxu0 0
        %3950 = vmatprep.subr.bf16.mxu0 0
        %3951 = vmatpush1.bf16.msra.mxu0 0
        %3952 = vmatprep.subr.bf16.mxu0 0
        %3953 = vmatpush1.bf16.msra.mxu0 0
        %3954 = vmatprep.subr.bf16.mxu0 0
        %3955 = vmatpush1.bf16.msra.mxu0 0
        %3956 = vmatprep.mubr.bf16.mxu0 %v3866
        %3957 = vmatmul.mubr.bf16.gmra.mrb[0].mxu0 %v2722
        %v3958 = vpop.f32.mrb[0].mxu0
        %v3959 = vadd.f32 %v3906, %v3958
        %v3960 = vpop.f32.mrb[0].mxu0
        %v3961 = vadd.f32 %v3908, %v3960
        %v3962 = vpop.f32.mrb[0].mxu0
        %v3963 = vadd.f32 %v3910, %v3962
        %v3964 = vpop.f32.mrb[0].mxu0
        %v3965 = vadd.f32 %v3912, %v3964
        %3966 = vmatprep.mubr.bf16.mxu0 %v3869
        %3967 = vmatmul.mubr.bf16.gmra.mrb[0].mxu0 %v2726
        %v3968 = vpop.f32.mrb[0].mxu0
        %v3969 = vadd.f32 %v3916, %v3968
        %v3970 = vpop.f32.mrb[0].mxu0
        %v3971 = vadd.f32 %v3918, %v3970
        %v3972 = vpop.f32.mrb[0].mxu0
        %v3973 = vadd.f32 %v3920, %v3972
        %v3974 = vpop.f32.mrb[0].mxu0
        %v3975 = vadd.f32 %v3922, %v3974
        %3976 = vdwg.mxu0
        %3977 = vmatprep.subr.bf16.mxu0 %v3518
        %3978 = vmatpush1.bf16.msra.mxu0 %v3517
        %3979 = vmatprep.subr.bf16.mxu0 %v3525
        %3980 = vmatpush1.bf16.msra.mxu0 %v3524
        %3981 = vmatprep.subr.bf16.mxu0 %v3532
        %3982 = vmatpush1.bf16.msra.mxu0 %v3531
        %3983 = vmatprep.subr.bf16.mxu0 %v3539
        %3984 = vmatpush1.bf16.msra.mxu0 %v3538
        %3985 = vmatprep.subr.bf16.mxu0 %v3546
        %3986 = vmatpush1.bf16.msra.mxu0 %v3545
        %3987 = vmatprep.subr.bf16.mxu0 %v3553
        %3988 = vmatpush1.bf16.msra.mxu0 %v3552
        %3989 = vmatprep.subr.bf16.mxu0 %v3560
        %3990 = vmatpush1.bf16.msra.mxu0 %v3559
        %3991 = vmatprep.subr.bf16.mxu0 %v3567
        %3992 = vmatpush1.bf16.msra.mxu0 %v3566
        %3993 = vmatprep.subr.bf16.mxu0 %v3574
        %3994 = vmatpush1.bf16.msra.mxu0 %v3573
        %3995 = vmatprep.subr.bf16.mxu0 %v3581
        %3996 = vmatpush1.bf16.msra.mxu0 %v3580
        %3997 = vmatprep.subr.bf16.mxu0 %v3588
        %3998 = vmatpush1.bf16.msra.mxu0 %v3587
        %3999 = vmatprep.subr.bf16.mxu0 %v3595
        %4000 = vmatpush1.bf16.msra.mxu0 %v3594
        %4001 = vmatprep.subr.bf16.mxu0 %v3602
        %4002 = vmatpush1.bf16.msra.mxu0 %v3601
        %4003 = vmatprep.subr.bf16.mxu0 %v3609
        %4004 = vmatpush1.bf16.msra.mxu0 %v3608
        %4005 = vmatprep.subr.bf16.mxu0 %v3616
        %4006 = vmatpush1.bf16.msra.mxu0 %v3615
        %4007 = vmatprep.subr.bf16.mxu0 %v3623
        %4008 = vmatpush1.bf16.msra.mxu0 %v3622
        %4009 = vmatprep.mubr.bf16.mxu0 %v2721
        %4010 = vmatmul.mubr.bf16.gmra.mrb[0].mxu0 %v2720
        %v4011 = vpop.f32.mrb[0].mxu0
        %v4012 = vadd.f32 %v2941, %v4011
        %v4013 = vpop.f32.mrb[0].mxu0
        %v4014 = vadd.f32 %v2945, %v4013
        %v4015 = vpop.f32.mrb[0].mxu0
        %v4016 = vadd.f32 %v2941, %v4015
        %v4017 = vpop.f32.mrb[0].mxu0
        %v4018 = vadd.f32 %v2945, %v4017
        %4019 = vmatprep.mubr.bf16.mxu0 %v2725
        %4020 = vmatmul.mubr.bf16.gmra.mrb[0].mxu0 %v2724
        %v4021 = vpop.f32.mrb[0].mxu0
        %v4022 = vadd.f32 %v2941, %v4021
        %v4023 = vpop.f32.mrb[0].mxu0
        %v4024 = vadd.f32 %v2945, %v4023
        %v4025 = vpop.f32.mrb[0].mxu0
        %v4026 = vadd.f32 %v2941, %v4025
        %v4027 = vpop.f32.mrb[0].mxu0
        %v4028 = vadd.f32 %v2945, %v4027
        %4029 = vdwg.mxu0
        %4030 = vmatprep.subr.bf16.mxu0 %v3630
        %4031 = vmatpush1.bf16.msra.mxu0 %v3629
        %4032 = vmatprep.subr.bf16.mxu0 %v3637
        %4033 = vmatpush1.bf16.msra.mxu0 %v3636
        %4034 = vmatprep.subr.bf16.mxu0 %v3644
        %4035 = vmatpush1.bf16.msra.mxu0 %v3643
        %4036 = vmatprep.subr.bf16.mxu0 %v3651
        %4037 = vmatpush1.bf16.msra.mxu0 %v3650
        %4038 = vmatprep.subr.bf16.mxu0 %v3658
        %4039 = vmatpush1.bf16.msra.mxu0 %v3657
        %4040 = vmatprep.subr.bf16.mxu0 %v3665
        %4041 = vmatpush1.bf16.msra.mxu0 %v3664
        %4042 = vmatprep.subr.bf16.mxu0 %v3672
        %4043 = vmatpush1.bf16.msra.mxu0 %v3671
        %4044 = vmatprep.subr.bf16.mxu0 %v3679
        %4045 = vmatpush1.bf16.msra.mxu0 %v3678
        %4046 = vmatprep.subr.bf16.mxu0 %v3686
        %4047 = vmatpush1.bf16.msra.mxu0 %v3685
        %4048 = vmatprep.subr.bf16.mxu0 0
        %4049 = vmatpush1.bf16.msra.mxu0 0
        %4050 = vmatprep.subr.bf16.mxu0 0
        %4051 = vmatpush1.bf16.msra.mxu0 0
        %4052 = vmatprep.subr.bf16.mxu0 0
        %4053 = vmatpush1.bf16.msra.mxu0 0
        %4054 = vmatprep.subr.bf16.mxu0 0
        %4055 = vmatpush1.bf16.msra.mxu0 0
        %4056 = vmatprep.subr.bf16.mxu0 0
        %4057 = vmatpush1.bf16.msra.mxu0 0
        %4058 = vmatprep.subr.bf16.mxu0 0
        %4059 = vmatpush1.bf16.msra.mxu0 0
        %4060 = vmatprep.subr.bf16.mxu0 0
        %4061 = vmatpush1.bf16.msra.mxu0 0
        %4062 = vmatprep.mubr.bf16.mxu0 %v3866
        %4063 = vmatmul.mubr.bf16.gmra.mrb[0].mxu0 %v2722
        %v4064 = vpop.f32.mrb[0].mxu0
        %v4065 = vadd.f32 %v4012, %v4064
        %v4066 = vpop.f32.mrb[0].mxu0
        %v4067 = vadd.f32 %v4014, %v4066
        %v4068 = vpop.f32.mrb[0].mxu0
        %v4069 = vadd.f32 %v4016, %v4068
        %v4070 = vpop.f32.mrb[0].mxu0
        %v4071 = vadd.f32 %v4018, %v4070
        %4072 = vmatprep.mubr.bf16.mxu0 %v3869
        %4073 = vmatmul.mubr.bf16.gmra.mrb[0].mxu0 %v2726
        %v4074 = vpop.f32.mrb[0].mxu0
        %v4075 = vadd.f32 %v4022, %v4074
        %v4076 = vpop.f32.mrb[0].mxu0
        %v4077 = vadd.f32 %v4024, %v4076
        %v4078 = vpop.f32.mrb[0].mxu0
        %v4079 = vadd.f32 %v4026, %v4078
        %v4080 = vpop.f32.mrb[0].mxu0
        %v4081 = vadd.f32 %v4028, %v4080
        %4082 = vdwg.mxu0
        %4083 = vmatprep.subr.bf16.mxu0 %v3520
        %4084 = vmatpush1.bf16.msra.mxu0 %v3519
        %4085 = vmatprep.subr.bf16.mxu0 %v3527
        %4086 = vmatpush1.bf16.msra.mxu0 %v3526
        %4087 = vmatprep.subr.bf16.mxu0 %v3534
        %4088 = vmatpush1.bf16.msra.mxu0 %v3533
        %4089 = vmatprep.subr.bf16.mxu0 %v3541
        %4090 = vmatpush1.bf16.msra.mxu0 %v3540
        %4091 = vmatprep.subr.bf16.mxu0 %v3548
        %4092 = vmatpush1.bf16.msra.mxu0 %v3547
        %4093 = vmatprep.subr.bf16.mxu0 %v3555
        %4094 = vmatpush1.bf16.msra.mxu0 %v3554
        %4095 = vmatprep.subr.bf16.mxu0 %v3562
        %4096 = vmatpush1.bf16.msra.mxu0 %v3561
        %4097 = vmatprep.subr.bf16.mxu0 %v3569
        %4098 = vmatpush1.bf16.msra.mxu0 %v3568
        %4099 = vmatprep.subr.bf16.mxu0 %v3576
        %4100 = vmatpush1.bf16.msra.mxu0 %v3575
        %4101 = vmatprep.subr.bf16.mxu0 %v3583
        %4102 = vmatpush1.bf16.msra.mxu0 %v3582
        %4103 = vmatprep.subr.bf16.mxu0 %v3590
        %4104 = vmatpush1.bf16.msra.mxu0 %v3589
        %4105 = vmatprep.subr.bf16.mxu0 %v3597
        %4106 = vmatpush1.bf16.msra.mxu0 %v3596
        %4107 = vmatprep.subr.bf16.mxu0 %v3604
        %4108 = vmatpush1.bf16.msra.mxu0 %v3603
        %4109 = vmatprep.subr.bf16.mxu0 %v3611
        %4110 = vmatpush1.bf16.msra.mxu0 %v3610
        %4111 = vmatprep.subr.bf16.mxu0 %v3618
        %4112 = vmatpush1.bf16.msra.mxu0 %v3617
        %4113 = vmatprep.subr.bf16.mxu0 %v3625
        %4114 = vmatpush1.bf16.msra.mxu0 %v3624
        %4115 = vmatprep.mubr.bf16.mxu0 %v2721
        %4116 = vmatmul.mubr.bf16.gmra.mrb[0].mxu0 %v2720
        %v4117 = vpop.f32.mrb[0].mxu0
        %v4118 = vadd.f32 %v2949, %v4117
        %v4119 = vpop.f32.mrb[0].mxu0
        %v4120 = vadd.f32 %v2953, %v4119
        %v4121 = vpop.f32.mrb[0].mxu0
        %v4122 = vadd.f32 %v2949, %v4121
        %v4123 = vpop.f32.mrb[0].mxu0
        %v4124 = vadd.f32 %v2953, %v4123
        %4125 = vmatprep.mubr.bf16.mxu0 %v2725
        %4126 = vmatmul.mubr.bf16.gmra.mrb[0].mxu0 %v2724
        %v4127 = vpop.f32.mrb[0].mxu0
        %v4128 = vadd.f32 %v2949, %v4127
        %v4129 = vpop.f32.mrb[0].mxu0
        %v4130 = vadd.f32 %v2953, %v4129
        %v4131 = vpop.f32.mrb[0].mxu0
        %v4132 = vadd.f32 %v2949, %v4131
        %v4133 = vpop.f32.mrb[0].mxu0
        %v4134 = vadd.f32 %v2953, %v4133
        %4135 = vdwg.mxu0
        %4136 = vmatprep.subr.bf16.mxu0 %v3632
        %4137 = vmatpush1.bf16.msra.mxu0 %v3631
        %4138 = vmatprep.subr.bf16.mxu0 %v3639
        %4139 = vmatpush1.bf16.msra.mxu0 %v3638
        %4140 = vmatprep.subr.bf16.mxu0 %v3646
        %4141 = vmatpush1.bf16.msra.mxu0 %v3645
        %4142 = vmatprep.subr.bf16.mxu0 %v3653
        %4143 = vmatpush1.bf16.msra.mxu0 %v3652
        %4144 = vmatprep.subr.bf16.mxu0 %v3660
        %4145 = vmatpush1.bf16.msra.mxu0 %v3659
        %4146 = vmatprep.subr.bf16.mxu0 %v3667
        %4147 = vmatpush1.bf16.msra.mxu0 %v3666
        %4148 = vmatprep.subr.bf16.mxu0 %v3674
        %4149 = vmatpush1.bf16.msra.mxu0 %v3673
        %4150 = vmatprep.subr.bf16.mxu0 %v3681
        %4151 = vmatpush1.bf16.msra.mxu0 %v3680
        %4152 = vmatprep.subr.bf16.mxu0 %v3688
        %4153 = vmatpush1.bf16.msra.mxu0 %v3687
        %4154 = vmatprep.subr.bf16.mxu0 0
        %4155 = vmatpush1.bf16.msra.mxu0 0
        %4156 = vmatprep.subr.bf16.mxu0 0
        %4157 = vmatpush1.bf16.msra.mxu0 0
        %4158 = vmatprep.subr.bf16.mxu0 0
        %4159 = vmatpush1.bf16.msra.mxu0 0
        %4160 = vmatprep.subr.bf16.mxu0 0
        %4161 = vmatpush1.bf16.msra.mxu0 0
        %4162 = vmatprep.subr.bf16.mxu0 0
        %4163 = vmatpush1.bf16.msra.mxu0 0
        %4164 = vmatprep.subr.bf16.mxu0 0
        %4165 = vmatpush1.bf16.msra.mxu0 0
        %4166 = vmatprep.subr.bf16.mxu0 0
        %4167 = vmatpush1.bf16.msra.mxu0 0
        %4168 = vmatprep.mubr.bf16.mxu0 %v3866
        %4169 = vmatmul.mubr.bf16.gmra.mrb[0].mxu0 %v2722
        %v4170 = vpop.f32.mrb[0].mxu0
        %v4171 = vadd.f32 %v4118, %v4170
        %v4172 = vpop.f32.mrb[0].mxu0
        %v4173 = vadd.f32 %v4120, %v4172
        %v4174 = vpop.f32.mrb[0].mxu0
        %v4175 = vadd.f32 %v4122, %v4174
        %v4176 = vpop.f32.mrb[0].mxu0
        %v4177 = vadd.f32 %v4124, %v4176
        %4178 = vmatprep.mubr.bf16.mxu0 %v3869
        %4179 = vmatmul.mubr.bf16.gmra.mrb[0].mxu0 %v2726
        %v4180 = vpop.f32.mrb[0].mxu0
        %v4181 = vadd.f32 %v4128, %v4180
        %v4182 = vpop.f32.mrb[0].mxu0
        %v4183 = vadd.f32 %v4130, %v4182
        %v4184 = vpop.f32.mrb[0].mxu0
        %v4185 = vadd.f32 %v4132, %v4184
        %v4186 = vpop.f32.mrb[0].mxu0
        %v4187 = vadd.f32 %v4134, %v4186
        %4188 = vdwg.mxu0
        %4189 = vmatprep.subr.bf16.mxu0 0
        %4190 = vmatpush1.bf16.msra.mxu0 %v3521
        %4191 = vmatprep.subr.bf16.mxu0 0
        %4192 = vmatpush1.bf16.msra.mxu0 %v3528
        %4193 = vmatprep.subr.bf16.mxu0 0
        %4194 = vmatpush1.bf16.msra.mxu0 %v3535
        %4195 = vmatprep.subr.bf16.mxu0 0
        %4196 = vmatpush1.bf16.msra.mxu0 %v3542
        %4197 = vmatprep.subr.bf16.mxu0 0
        %4198 = vmatpush1.bf16.msra.mxu0 %v3549
        %4199 = vmatprep.subr.bf16.mxu0 0
        %4200 = vmatpush1.bf16.msra.mxu0 %v3556
        %4201 = vmatprep.subr.bf16.mxu0 0
        %4202 = vmatpush1.bf16.msra.mxu0 %v3563
        %4203 = vmatprep.subr.bf16.mxu0 0
        %4204 = vmatpush1.bf16.msra.mxu0 %v3570
        %4205 = vmatprep.subr.bf16.mxu0 0
        %4206 = vmatpush1.bf16.msra.mxu0 %v3577
        %4207 = vmatprep.subr.bf16.mxu0 0
        %4208 = vmatpush1.bf16.msra.mxu0 %v3584
        %4209 = vmatprep.subr.bf16.mxu0 0
        %4210 = vmatpush1.bf16.msra.mxu0 %v3591
        %4211 = vmatprep.subr.bf16.mxu0 0
        %4212 = vmatpush1.bf16.msra.mxu0 %v3598
        %4213 = vmatprep.subr.bf16.mxu0 0
        %4214 = vmatpush1.bf16.msra.mxu0 %v3605
        %4215 = vmatprep.subr.bf16.mxu0 0
        %4216 = vmatpush1.bf16.msra.mxu0 %v3612
        %4217 = vmatprep.subr.bf16.mxu0 0
        %4218 = vmatpush1.bf16.msra.mxu0 %v3619
        %4219 = vmatprep.subr.bf16.mxu0 0
        %4220 = vmatpush1.bf16.msra.mxu0 %v3626
        %4221 = vmatprep.mubr.bf16.mxu0 %v2721
        %4222 = vmatmul.mubr.bf16.gmra.mrb[0].mxu0 %v2720
        %v4223 = vpop.f32.mrb[0].mxu0
        %v4224 = vadd.f32 %v2957, %v4223
        %v4225 = vpop.f32.mrb[0].mxu0
        %v4226 = vpop.f32.mrb[0].mxu0
        %v4227 = vadd.f32 %v2957, %v4226
        %v4228 = vpop.f32.mrb[0].mxu0
        %4229 = vmatprep.mubr.bf16.mxu0 %v2725
        %4230 = vmatmul.mubr.bf16.gmra.mrb[0].mxu0 %v2724
        %v4231 = vpop.f32.mrb[0].mxu0
        %v4232 = vadd.f32 %v2957, %v4231
        %v4233 = vpop.f32.mrb[0].mxu0
        %v4234 = vpop.f32.mrb[0].mxu0
        %v4235 = vadd.f32 %v2957, %v4234
        %v4236 = vpop.f32.mrb[0].mxu0
        %4237 = vdwg.mxu0
        %4238 = vmatprep.subr.bf16.mxu0 0
        %4239 = vmatpush1.bf16.msra.mxu0 %v3633
        %4240 = vmatprep.subr.bf16.mxu0 0
        %4241 = vmatpush1.bf16.msra.mxu0 %v3640
        %4242 = vmatprep.subr.bf16.mxu0 0
        %4243 = vmatpush1.bf16.msra.mxu0 %v3647
        %4244 = vmatprep.subr.bf16.mxu0 0
        %4245 = vmatpush1.bf16.msra.mxu0 %v3654
        %4246 = vmatprep.subr.bf16.mxu0 0
        %4247 = vmatpush1.bf16.msra.mxu0 %v3661
        %4248 = vmatprep.subr.bf16.mxu0 0
        %4249 = vmatpush1.bf16.msra.mxu0 %v3668
        %4250 = vmatprep.subr.bf16.mxu0 0
        %4251 = vmatpush1.bf16.msra.mxu0 %v3675
        %4252 = vmatprep.subr.bf16.mxu0 0
        %4253 = vmatpush1.bf16.msra.mxu0 %v3682
        %4254 = vmatprep.subr.bf16.mxu0 0
        %4255 = vmatpush1.bf16.msra.mxu0 %v3689
        %4256 = vmatprep.subr.bf16.mxu0 0
        %4257 = vmatpush1.bf16.msra.mxu0 0
        %4258 = vmatprep.subr.bf16.mxu0 0
        %4259 = vmatpush1.bf16.msra.mxu0 0
        %4260 = vmatprep.subr.bf16.mxu0 0
        %4261 = vmatpush1.bf16.msra.mxu0 0
        %4262 = vmatprep.subr.bf16.mxu0 0
        %4263 = vmatpush1.bf16.msra.mxu0 0
        %4264 = vmatprep.subr.bf16.mxu0 0
        %4265 = vmatpush1.bf16.msra.mxu0 0
        %4266 = vmatprep.subr.bf16.mxu0 0
        %4267 = vmatpush1.bf16.msra.mxu0 0
        %4268 = vmatprep.subr.bf16.mxu0 0
        %4269 = vmatpush1.bf16.msra.mxu0 0
        %4270 = vmatprep.mubr.bf16.mxu0 %v3866
        %4271 = vmatmul.mubr.bf16.gmra.mrb[0].mxu0 %v2722
        %v4272 = vpop.f32.mrb[0].mxu0
        %v4273 = vadd.f32 %v4224, %v4272
        %v4274 = vpop.f32.mrb[0].mxu0
        %v4275 = vpop.f32.mrb[0].mxu0
        %v4276 = vadd.f32 %v4227, %v4275
        %v4277 = vpop.f32.mrb[0].mxu0
        %4278 = vmatprep.mubr.bf16.mxu0 %v3869
        %4279 = vmatmul.mubr.bf16.gmra.mrb[0].mxu0 %v2726
        %v4280 = vpop.f32.mrb[0].mxu0
        %v4281 = vadd.f32 %v4232, %v4280
        %v4282 = vpop.f32.mrb[0].mxu0
        %v4283 = vpop.f32.mrb[0].mxu0
        %v4284 = vadd.f32 %v4235, %v4283
        %v4285 = vpop.f32.mrb[0].mxu0
        %4286 = vdwg.mxu0
        %v4287 = vxor.u32 %v3959, 2147483648
        %v4288 = vxor.u32 %v3961, 2147483648
        %v4289 = vxor.u32 %v4065, 2147483648
        %v4290 = vxor.u32 %v4067, 2147483648
        %v4291 = vxor.u32 %v4171, 2147483648
        %v4292 = vxor.u32 %v4173, 2147483648
        %v4293 = vxor.u32 %v4273, 2147483648
        %v4294 = vxor.u32 %v3963, 2147483648
        %v4295 = vxor.u32 %v3965, 2147483648
        %v4296 = vxor.u32 %v4069, 2147483648
        %v4297 = vxor.u32 %v4071, 2147483648
        %v4298 = vxor.u32 %v4175, 2147483648
        %v4299 = vxor.u32 %v4177, 2147483648
        %v4300 = vxor.u32 %v4276, 2147483648
        %v4301 = vxor.u32 %v3969, 2147483648
        %v4302 = vxor.u32 %v3971, 2147483648
        %v4303 = vxor.u32 %v4075, 2147483648
        %v4304 = vxor.u32 %v4077, 2147483648
        %v4305 = vxor.u32 %v4181, 2147483648
        %v4306 = vxor.u32 %v4183, 2147483648
        %v4307 = vxor.u32 %v4281, 2147483648
        %v4308 = vxor.u32 %v3973, 2147483648
        %v4309 = vxor.u32 %v3975, 2147483648
        %v4310 = vxor.u32 %v4079, 2147483648
        %v4311 = vxor.u32 %v4081, 2147483648
        %v4312 = vxor.u32 %v4185, 2147483648
        %v4313 = vxor.u32 %v4187, 2147483648
        %v4314 = vxor.u32 %v4284, 2147483648
        %v4315 = vmul.f32 %v4287, 1.442695
        %v4316 = vpow.pop %v4315
        %v4317 = vmul.f32 %v4288, 1.442695
        %v4318 = vpow.pop %v4317
        %v4319 = vmul.f32 %v4289, 1.442695
        %v4320 = vpow.pop %v4319
        %v4321 = vmul.f32 %v4290, 1.442695
        %v4322 = vpow.pop %v4321
        %v4323 = vmul.f32 %v4291, 1.442695
        %v4324 = vpow.pop %v4323
        %v4325 = vmul.f32 %v4292, 1.442695
        %v4326 = vpow.pop %v4325
        %v4327 = vmul.f32 %v4293, 1.442695
        %v4328 = vpow.pop %v4327
        %v4329 = vmul.f32 %v4294, 1.442695
        %v4330 = vpow.pop %v4329
        %v4331 = vmul.f32 %v4295, 1.442695
        %v4332 = vpow.pop %v4331
        %v4333 = vmul.f32 %v4296, 1.442695
        %v4334 = vpow.pop %v4333
        %v4335 = vmul.f32 %v4297, 1.442695
        %v4336 = vpow.pop %v4335
        %v4337 = vmul.f32 %v4298, 1.442695
        %v4338 = vpow.pop %v4337
        %v4339 = vmul.f32 %v4299, 1.442695
        %v4340 = vpow.pop %v4339
        %v4341 = vmul.f32 %v4300, 1.442695
        %v4342 = vpow.pop %v4341
        %v4343 = vmul.f32 %v4301, 1.442695
        %v4344 = vpow.pop %v4343
        %v4345 = vmul.f32 %v4302, 1.442695
        %v4346 = vpow.pop %v4345
        %v4347 = vmul.f32 %v4303, 1.442695
        %v4348 = vpow.pop %v4347
        %v4349 = vmul.f32 %v4304, 1.442695
        %v4350 = vpow.pop %v4349
        %v4351 = vmul.f32 %v4305, 1.442695
        %v4352 = vpow.pop %v4351
        %v4353 = vmul.f32 %v4306, 1.442695
        %v4354 = vpow.pop %v4353
        %v4355 = vmul.f32 %v4307, 1.442695
        %v4356 = vpow.pop %v4355
        %v4357 = vmul.f32 %v4308, 1.442695
        %v4358 = vpow.pop %v4357
        %v4359 = vmul.f32 %v4309, 1.442695
        %v4360 = vpow.pop %v4359
        %v4361 = vmul.f32 %v4310, 1.442695
        %v4362 = vpow.pop %v4361
        %v4363 = vmul.f32 %v4311, 1.442695
        %v4364 = vpow.pop %v4363
        %v4365 = vmul.f32 %v4312, 1.442695
        %v4366 = vpow.pop %v4365
        %v4367 = vmul.f32 %v4313, 1.442695
        %v4368 = vpow.pop %v4367
        %v4369 = vmul.f32 %v4314, 1.442695
        %v4370 = vpow.pop %v4369
        %v4371 = vadd.f32 %v4316, 1.0
        %v4372 = vadd.f32 %v4318, 1.0
        %v4373 = vadd.f32 %v4320, 1.0
        %v4374 = vadd.f32 %v4322, 1.0
        %v4375 = vadd.f32 %v4324, 1.0
        %v4376 = vadd.f32 %v4326, 1.0
        %v4377 = vadd.f32 %v4328, 1.0
        %v4378 = vadd.f32 %v4330, 1.0
        %v4379 = vadd.f32 %v4332, 1.0
        %v4380 = vadd.f32 %v4334, 1.0
        %v4381 = vadd.f32 %v4336, 1.0
        %v4382 = vadd.f32 %v4338, 1.0
        %v4383 = vadd.f32 %v4340, 1.0
        %v4384 = vadd.f32 %v4342, 1.0
        %v4385 = vadd.f32 %v4344, 1.0
        %v4386 = vadd.f32 %v4346, 1.0
        %v4387 = vadd.f32 %v4348, 1.0
        %v4388 = vadd.f32 %v4350, 1.0
        %v4389 = vadd.f32 %v4352, 1.0
        %v4390 = vadd.f32 %v4354, 1.0
        %v4391 = vadd.f32 %v4356, 1.0
        %v4392 = vadd.f32 %v4358, 1.0
        %v4393 = vadd.f32 %v4360, 1.0
        %v4394 = vadd.f32 %v4362, 1.0
        %v4395 = vadd.f32 %v4364, 1.0
        %v4396 = vadd.f32 %v4366, 1.0
        %v4397 = vadd.f32 %v4368, 1.0
        %v4398 = vadd.f32 %v4370, 1.0
        %v4399 = vrcp.pop %v4371
        %v4400 = vmul.f32 1.0, %v4399
        %v4401 = vrcp.pop %v4372
        %v4402 = vmul.f32 1.0, %v4401
        %v4403 = vrcp.pop %v4373
        %v4404 = vmul.f32 1.0, %v4403
        %v4405 = vrcp.pop %v4374
        %v4406 = vmul.f32 1.0, %v4405
        %v4407 = vrcp.pop %v4375
        %v4408 = vmul.f32 1.0, %v4407
        %v4409 = vrcp.pop %v4376
        %v4410 = vmul.f32 1.0, %v4409
        %v4411 = vrcp.pop %v4377
        %v4412 = vmul.f32 1.0, %v4411
        %v4413 = vrcp.pop %v4378
        %v4414 = vmul.f32 1.0, %v4413
        %v4415 = vrcp.pop %v4379
        %v4416 = vmul.f32 1.0, %v4415
        %v4417 = vrcp.pop %v4380
        %v4418 = vmul.f32 1.0, %v4417
        %v4419 = vrcp.pop %v4381
        %v4420 = vmul.f32 1.0, %v4419
        %v4421 = vrcp.pop %v4382
        %v4422 = vmul.f32 1.0, %v4421
        %v4423 = vrcp.pop %v4383
        %v4424 = vmul.f32 1.0, %v4423
        %v4425 = vrcp.pop %v4384
        %v4426 = vmul.f32 1.0, %v4425
        %v4427 = vrcp.pop %v4385
        %v4428 = vmul.f32 1.0, %v4427
        %v4429 = vrcp.pop %v4386
        %v4430 = vmul.f32 1.0, %v4429
        %v4431 = vrcp.pop %v4387
        %v4432 = vmul.f32 1.0, %v4431
        %v4433 = vrcp.pop %v4388
        %v4434 = vmul.f32 1.0, %v4433
        %v4435 = vrcp.pop %v4389
        %v4436 = vmul.f32 1.0, %v4435
        %v4437 = vrcp.pop %v4390
        %v4438 = vmul.f32 1.0, %v4437
        %v4439 = vrcp.pop %v4391
        %v4440 = vmul.f32 1.0, %v4439
        %v4441 = vrcp.pop %v4392
        %v4442 = vmul.f32 1.0, %v4441
        %v4443 = vrcp.pop %v4393
        %v4444 = vmul.f32 1.0, %v4443
        %v4445 = vrcp.pop %v4394
        %v4446 = vmul.f32 1.0, %v4445
        %v4447 = vrcp.pop %v4395
        %v4448 = vmul.f32 1.0, %v4447
        %v4449 = vrcp.pop %v4396
        %v4450 = vmul.f32 1.0, %v4449
        %v4451 = vrcp.pop %v4397
        %v4452 = vmul.f32 1.0, %v4451
        %v4453 = vrcp.pop %v4398
        %v4454 = vmul.f32 1.0, %v4453
        %v4455 = vpack.c.bf16 %v4414, %v4400
        %v4456 = vpack.c.bf16 %v4416, %v4402
        %v4457 = vpack.c.bf16 %v4418, %v4404
        %v4458 = vpack.c.bf16 %v4420, %v4406
        %v4459 = vpack.c.bf16 %v4422, %v4408
        %v4460 = vpack.c.bf16 %v4424, %v4410
        %v4461 = vpack.c.bf16 %v4426, %v4412
        %v4462 = vpack.c.bf16 %v4442, %v4428
        %v4463 = vpack.c.bf16 %v4444, %v4430
        %v4464 = vpack.c.bf16 %v4446, %v4432
        %v4465 = vpack.c.bf16 %v4448, %v4434
        %v4466 = vpack.c.bf16 %v4450, %v4436
        %v4467 = vpack.c.bf16 %v4452, %v4438
        %v4468 = vpack.c.bf16 %v4454, %v4440
        %v4483 = vunpack.c.l.b16 %v4455
        %v4484 = vunpack.c.l.b16 %v4456
        %v4485 = vunpack.c.l.b16 %v4457
        %v4486 = vunpack.c.l.b16 %v4458
        %v4487 = vunpack.c.l.b16 %v4459
        %v4488 = vunpack.c.l.b16 %v4460
        %v4489 = vunpack.c.l.b16 %v4461
        %v4490 = vunpack.c.h.b16 %v4455
        %v4491 = vunpack.c.h.b16 %v4456
        %v4492 = vunpack.c.h.b16 %v4457
        %v4493 = vunpack.c.h.b16 %v4458
        %v4494 = vunpack.c.h.b16 %v4459
        %v4495 = vunpack.c.h.b16 %v4460
        %v4496 = vunpack.c.h.b16 %v4461
        %v4497 = vunpack.c.l.b16 %v4462
        %v4498 = vunpack.c.l.b16 %v4463
        %v4499 = vunpack.c.l.b16 %v4464
        %v4500 = vunpack.c.l.b16 %v4465
        %v4501 = vunpack.c.l.b16 %v4466
        %v4502 = vunpack.c.l.b16 %v4467
        %v4503 = vunpack.c.l.b16 %v4468
        %v4504 = vunpack.c.h.b16 %v4462
        %v4505 = vunpack.c.h.b16 %v4463
        %v4506 = vunpack.c.h.b16 %v4464
        %v4507 = vunpack.c.h.b16 %v4465
        %v4508 = vunpack.c.h.b16 %v4466
        %v4509 = vunpack.c.h.b16 %v4467
        %v4510 = vunpack.c.h.b16 %v4468
        %v4511 = vpack.c.b16 %v4484, %v4483
        %v4512 = vpack.c.b16 %v4486, %v4485
        %v4513 = vpack.c.b16 %v4488, %v4487
        %v4514 = vpack.c.b16 %v4489, %v4489
        %v4515 = vpack.c.b16 %v4491, %v4490
        %v4516 = vpack.c.b16 %v4493, %v4492
        %v4517 = vpack.c.b16 %v4495, %v4494
        %v4518 = vpack.c.b16 %v4496, %v4496
        %v4519 = vpack.c.b16 %v4498, %v4497
        %v4520 = vpack.c.b16 %v4500, %v4499
        %v4521 = vpack.c.b16 %v4502, %v4501
        %v4522 = vpack.c.b16 %v4503, %v4503
        %v4523 = vpack.c.b16 %v4505, %v4504
        %v4524 = vpack.c.b16 %v4507, %v4506
        %v4525 = vpack.c.b16 %v4509, %v4508
        %v4526 = vpack.c.b16 %v4510, %v4510
        %4543 = vst [vmem:[%s399] sm:$0xff] %v4511
        %4544 = vst [vmem:[%s399 + $0x8] sm:$0xff] %v4512
        %4545 = vst [vmem:[%s399 + $0x10] sm:$0xff] %v4513
        %vm4546 = vcmask 125952
        %4547 = vst.msk [vmem:[%s399 + $0x18] sm:$0xf] %vm4546, %v4514
        %4548 = vst [vmem:[%s399 + $0x1c] sm:$0xff] %v4515
        %4549 = vst [vmem:[%s399 + $0x24] sm:$0xff] %v4516
        %4550 = vst [vmem:[%s399 + $0x2c] sm:$0xff] %v4517
        %4551 = vst.msk [vmem:[%s399 + $0x34] sm:$0xf] %vm4546, %v4518
        %4552 = vst [vmem:[%s399 + $0x38] sm:$0xff] %v4519
        %4553 = vst [vmem:[%s399 + $0x40] sm:$0xff] %v4520
        %4554 = vst [vmem:[%s399 + $0x48] sm:$0xff] %v4521
        %4555 = vst.msk [vmem:[%s399 + $0x50] sm:$0xf] %vm4546, %v4522
        %4556 = vst [vmem:[%s399 + $0x54] sm:$0xff] %v4523
        %4557 = vst [vmem:[%s399 + $0x5c] sm:$0xff] %v4524
        %4558 = vst [vmem:[%s399 + $0x64] sm:$0xff] %v4525
        %4559 = vst.msk [vmem:[%s399 + $0x6c] sm:$0xf] %vm4546, %v4526
        %4560 = vst [vmem:[%s425] sm:$0xff] %v2464
        %4561 = vst [vmem:[%s425 + $0x8] sm:$0xff] %v2467
        %4562 = vst [vmem:[%s425 + $0x10] sm:$0xff] %v2472
        %4563 = vst [vmem:[%s425 + $0x18] sm:$0xff] %v2475
        %s4564 = sand.u32 %s254, 1
        %s4565 = scalar_lea.sflag [#allocation3], %s4564
        %s4566 = sand.u32 %s254, 1
        %s4567 = smul.addr %s4566, 112
        %s4568 = scalar_lea.vmem [#allocation2], %s4567
        %s4569 = smul.u32 4, %s26
        %p4570 = scmp.lt.s32.totalorder %s4569, 7
        %s4571 = scalar_select %p4570, %s4569, 7
        %s4572 = smul.addr %s4571, 8
        %s4573 = scalar_lea.vmem %s11, %s4572
        // Predicated region
        $region61: #{vae_forward.1} parent=59 // pred_check
          %p4574 = pneg %p264
        $region62: #{vae_forward.1} parent=59 // pred_check_branch
          %4576 = sbr.rel (%p4574) target = $region64
        $region63: #{vae_forward.1} parent=59 // pred_region
          %s4577 = smul.u32 4, %s26
          %s4579 = ssub.s32 1792, 1792
          %4580 = vsyncadd %s4565, %s4579
          %s4581 = smul.addr %s4577, 7
          %s4582 = smul.addr %s4581, 64
          %s4583 = scalar_lea.hbm %s10, %s4582
          %s4584 = sshll.u32 %s4568, 4
          %s4585 = int_to_ptr.vmem [resolvable:$true] %s4584
          %4590 = dma.vmem_to_hbm [thread:$0]  %s4585, 1792, %s4583, %s4565, 448, 448, 28
        $region64: #{vae_forward.1} parent=59 // pred_fallthru
          _
        // Predicated region
        $region65: #{vae_forward.1} parent=59 // pred_check
          %p4591 = pneg %p290
        $region66: #{vae_forward.1} parent=59 // pred_check_branch
          %4593 = sbr.rel (%p4591) target = $region68
        $region67: #{vae_forward.1} parent=59 // pred_region
          %s4594 = smul.u32 4, %s26
        $region68: #{vae_forward.1} parent=59 // pred_fallthru
          _
      $region60: #{vae_forward.1} parent=5 // pred_fallthru
        _
      %p4595 = scmp.le.s32.totalorder 2, %s21
      // Predicated region
      $region69: #{vae_forward.1} parent=5 // pred_check
        %p4596 = pneg %p4595
      $region70: #{vae_forward.1} parent=5 // pred_check_branch
        %4598 = sbr.rel (%p4596) target = $region72
      $region71: #{vae_forward.1} parent=5 // pred_region
        %s4599 = ssub.s32 %s21, 2
        // Predicated region
        $region73: #{vae_forward.1} parent=71 // pred_check
          %p4600 = pneg %p270
        $region74: #{vae_forward.1} parent=71 // pred_check_branch
          %4602 = sbr.rel (%p4600) target = $region76
        $region75: #{vae_forward.1} parent=71 // pred_region
          %s4603 = sand.u32 %s255, 1
          %s4604 = scalar_lea.sflag [#allocation3], %s4603
          %s4605 = sand.u32 %s255, 1
          %s4606 = smul.addr %s4605, 112
          %s4607 = scalar_lea.vmem [#allocation2], %s4606
          %4608 = dma.done %s4604, 1792
        $region76: #{vae_forward.1} parent=71 // pred_fallthru
          _
        // Predicated region
        $region77: #{vae_forward.1} parent=71 // pred_check
          %p4609 = pneg %p296
        $region78: #{vae_forward.1} parent=71 // pred_check_branch
          %4611 = sbr.rel (%p4609) target = $region80
        $region79: #{vae_forward.1} parent=71 // pred_region
          %s4612 = smul.u32 4, %s27
          %p4613 = scmp.lt.s32.totalorder %s4612, 7
          %s4614 = scalar_select %p4613, %s4612, 7
          %s4615 = smul.addr %s4614, 8
          %s4616 = scalar_lea.vmem %s11, %s4615
        $region80: #{vae_forward.1} parent=71 // pred_fallthru
          _
      $region72: #{vae_forward.1} parent=5 // pred_fallthru
        _
    $region6: #{vae_forward.1} parent=1 // loop_footer
      %s25 = sadd.s32 1, %s21
    $region7: #{vae_forward.1} parent=1 // loop_footer_branch
      %20 = sbr.rel target = $region3
    $region8: #{vae_forward.1} parent=1 // loop_exit
      _
    %4617 = vsyncpa [#allocation3], 1
    %s4618 = scalar_lea.sflag [#allocation3], 1
    %4619 = vsyncpa %s4618, 1

</llo_original>
